<compile_context>
chip_gen: v7x
topology: tpu7x:2x2x1
jax: 0.10.0
libtpu: 0.0.40
codegen_flags: <defaults>
</compile_context>

<pallas_src>
import functools
import math

import jax
import jax.numpy as jnp
from jax import lax
from jax.experimental import pallas as pl
from jax.experimental.pallas import tpu as pltpu

NUM_HEADS = 4
LN_EPS = 1e-5


def _layernorm(v, w, b):
    mu = jnp.mean(v, axis=-1, keepdims=True)
    var = jnp.mean((v - mu) ** 2, axis=-1, keepdims=True)
    return (v - mu) * lax.rsqrt(var + LN_EPS) * w + b


def _gelu_exact(x):
    # PyTorch nn.GELU() default = exact erf-based GELU.
    return 0.5 * x * (1.0 + lax.erf(x * (1.0 / math.sqrt(2.0))))


def self_attention_kernel(
    x_ref,                      # (B, C, S)  NCHW-native input (spatial flattened)
    ln1w_ref, ln1b_ref,         # (1, C)
    wqkv_ref, bqkv_ref,         # (C, 3C), (1, 3C)
    wout_ref, bout_ref,         # (C, C),  (1, C)
    ln2w_ref, ln2b_ref,         # (1, C)
    w1_ref, b1_ref,             # (C, C),  (1, C)
    w2_ref, b2_ref,             # (C, C),  (1, C)
    o_ref,                      # (B, C, S)  NCHW-native output
):
    B, C, S = x_ref.shape
    D = C // NUM_HEADS
    scale = 1.0 / math.sqrt(D)

    # ---- NCHW-native (C, S) tiles -> token-major rows, batch folded ----
    # Small in-kernel transposes (XLU) replace wrapper-side HBM transposes;
    # the sublane concat stacks the B batches into one (B*S, C) row block.
    x2d = jnp.concatenate(
        [jnp.transpose(x_ref[b], (1, 0)) for b in range(B)], axis=0)   # (B*S, C)

    # ---- pre-LN + fused QKV projection over all B*S tokens ----
    x_ln = _layernorm(x2d, ln1w_ref[0], ln1b_ref[0])
    qkv = jnp.dot(x_ln, wqkv_ref[...], preferred_element_type=jnp.float32) + bqkv_ref[0]
    q = qkv[:, 0 * C:1 * C] * scale
    k = qkv[:, 1 * C:2 * C]
    v = qkv[:, 2 * C:3 * C]

    w_out = wout_ref[...]

    # ---- attention: only score/softmax/context is per (batch, head) ----
    # Output projection is accumulated per head, so no lane-axis head concat
    # is ever materialized.
    attn_rows = []
    for b in range(B):
        r0 = b * S
        attn_b = None
        for h in range(NUM_HEADS):
            c0 = h * D
            qh = q[r0:r0 + S, c0:c0 + D]                               # (S, D)
            kh = k[r0:r0 + S, c0:c0 + D]
            vh = v[r0:r0 + S, c0:c0 + D]
            s = lax.dot_general(qh, kh, (((1,), (1,)), ((), ())),
                                preferred_element_type=jnp.float32)    # (S, S)
            s = s - jnp.max(s, axis=-1, keepdims=True)
            p = jnp.exp(s)
            p = p / jnp.sum(p, axis=-1, keepdims=True)                 # exact softmax
            ctx = jnp.dot(p, vh, preferred_element_type=jnp.float32)   # (S, D)
            part = jnp.dot(ctx, w_out[c0:c0 + D, :],
                           preferred_element_type=jnp.float32)         # (S, C)
            attn_b = part if attn_b is None else attn_b + part
        attn_rows.append(attn_b)
    attn = jnp.concatenate(attn_rows, axis=0) + bout_ref[0]            # (B*S, C)

    h1 = attn + x2d

    # ---- feed-forward: LN -> Linear -> GELU -> Linear, + residual ----
    h_ln = _layernorm(h1, ln2w_ref[0], ln2b_ref[0])
    f = jnp.dot(h_ln, w1_ref[...], preferred_element_type=jnp.float32) + b1_ref[0]
    f = _gelu_exact(f)
    f = jnp.dot(f, w2_ref[...], preferred_element_type=jnp.float32) + b2_ref[0]
    out2d = f + h1                                                     # (B*S, C)

    # ---- rows -> NCHW-native (B, C, S): wrapper only needs a reshape ----
    for b in range(B):
        o_ref[b] = jnp.transpose(out2d[b * S:(b + 1) * S, :], (1, 0)).astype(o_ref.dtype)


def self_attention_forward(x_nchw, params, *, channels, size):
    """x_nchw: (B, C, size, size) float32, mirrors the PyTorch forward."""
    B = x_nchw.shape[0]
    C = channels
    S = size * size
    # NCHW -> (B, C, S): pure reshape, no HBM transpose.
    x_bcs = x_nchw.reshape(B, C, S)

    vmem = pl.BlockSpec(memory_space=pltpu.MemorySpace.VMEM)
    out_bcs = pl.pallas_call(
        self_attention_kernel,
        out_shape=jax.ShapeDtypeStruct((B, C, S), jnp.float32),
        in_specs=[vmem] * 13,
        out_specs=vmem,
    )(
        x_bcs,
        params["ln1_w"], params["ln1_b"],
        params["w_qkv"], params["b_qkv"],
        params["w_out"], params["b_out"],
        params["ln2_w"], params["ln2_b"],
        params["w1"], params["b1"],
        params["w2"], params["b2"],
    )

    # (B, C, S) -> NCHW: pure reshape, no HBM transpose.
    return out_bcs.reshape(B, C, size, size)


def reference_forward(x_nchw, params, *, channels, size):
    """Pure-JAX reference matching PyTorch SelfAttention semantics."""
    B = x_nchw.shape[0]
    C = channels
    S = size * size
    D = C // NUM_HEADS
    x = jnp.transpose(x_nchw.reshape(B, C, S), (0, 2, 1))   # (B, S, C)

    def ln(v, w, b):
        mu = jnp.mean(v, axis=-1, keepdims=True)
        var = jnp.mean((v - mu) ** 2, axis=-1, keepdims=True)
        return (v - mu) / jnp.sqrt(var + LN_EPS) * w + b

    x_ln = ln(x, params["ln1_w"][0], params["ln1_b"][0])
    qkv = x_ln @ params["w_qkv"] + params["b_qkv"][0]
    q, k, v = jnp.split(qkv, 3, axis=-1)
    q = q.reshape(B, S, NUM_HEADS, D).transpose(0, 2, 1, 3)
    k = k.reshape(B, S, NUM_HEADS, D).transpose(0, 2, 1, 3)
    v = v.reshape(B, S, NUM_HEADS, D).transpose(0, 2, 1, 3)
    s = jnp.einsum("bhqd,bhkd->bhqk", q, k) / math.sqrt(D)
    p = jax.nn.softmax(s, axis=-1)
    a = jnp.einsum("bhqk,bhkd->bhqd", p, v).transpose(0, 2, 1, 3).reshape(B, S, C)
    a = a @ params["w_out"] + params["b_out"][0]
    h1 = a + x
    h_ln = ln(h1, params["ln2_w"][0], params["ln2_b"][0])
    f = h_ln @ params["w1"] + params["b1"][0]
    f = 0.5 * f * (1.0 + lax.erf(f / math.sqrt(2.0)))
    f = f @ params["w2"] + params["b2"][0]
    out = f + h1
    return jnp.transpose(out, (0, 2, 1)).reshape(B, C, size, size)


def make_params(key, channels):
    C = channels
    ks = jax.random.split(key, 6)
    scale = 0.05
    return {
        "ln1_w": jnp.ones((1, C), jnp.float32),
        "ln1_b": jnp.zeros((1, C), jnp.float32),
        # in_proj_weight is (3C, C) in torch; we store its transpose (C, 3C)
        "w_qkv": scale * jax.random.normal(ks[0], (C, 3 * C), jnp.float32),
        "b_qkv": scale * jax.random.normal(ks[1], (1, 3 * C), jnp.float32),
        "w_out": scale * jax.random.normal(ks[2], (C, C), jnp.float32),
        "b_out": jnp.zeros((1, C), jnp.float32),
        "ln2_w": jnp.ones((1, C), jnp.float32),
        "ln2_b": jnp.zeros((1, C), jnp.float32),
        "w1": scale * jax.random.normal(ks[3], (C, C), jnp.float32),
        "b1": scale * jax.random.normal(ks[4], (1, C), jnp.float32),
        "w2": scale * jax.random.normal(ks[5], (C, C), jnp.float32),
        "b2": jnp.zeros((1, C), jnp.float32),
    }


if __name__ == "__main__":
    B, C, SIZE = 2, 32, 8          # channels divisible by 4 heads; head_dim = 8
    key = jax.random.PRNGKey(0)
    kx, kp = jax.random.split(key)
    x = jax.random.normal(kx, (B, C, SIZE, SIZE), jnp.float32)
    params = make_params(kp, C)

    fwd = jax.jit(functools.partial(self_attention_forward, channels=C, size=SIZE))
    out = jax.block_until_ready(fwd(x, params))

    ref = reference_forward(x, params, channels=C, size=SIZE)
    assert out.shape == (B, C, SIZE, SIZE)
    assert jnp.allclose(out, ref, rtol=1e-4, atol=1e-4), \
        f"max abs err = {jnp.max(jnp.abs(out - ref))}"

    print("KERNEL_OK")
</pallas_src>

<mosaic_0001>
module attributes {stable_mosaic.version = 11 : i64} {
  func.func @self_attention_kernel(%arg0: memref<2x32x64xf32, #tpu.memory_space<vmem>>, %arg1: memref<1x32xf32, #tpu.memory_space<vmem>>, %arg2: memref<1x32xf32, #tpu.memory_space<vmem>>, %arg3: memref<32x96xf32, #tpu.memory_space<vmem>>, %arg4: memref<1x96xf32, #tpu.memory_space<vmem>>, %arg5: memref<32x32xf32, #tpu.memory_space<vmem>>, %arg6: memref<1x32xf32, #tpu.memory_space<vmem>>, %arg7: memref<1x32xf32, #tpu.memory_space<vmem>>, %arg8: memref<1x32xf32, #tpu.memory_space<vmem>>, %arg9: memref<32x32xf32, #tpu.memory_space<vmem>>, %arg10: memref<1x32xf32, #tpu.memory_space<vmem>>, %arg11: memref<32x32xf32, #tpu.memory_space<vmem>>, %arg12: memref<1x32xf32, #tpu.memory_space<vmem>>, %arg13: memref<2x32x64xf32, #tpu.memory_space<vmem>>) attributes {dimension_semantics = [], scalar_prefetch = 0 : i64, scratch_operands = 0 : i64, tpu.core_type = #tpu.core_type<tc>} {
    %c0 = arith.constant 0 : index
    %c0_0 = arith.constant 0 : index
    %c0_1 = arith.constant 0 : index
    %0 = vector.load %arg0[%c0, %c0_0, %c0_1] : memref<2x32x64xf32, #tpu.memory_space<vmem>>, vector<1x32x64xf32>
    %1 = vector.shape_cast %0 : vector<1x32x64xf32> to vector<32x64xf32>
    %2 = tpu.transpose %1, [1, 0] : vector<32x64xf32> -> vector<64x32xf32>
    %c1 = arith.constant 1 : index
    %c0_2 = arith.constant 0 : index
    %c0_3 = arith.constant 0 : index
    %3 = vector.load %arg0[%c1, %c0_2, %c0_3] : memref<2x32x64xf32, #tpu.memory_space<vmem>>, vector<1x32x64xf32>
    %4 = vector.shape_cast %3 : vector<1x32x64xf32> to vector<32x64xf32>
    %5 = tpu.transpose %4, [1, 0] : vector<32x64xf32> -> vector<64x32xf32>
    %6 = tpu.concatenate %2, %5 in 0 : vector<64x32xf32>, vector<64x32xf32> -> vector<128x32xf32>
    %c0_4 = arith.constant 0 : index
    %c0_5 = arith.constant 0 : index
    %7 = vector.load %arg1[%c0_4, %c0_5] : memref<1x32xf32, #tpu.memory_space<vmem>>, vector<1x32xf32>
    %8 = vector.shape_cast %7 : vector<1x32xf32> to vector<32xf32>
    %c0_6 = arith.constant 0 : index
    %c0_7 = arith.constant 0 : index
    %9 = vector.load %arg2[%c0_6, %c0_7] : memref<1x32xf32, #tpu.memory_space<vmem>>, vector<1x32xf32>
    %10 = vector.shape_cast %9 : vector<1x32xf32> to vector<32xf32>
    %cst = arith.constant dense<0.000000e+00> : vector<128xf32>
    %11 = vector.multi_reduction <add>, %6, %cst [1] : vector<128x32xf32> to vector<128xf32>
    %12 = vector.shape_cast %11 : vector<128xf32> to vector<128x1xf32>
    %cst_8 = arith.constant 3.200000e+01 : f32
    %13 = vector.broadcast %cst_8 : f32 to vector<128x1xf32>
    %14 = arith.divf %12, %13 : vector<128x1xf32>
    %15 = vector.broadcast %14 : vector<128x1xf32> to vector<128x32xf32>
    %16 = arith.subf %6, %15 : vector<128x32xf32>
    %17 = arith.mulf %16, %16 : vector<128x32xf32>
    %cst_9 = arith.constant dense<0.000000e+00> : vector<128xf32>
    %18 = vector.multi_reduction <add>, %17, %cst_9 [1] : vector<128x32xf32> to vector<128xf32>
    %19 = vector.shape_cast %18 : vector<128xf32> to vector<128x1xf32>
    %cst_10 = arith.constant 3.200000e+01 : f32
    %20 = vector.broadcast %cst_10 : f32 to vector<128x1xf32>
    %21 = arith.divf %19, %20 : vector<128x1xf32>
    %22 = vector.broadcast %14 : vector<128x1xf32> to vector<128x32xf32>
    %23 = arith.subf %6, %22 : vector<128x32xf32>
    %cst_11 = arith.constant 9.99999974E-6 : f32
    %24 = vector.broadcast %cst_11 : f32 to vector<128x1xf32>
    %25 = arith.addf %21, %24 : vector<128x1xf32>
    %26 = math.rsqrt %25 : vector<128x1xf32>
    %27 = vector.broadcast %26 : vector<128x1xf32> to vector<128x32xf32>
    %28 = arith.mulf %23, %27 : vector<128x32xf32>
    %29 = vector.shape_cast %8 : vector<32xf32> to vector<1x32xf32>
    %30 = vector.broadcast %29 : vector<1x32xf32> to vector<128x32xf32>
    %31 = arith.mulf %28, %30 : vector<128x32xf32>
    %32 = vector.shape_cast %10 : vector<32xf32> to vector<1x32xf32>
    %33 = vector.broadcast %32 : vector<1x32xf32> to vector<128x32xf32>
    %34 = arith.addf %31, %33 : vector<128x32xf32>
    %c0_12 = arith.constant 0 : index
    %c0_13 = arith.constant 0 : index
    %35 = vector.load %arg3[%c0_12, %c0_13] : memref<32x96xf32, #tpu.memory_space<vmem>>, vector<32x96xf32>
    %cst_14 = arith.constant dense<0.000000e+00> : vector<128x96xf32>
    %36 = tpu.matmul %34, %35, %cst_14 {dimension_numbers = #tpu.dot_dimension_numbers<[1], [0], [0], [1], [0, 0, 1, 1], [], []>} : vector<128x32xf32>, vector<32x96xf32>, vector<128x96xf32> -> vector<128x96xf32>
    %c0_15 = arith.constant 0 : index
    %c0_16 = arith.constant 0 : index
    %37 = vector.load %arg4[%c0_15, %c0_16] : memref<1x96xf32, #tpu.memory_space<vmem>>, vector<1x96xf32>
    %38 = vector.shape_cast %37 : vector<1x96xf32> to vector<96xf32>
    %39 = vector.shape_cast %38 : vector<96xf32> to vector<1x96xf32>
    %40 = vector.broadcast %39 : vector<1x96xf32> to vector<128x96xf32>
    %41 = arith.addf %36, %40 : vector<128x96xf32>
    %42 = vector.extract_strided_slice %41 {offsets = [0, 0], sizes = [128, 32], strides = [1, 1]} : vector<128x96xf32> to vector<128x32xf32>
    %cst_17 = arith.constant 0.353553385 : f32
    %43 = vector.broadcast %cst_17 : f32 to vector<128x32xf32>
    %44 = arith.mulf %42, %43 : vector<128x32xf32>
    %45 = vector.extract_strided_slice %41 {offsets = [0, 32], sizes = [128, 32], strides = [1, 1]} : vector<128x96xf32> to vector<128x32xf32>
    %46 = vector.extract_strided_slice %41 {offsets = [0, 64], sizes = [128, 32], strides = [1, 1]} : vector<128x96xf32> to vector<128x32xf32>
    %c0_18 = arith.constant 0 : index
    %c0_19 = arith.constant 0 : index
    %47 = vector.load %arg5[%c0_18, %c0_19] : memref<32x32xf32, #tpu.memory_space<vmem>>, vector<32x32xf32>
    %48 = vector.extract_strided_slice %44 {offsets = [0, 0], sizes = [64, 8], strides = [1, 1]} : vector<128x32xf32> to vector<64x8xf32>
    %49 = vector.extract_strided_slice %45 {offsets = [0, 0], sizes = [64, 8], strides = [1, 1]} : vector<128x32xf32> to vector<64x8xf32>
    %50 = vector.extract_strided_slice %46 {offsets = [0, 0], sizes = [64, 8], strides = [1, 1]} : vector<128x32xf32> to vector<64x8xf32>
    %cst_20 = arith.constant dense<0.000000e+00> : vector<64x64xf32>
    %51 = tpu.matmul %48, %49, %cst_20 {dimension_numbers = #tpu.dot_dimension_numbers<[1], [1], [0], [0], [0, 0, 1, 0], [], []>} : vector<64x8xf32>, vector<64x8xf32>, vector<64x64xf32> -> vector<64x64xf32>
    %cst_21 = arith.constant dense<0xFF800000> : vector<64xf32>
    %52 = vector.multi_reduction <maximumf>, %51, %cst_21 [1] : vector<64x64xf32> to vector<64xf32>
    %53 = vector.shape_cast %52 : vector<64xf32> to vector<64x1xf32>
    %54 = vector.broadcast %53 : vector<64x1xf32> to vector<64x64xf32>
    %55 = arith.subf %51, %54 : vector<64x64xf32>
    %56 = math.exp %55 : vector<64x64xf32>
    %cst_22 = arith.constant dense<0.000000e+00> : vector<64xf32>
    %57 = vector.multi_reduction <add>, %56, %cst_22 [1] : vector<64x64xf32> to vector<64xf32>
    %58 = vector.shape_cast %57 : vector<64xf32> to vector<64x1xf32>
    %59 = vector.broadcast %58 : vector<64x1xf32> to vector<64x64xf32>
    %60 = arith.divf %56, %59 : vector<64x64xf32>
    %cst_23 = arith.constant dense<0.000000e+00> : vector<64x8xf32>
    %61 = tpu.matmul %60, %50, %cst_23 {dimension_numbers = #tpu.dot_dimension_numbers<[1], [0], [0], [1], [0, 0, 1, 1], [], []>} : vector<64x64xf32>, vector<64x8xf32>, vector<64x8xf32> -> vector<64x8xf32>
    %62 = vector.extract_strided_slice %47 {offsets = [0, 0], sizes = [8, 32], strides = [1, 1]} : vector<32x32xf32> to vector<8x32xf32>
    %cst_24 = arith.constant dense<0.000000e+00> : vector<64x32xf32>
    %63 = tpu.matmul %61, %62, %cst_24 {dimension_numbers = #tpu.dot_dimension_numbers<[1], [0], [0], [1], [0, 0, 1, 1], [], []>} : vector<64x8xf32>, vector<8x32xf32>, vector<64x32xf32> -> vector<64x32xf32>
    %64 = vector.extract_strided_slice %44 {offsets = [0, 8], sizes = [64, 8], strides = [1, 1]} : vector<128x32xf32> to vector<64x8xf32>
    %65 = vector.extract_strided_slice %45 {offsets = [0, 8], sizes = [64, 8], strides = [1, 1]} : vector<128x32xf32> to vector<64x8xf32>
    %66 = vector.extract_strided_slice %46 {offsets = [0, 8], sizes = [64, 8], strides = [1, 1]} : vector<128x32xf32> to vector<64x8xf32>
    %cst_25 = arith.constant dense<0.000000e+00> : vector<64x64xf32>
    %67 = tpu.matmul %64, %65, %cst_25 {dimension_numbers = #tpu.dot_dimension_numbers<[1], [1], [0], [0], [0, 0, 1, 0], [], []>} : vector<64x8xf32>, vector<64x8xf32>, vector<64x64xf32> -> vector<64x64xf32>
    %cst_26 = arith.constant dense<0xFF800000> : vector<64xf32>
    %68 = vector.multi_reduction <maximumf>, %67, %cst_26 [1] : vector<64x64xf32> to vector<64xf32>
    %69 = vector.shape_cast %68 : vector<64xf32> to vector<64x1xf32>
    %70 = vector.broadcast %69 : vector<64x1xf32> to vector<64x64xf32>
    %71 = arith.subf %67, %70 : vector<64x64xf32>
    %72 = math.exp %71 : vector<64x64xf32>
    %cst_27 = arith.constant dense<0.000000e+00> : vector<64xf32>
    %73 = vector.multi_reduction <add>, %72, %cst_27 [1] : vector<64x64xf32> to vector<64xf32>
    %74 = vector.shape_cast %73 : vector<64xf32> to vector<64x1xf32>
    %75 = vector.broadcast %74 : vector<64x1xf32> to vector<64x64xf32>
    %76 = arith.divf %72, %75 : vector<64x64xf32>
    %cst_28 = arith.constant dense<0.000000e+00> : vector<64x8xf32>
    %77 = tpu.matmul %76, %66, %cst_28 {dimension_numbers = #tpu.dot_dimension_numbers<[1], [0], [0], [1], [0, 0, 1, 1], [], []>} : vector<64x64xf32>, vector<64x8xf32>, vector<64x8xf32> -> vector<64x8xf32>
    %78 = vector.extract_strided_slice %47 {offsets = [8, 0], sizes = [8, 32], strides = [1, 1]} : vector<32x32xf32> to vector<8x32xf32>
    %cst_29 = arith.constant dense<0.000000e+00> : vector<64x32xf32>
    %79 = tpu.matmul %77, %78, %cst_29 {dimension_numbers = #tpu.dot_dimension_numbers<[1], [0], [0], [1], [0, 0, 1, 1], [], []>} : vector<64x8xf32>, vector<8x32xf32>, vector<64x32xf32> -> vector<64x32xf32>
    %80 = arith.addf %63, %79 : vector<64x32xf32>
    %81 = vector.extract_strided_slice %44 {offsets = [0, 16], sizes = [64, 8], strides = [1, 1]} : vector<128x32xf32> to vector<64x8xf32>
    %82 = vector.extract_strided_slice %45 {offsets = [0, 16], sizes = [64, 8], strides = [1, 1]} : vector<128x32xf32> to vector<64x8xf32>
    %83 = vector.extract_strided_slice %46 {offsets = [0, 16], sizes = [64, 8], strides = [1, 1]} : vector<128x32xf32> to vector<64x8xf32>
    %cst_30 = arith.constant dense<0.000000e+00> : vector<64x64xf32>
    %84 = tpu.matmul %81, %82, %cst_30 {dimension_numbers = #tpu.dot_dimension_numbers<[1], [1], [0], [0], [0, 0, 1, 0], [], []>} : vector<64x8xf32>, vector<64x8xf32>, vector<64x64xf32> -> vector<64x64xf32>
    %cst_31 = arith.constant dense<0xFF800000> : vector<64xf32>
    %85 = vector.multi_reduction <maximumf>, %84, %cst_31 [1] : vector<64x64xf32> to vector<64xf32>
    %86 = vector.shape_cast %85 : vector<64xf32> to vector<64x1xf32>
    %87 = vector.broadcast %86 : vector<64x1xf32> to vector<64x64xf32>
    %88 = arith.subf %84, %87 : vector<64x64xf32>
    %89 = math.exp %88 : vector<64x64xf32>
    %cst_32 = arith.constant dense<0.000000e+00> : vector<64xf32>
    %90 = vector.multi_reduction <add>, %89, %cst_32 [1] : vector<64x64xf32> to vector<64xf32>
    %91 = vector.shape_cast %90 : vector<64xf32> to vector<64x1xf32>
    %92 = vector.broadcast %91 : vector<64x1xf32> to vector<64x64xf32>
    %93 = arith.divf %89, %92 : vector<64x64xf32>
    %cst_33 = arith.constant dense<0.000000e+00> : vector<64x8xf32>
    %94 = tpu.matmul %93, %83, %cst_33 {dimension_numbers = #tpu.dot_dimension_numbers<[1], [0], [0], [1], [0, 0, 1, 1], [], []>} : vector<64x64xf32>, vector<64x8xf32>, vector<64x8xf32> -> vector<64x8xf32>
    %95 = vector.extract_strided_slice %47 {offsets = [16, 0], sizes = [8, 32], strides = [1, 1]} : vector<32x32xf32> to vector<8x32xf32>
    %cst_34 = arith.constant dense<0.000000e+00> : vector<64x32xf32>
    %96 = tpu.matmul %94, %95, %cst_34 {dimension_numbers = #tpu.dot_dimension_numbers<[1], [0], [0], [1], [0, 0, 1, 1], [], []>} : vector<64x8xf32>, vector<8x32xf32>, vector<64x32xf32> -> vector<64x32xf32>
    %97 = arith.addf %80, %96 : vector<64x32xf32>
    %98 = vector.extract_strided_slice %44 {offsets = [0, 24], sizes = [64, 8], strides = [1, 1]} : vector<128x32xf32> to vector<64x8xf32>
    %99 = vector.extract_strided_slice %45 {offsets = [0, 24], sizes = [64, 8], strides = [1, 1]} : vector<128x32xf32> to vector<64x8xf32>
    %100 = vector.extract_strided_slice %46 {offsets = [0, 24], sizes = [64, 8], strides = [1, 1]} : vector<128x32xf32> to vector<64x8xf32>
    %cst_35 = arith.constant dense<0.000000e+00> : vector<64x64xf32>
    %101 = tpu.matmul %98, %99, %cst_35 {dimension_numbers = #tpu.dot_dimension_numbers<[1], [1], [0], [0], [0, 0, 1, 0], [], []>} : vector<64x8xf32>, vector<64x8xf32>, vector<64x64xf32> -> vector<64x64xf32>
    %cst_36 = arith.constant dense<0xFF800000> : vector<64xf32>
    %102 = vector.multi_reduction <maximumf>, %101, %cst_36 [1] : vector<64x64xf32> to vector<64xf32>
    %103 = vector.shape_cast %102 : vector<64xf32> to vector<64x1xf32>
    %104 = vector.broadcast %103 : vector<64x1xf32> to vector<64x64xf32>
    %105 = arith.subf %101, %104 : vector<64x64xf32>
    %106 = math.exp %105 : vector<64x64xf32>
    %cst_37 = arith.constant dense<0.000000e+00> : vector<64xf32>
    %107 = vector.multi_reduction <add>, %106, %cst_37 [1] : vector<64x64xf32> to vector<64xf32>
    %108 = vector.shape_cast %107 : vector<64xf32> to vector<64x1xf32>
    %109 = vector.broadcast %108 : vector<64x1xf32> to vector<64x64xf32>
    %110 = arith.divf %106, %109 : vector<64x64xf32>
    %cst_38 = arith.constant dense<0.000000e+00> : vector<64x8xf32>
    %111 = tpu.matmul %110, %100, %cst_38 {dimension_numbers = #tpu.dot_dimension_numbers<[1], [0], [0], [1], [0, 0, 1, 1], [], []>} : vector<64x64xf32>, vector<64x8xf32>, vector<64x8xf32> -> vector<64x8xf32>
    %112 = vector.extract_strided_slice %47 {offsets = [24, 0], sizes = [8, 32], strides = [1, 1]} : vector<32x32xf32> to vector<8x32xf32>
    %cst_39 = arith.constant dense<0.000000e+00> : vector<64x32xf32>
    %113 = tpu.matmul %111, %112, %cst_39 {dimension_numbers = #tpu.dot_dimension_numbers<[1], [0], [0], [1], [0, 0, 1, 1], [], []>} : vector<64x8xf32>, vector<8x32xf32>, vector<64x32xf32> -> vector<64x32xf32>
    %114 = arith.addf %97, %113 : vector<64x32xf32>
    %115 = vector.extract_strided_slice %44 {offsets = [64, 0], sizes = [64, 8], strides = [1, 1]} : vector<128x32xf32> to vector<64x8xf32>
    %116 = vector.extract_strided_slice %45 {offsets = [64, 0], sizes = [64, 8], strides = [1, 1]} : vector<128x32xf32> to vector<64x8xf32>
    %117 = vector.extract_strided_slice %46 {offsets = [64, 0], sizes = [64, 8], strides = [1, 1]} : vector<128x32xf32> to vector<64x8xf32>
    %cst_40 = arith.constant dense<0.000000e+00> : vector<64x64xf32>
    %118 = tpu.matmul %115, %116, %cst_40 {dimension_numbers = #tpu.dot_dimension_numbers<[1], [1], [0], [0], [0, 0, 1, 0], [], []>} : vector<64x8xf32>, vector<64x8xf32>, vector<64x64xf32> -> vector<64x64xf32>
    %cst_41 = arith.constant dense<0xFF800000> : vector<64xf32>
    %119 = vector.multi_reduction <maximumf>, %118, %cst_41 [1] : vector<64x64xf32> to vector<64xf32>
    %120 = vector.shape_cast %119 : vector<64xf32> to vector<64x1xf32>
    %121 = vector.broadcast %120 : vector<64x1xf32> to vector<64x64xf32>
    %122 = arith.subf %118, %121 : vector<64x64xf32>
    %123 = math.exp %122 : vector<64x64xf32>
    %cst_42 = arith.constant dense<0.000000e+00> : vector<64xf32>
    %124 = vector.multi_reduction <add>, %123, %cst_42 [1] : vector<64x64xf32> to vector<64xf32>
    %125 = vector.shape_cast %124 : vector<64xf32> to vector<64x1xf32>
    %126 = vector.broadcast %125 : vector<64x1xf32> to vector<64x64xf32>
    %127 = arith.divf %123, %126 : vector<64x64xf32>
    %cst_43 = arith.constant dense<0.000000e+00> : vector<64x8xf32>
    %128 = tpu.matmul %127, %117, %cst_43 {dimension_numbers = #tpu.dot_dimension_numbers<[1], [0], [0], [1], [0, 0, 1, 1], [], []>} : vector<64x64xf32>, vector<64x8xf32>, vector<64x8xf32> -> vector<64x8xf32>
    %129 = vector.extract_strided_slice %47 {offsets = [0, 0], sizes = [8, 32], strides = [1, 1]} : vector<32x32xf32> to vector<8x32xf32>
    %cst_44 = arith.constant dense<0.000000e+00> : vector<64x32xf32>
    %130 = tpu.matmul %128, %129, %cst_44 {dimension_numbers = #tpu.dot_dimension_numbers<[1], [0], [0], [1], [0, 0, 1, 1], [], []>} : vector<64x8xf32>, vector<8x32xf32>, vector<64x32xf32> -> vector<64x32xf32>
    %131 = vector.extract_strided_slice %44 {offsets = [64, 8], sizes = [64, 8], strides = [1, 1]} : vector<128x32xf32> to vector<64x8xf32>
    %132 = vector.extract_strided_slice %45 {offsets = [64, 8], sizes = [64, 8], strides = [1, 1]} : vector<128x32xf32> to vector<64x8xf32>
    %133 = vector.extract_strided_slice %46 {offsets = [64, 8], sizes = [64, 8], strides = [1, 1]} : vector<128x32xf32> to vector<64x8xf32>
    %cst_45 = arith.constant dense<0.000000e+00> : vector<64x64xf32>
    %134 = tpu.matmul %131, %132, %cst_45 {dimension_numbers = #tpu.dot_dimension_numbers<[1], [1], [0], [0], [0, 0, 1, 0], [], []>} : vector<64x8xf32>, vector<64x8xf32>, vector<64x64xf32> -> vector<64x64xf32>
    %cst_46 = arith.constant dense<0xFF800000> : vector<64xf32>
    %135 = vector.multi_reduction <maximumf>, %134, %cst_46 [1] : vector<64x64xf32> to vector<64xf32>
    %136 = vector.shape_cast %135 : vector<64xf32> to vector<64x1xf32>
    %137 = vector.broadcast %136 : vector<64x1xf32> to vector<64x64xf32>
    %138 = arith.subf %134, %137 : vector<64x64xf32>
    %139 = math.exp %138 : vector<64x64xf32>
    %cst_47 = arith.constant dense<0.000000e+00> : vector<64xf32>
    %140 = vector.multi_reduction <add>, %139, %cst_47 [1] : vector<64x64xf32> to vector<64xf32>
    %141 = vector.shape_cast %140 : vector<64xf32> to vector<64x1xf32>
    %142 = vector.broadcast %141 : vector<64x1xf32> to vector<64x64xf32>
    %143 = arith.divf %139, %142 : vector<64x64xf32>
    %cst_48 = arith.constant dense<0.000000e+00> : vector<64x8xf32>
    %144 = tpu.matmul %143, %133, %cst_48 {dimension_numbers = #tpu.dot_dimension_numbers<[1], [0], [0], [1], [0, 0, 1, 1], [], []>} : vector<64x64xf32>, vector<64x8xf32>, vector<64x8xf32> -> vector<64x8xf32>
    %145 = vector.extract_strided_slice %47 {offsets = [8, 0], sizes = [8, 32], strides = [1, 1]} : vector<32x32xf32> to vector<8x32xf32>
    %cst_49 = arith.constant dense<0.000000e+00> : vector<64x32xf32>
    %146 = tpu.matmul %144, %145, %cst_49 {dimension_numbers = #tpu.dot_dimension_numbers<[1], [0], [0], [1], [0, 0, 1, 1], [], []>} : vector<64x8xf32>, vector<8x32xf32>, vector<64x32xf32> -> vector<64x32xf32>
    %147 = arith.addf %130, %146 : vector<64x32xf32>
    %148 = vector.extract_strided_slice %44 {offsets = [64, 16], sizes = [64, 8], strides = [1, 1]} : vector<128x32xf32> to vector<64x8xf32>
    %149 = vector.extract_strided_slice %45 {offsets = [64, 16], sizes = [64, 8], strides = [1, 1]} : vector<128x32xf32> to vector<64x8xf32>
    %150 = vector.extract_strided_slice %46 {offsets = [64, 16], sizes = [64, 8], strides = [1, 1]} : vector<128x32xf32> to vector<64x8xf32>
    %cst_50 = arith.constant dense<0.000000e+00> : vector<64x64xf32>
    %151 = tpu.matmul %148, %149, %cst_50 {dimension_numbers = #tpu.dot_dimension_numbers<[1], [1], [0], [0], [0, 0, 1, 0], [], []>} : vector<64x8xf32>, vector<64x8xf32>, vector<64x64xf32> -> vector<64x64xf32>
    %cst_51 = arith.constant dense<0xFF800000> : vector<64xf32>
    %152 = vector.multi_reduction <maximumf>, %151, %cst_51 [1] : vector<64x64xf32> to vector<64xf32>
    %153 = vector.shape_cast %152 : vector<64xf32> to vector<64x1xf32>
    %154 = vector.broadcast %153 : vector<64x1xf32> to vector<64x64xf32>
    %155 = arith.subf %151, %154 : vector<64x64xf32>
    %156 = math.exp %155 : vector<64x64xf32>
    %cst_52 = arith.constant dense<0.000000e+00> : vector<64xf32>
    %157 = vector.multi_reduction <add>, %156, %cst_52 [1] : vector<64x64xf32> to vector<64xf32>
    %158 = vector.shape_cast %157 : vector<64xf32> to vector<64x1xf32>
    %159 = vector.broadcast %158 : vector<64x1xf32> to vector<64x64xf32>
    %160 = arith.divf %156, %159 : vector<64x64xf32>
    %cst_53 = arith.constant dense<0.000000e+00> : vector<64x8xf32>
    %161 = tpu.matmul %160, %150, %cst_53 {dimension_numbers = #tpu.dot_dimension_numbers<[1], [0], [0], [1], [0, 0, 1, 1], [], []>} : vector<64x64xf32>, vector<64x8xf32>, vector<64x8xf32> -> vector<64x8xf32>
    %162 = vector.extract_strided_slice %47 {offsets = [16, 0], sizes = [8, 32], strides = [1, 1]} : vector<32x32xf32> to vector<8x32xf32>
    %cst_54 = arith.constant dense<0.000000e+00> : vector<64x32xf32>
    %163 = tpu.matmul %161, %162, %cst_54 {dimension_numbers = #tpu.dot_dimension_numbers<[1], [0], [0], [1], [0, 0, 1, 1], [], []>} : vector<64x8xf32>, vector<8x32xf32>, vector<64x32xf32> -> vector<64x32xf32>
    %164 = arith.addf %147, %163 : vector<64x32xf32>
    %165 = vector.extract_strided_slice %44 {offsets = [64, 24], sizes = [64, 8], strides = [1, 1]} : vector<128x32xf32> to vector<64x8xf32>
    %166 = vector.extract_strided_slice %45 {offsets = [64, 24], sizes = [64, 8], strides = [1, 1]} : vector<128x32xf32> to vector<64x8xf32>
    %167 = vector.extract_strided_slice %46 {offsets = [64, 24], sizes = [64, 8], strides = [1, 1]} : vector<128x32xf32> to vector<64x8xf32>
    %cst_55 = arith.constant dense<0.000000e+00> : vector<64x64xf32>
    %168 = tpu.matmul %165, %166, %cst_55 {dimension_numbers = #tpu.dot_dimension_numbers<[1], [1], [0], [0], [0, 0, 1, 0], [], []>} : vector<64x8xf32>, vector<64x8xf32>, vector<64x64xf32> -> vector<64x64xf32>
    %cst_56 = arith.constant dense<0xFF800000> : vector<64xf32>
    %169 = vector.multi_reduction <maximumf>, %168, %cst_56 [1] : vector<64x64xf32> to vector<64xf32>
    %170 = vector.shape_cast %169 : vector<64xf32> to vector<64x1xf32>
    %171 = vector.broadcast %170 : vector<64x1xf32> to vector<64x64xf32>
    %172 = arith.subf %168, %171 : vector<64x64xf32>
    %173 = math.exp %172 : vector<64x64xf32>
    %cst_57 = arith.constant dense<0.000000e+00> : vector<64xf32>
    %174 = vector.multi_reduction <add>, %173, %cst_57 [1] : vector<64x64xf32> to vector<64xf32>
    %175 = vector.shape_cast %174 : vector<64xf32> to vector<64x1xf32>
    %176 = vector.broadcast %175 : vector<64x1xf32> to vector<64x64xf32>
    %177 = arith.divf %173, %176 : vector<64x64xf32>
    %cst_58 = arith.constant dense<0.000000e+00> : vector<64x8xf32>
    %178 = tpu.matmul %177, %167, %cst_58 {dimension_numbers = #tpu.dot_dimension_numbers<[1], [0], [0], [1], [0, 0, 1, 1], [], []>} : vector<64x64xf32>, vector<64x8xf32>, vector<64x8xf32> -> vector<64x8xf32>
    %179 = vector.extract_strided_slice %47 {offsets = [24, 0], sizes = [8, 32], strides = [1, 1]} : vector<32x32xf32> to vector<8x32xf32>
    %cst_59 = arith.constant dense<0.000000e+00> : vector<64x32xf32>
    %180 = tpu.matmul %178, %179, %cst_59 {dimension_numbers = #tpu.dot_dimension_numbers<[1], [0], [0], [1], [0, 0, 1, 1], [], []>} : vector<64x8xf32>, vector<8x32xf32>, vector<64x32xf32> -> vector<64x32xf32>
    %181 = arith.addf %164, %180 : vector<64x32xf32>
    %182 = tpu.concatenate %114, %181 in 0 : vector<64x32xf32>, vector<64x32xf32> -> vector<128x32xf32>
    %c0_60 = arith.constant 0 : index
    %c0_61 = arith.constant 0 : index
    %183 = vector.load %arg6[%c0_60, %c0_61] : memref<1x32xf32, #tpu.memory_space<vmem>>, vector<1x32xf32>
    %184 = vector.shape_cast %183 : vector<1x32xf32> to vector<32xf32>
    %185 = vector.shape_cast %184 : vector<32xf32> to vector<1x32xf32>
    %186 = vector.broadcast %185 : vector<1x32xf32> to vector<128x32xf32>
    %187 = arith.addf %182, %186 : vector<128x32xf32>
    %188 = arith.addf %187, %6 : vector<128x32xf32>
    %c0_62 = arith.constant 0 : index
    %c0_63 = arith.constant 0 : index
    %189 = vector.load %arg7[%c0_62, %c0_63] : memref<1x32xf32, #tpu.memory_space<vmem>>, vector<1x32xf32>
    %190 = vector.shape_cast %189 : vector<1x32xf32> to vector<32xf32>
    %c0_64 = arith.constant 0 : index
    %c0_65 = arith.constant 0 : index
    %191 = vector.load %arg8[%c0_64, %c0_65] : memref<1x32xf32, #tpu.memory_space<vmem>>, vector<1x32xf32>
    %192 = vector.shape_cast %191 : vector<1x32xf32> to vector<32xf32>
    %cst_66 = arith.constant dense<0.000000e+00> : vector<128xf32>
    %193 = vector.multi_reduction <add>, %188, %cst_66 [1] : vector<128x32xf32> to vector<128xf32>
    %194 = vector.shape_cast %193 : vector<128xf32> to vector<128x1xf32>
    %cst_67 = arith.constant 3.200000e+01 : f32
    %195 = vector.broadcast %cst_67 : f32 to vector<128x1xf32>
    %196 = arith.divf %194, %195 : vector<128x1xf32>
    %197 = vector.broadcast %196 : vector<128x1xf32> to vector<128x32xf32>
    %198 = arith.subf %188, %197 : vector<128x32xf32>
    %199 = arith.mulf %198, %198 : vector<128x32xf32>
    %cst_68 = arith.constant dense<0.000000e+00> : vector<128xf32>
    %200 = vector.multi_reduction <add>, %199, %cst_68 [1] : vector<128x32xf32> to vector<128xf32>
    %201 = vector.shape_cast %200 : vector<128xf32> to vector<128x1xf32>
    %cst_69 = arith.constant 3.200000e+01 : f32
    %202 = vector.broadcast %cst_69 : f32 to vector<128x1xf32>
    %203 = arith.divf %201, %202 : vector<128x1xf32>
    %204 = vector.broadcast %196 : vector<128x1xf32> to vector<128x32xf32>
    %205 = arith.subf %188, %204 : vector<128x32xf32>
    %cst_70 = arith.constant 9.99999974E-6 : f32
    %206 = vector.broadcast %cst_70 : f32 to vector<128x1xf32>
    %207 = arith.addf %203, %206 : vector<128x1xf32>
    %208 = math.rsqrt %207 : vector<128x1xf32>
    %209 = vector.broadcast %208 : vector<128x1xf32> to vector<128x32xf32>
    %210 = arith.mulf %205, %209 : vector<128x32xf32>
    %211 = vector.shape_cast %190 : vector<32xf32> to vector<1x32xf32>
    %212 = vector.broadcast %211 : vector<1x32xf32> to vector<128x32xf32>
    %213 = arith.mulf %210, %212 : vector<128x32xf32>
    %214 = vector.shape_cast %192 : vector<32xf32> to vector<1x32xf32>
    %215 = vector.broadcast %214 : vector<1x32xf32> to vector<128x32xf32>
    %216 = arith.addf %213, %215 : vector<128x32xf32>
    %c0_71 = arith.constant 0 : index
    %c0_72 = arith.constant 0 : index
    %217 = vector.load %arg9[%c0_71, %c0_72] : memref<32x32xf32, #tpu.memory_space<vmem>>, vector<32x32xf32>
    %cst_73 = arith.constant dense<0.000000e+00> : vector<128x32xf32>
    %218 = tpu.matmul %216, %217, %cst_73 {dimension_numbers = #tpu.dot_dimension_numbers<[1], [0], [0], [1], [0, 0, 1, 1], [], []>} : vector<128x32xf32>, vector<32x32xf32>, vector<128x32xf32> -> vector<128x32xf32>
    %c0_74 = arith.constant 0 : index
    %c0_75 = arith.constant 0 : index
    %219 = vector.load %arg10[%c0_74, %c0_75] : memref<1x32xf32, #tpu.memory_space<vmem>>, vector<1x32xf32>
    %220 = vector.shape_cast %219 : vector<1x32xf32> to vector<32xf32>
    %221 = vector.shape_cast %220 : vector<32xf32> to vector<1x32xf32>
    %222 = vector.broadcast %221 : vector<1x32xf32> to vector<128x32xf32>
    %223 = arith.addf %218, %222 : vector<128x32xf32>
    %cst_76 = arith.constant 5.000000e-01 : f32
    %224 = vector.broadcast %cst_76 : f32 to vector<128x32xf32>
    %225 = arith.mulf %224, %223 : vector<128x32xf32>
    %cst_77 = arith.constant 0.707106769 : f32
    %226 = vector.broadcast %cst_77 : f32 to vector<128x32xf32>
    %227 = arith.mulf %223, %226 : vector<128x32xf32>
    %228 = math.erf %227 : vector<128x32xf32>
    %cst_78 = arith.constant 1.000000e+00 : f32
    %229 = vector.broadcast %cst_78 : f32 to vector<128x32xf32>
    %230 = arith.addf %229, %228 : vector<128x32xf32>
    %231 = arith.mulf %225, %230 : vector<128x32xf32>
    %c0_79 = arith.constant 0 : index
    %c0_80 = arith.constant 0 : index
    %232 = vector.load %arg11[%c0_79, %c0_80] : memref<32x32xf32, #tpu.memory_space<vmem>>, vector<32x32xf32>
    %cst_81 = arith.constant dense<0.000000e+00> : vector<128x32xf32>
    %233 = tpu.matmul %231, %232, %cst_81 {dimension_numbers = #tpu.dot_dimension_numbers<[1], [0], [0], [1], [0, 0, 1, 1], [], []>} : vector<128x32xf32>, vector<32x32xf32>, vector<128x32xf32> -> vector<128x32xf32>
    %c0_82 = arith.constant 0 : index
    %c0_83 = arith.constant 0 : index
    %234 = vector.load %arg12[%c0_82, %c0_83] : memref<1x32xf32, #tpu.memory_space<vmem>>, vector<1x32xf32>
    %235 = vector.shape_cast %234 : vector<1x32xf32> to vector<32xf32>
    %236 = vector.shape_cast %235 : vector<32xf32> to vector<1x32xf32>
    %237 = vector.broadcast %236 : vector<1x32xf32> to vector<128x32xf32>
    %238 = arith.addf %233, %237 : vector<128x32xf32>
    %239 = arith.addf %238, %188 : vector<128x32xf32>
    %240 = vector.extract_strided_slice %239 {offsets = [0, 0], sizes = [64, 32], strides = [1, 1]} : vector<128x32xf32> to vector<64x32xf32>
    %241 = tpu.transpose %240, [1, 0] : vector<64x32xf32> -> vector<32x64xf32>
    %c0_84 = arith.constant 0 : index
    %c0_85 = arith.constant 0 : index
    %c0_86 = arith.constant 0 : index
    %242 = vector.load %arg13[%c0_84, %c0_85, %c0_86] : memref<2x32x64xf32, #tpu.memory_space<vmem>>, vector<1x32x64xf32>
    %243 = vector.shape_cast %242 : vector<1x32x64xf32> to vector<32x64xf32>
    %244 = vector.shape_cast %241 : vector<32x64xf32> to vector<1x32x64xf32>
    tpu.vector_store %arg13[%c0_84, %c0_85, %c0_86], %244 {strides = array<i32>} : memref<2x32x64xf32, #tpu.memory_space<vmem>>, vector<1x32x64xf32>,
    %245 = vector.extract_strided_slice %239 {offsets = [64, 0], sizes = [64, 32], strides = [1, 1]} : vector<128x32xf32> to vector<64x32xf32>
    %246 = tpu.transpose %245, [1, 0] : vector<64x32xf32> -> vector<32x64xf32>
    %c1_87 = arith.constant 1 : index
    %c0_88 = arith.constant 0 : index
    %c0_89 = arith.constant 0 : index
    %247 = vector.load %arg13[%c1_87, %c0_88, %c0_89] : memref<2x32x64xf32, #tpu.memory_space<vmem>>, vector<1x32x64xf32>
    %248 = vector.shape_cast %247 : vector<1x32x64xf32> to vector<32x64xf32>
    %249 = vector.shape_cast %246 : vector<32x64xf32> to vector<1x32x64xf32>
    tpu.vector_store %arg13[%c1_87, %c0_88, %c0_89], %249 {strides = array<i32>} : memref<2x32x64xf32, #tpu.memory_space<vmem>>, vector<1x32x64xf32>,
    return
  }
}

</mosaic_0001>

<llo_original>
// kernel: self_attention_forward.1
$region0: #{self_attention_forward.1}
  #allocation0 [shape = 'u32[]', space=smem, size = 0x4, offset = 0x4, fixed_abs, tag = 'smem constant byte address 0x4 - core index']
  #allocation1 [shape = 'u32[144,128]{1,0:T(1,128)}', space=vmem, size = 0x12000, scoped, tag = 'internal scratch']
  %s0 = inlined_call_operand.vmem [shape: f32[2,32,64], index: 0, kind: input, shape index: {}]
  %s1 = inlined_call_operand.vmem [shape: f32[1,32], index: 1, kind: input, shape index: {}]
  %s2 = inlined_call_operand.vmem [shape: f32[1,32], index: 2, kind: input, shape index: {}]
  %s3 = inlined_call_operand.vmem [shape: f32[32,96], index: 3, kind: input, shape index: {}]
  %s4 = inlined_call_operand.vmem [shape: f32[1,96], index: 4, kind: input, shape index: {}]
  %s5 = inlined_call_operand.vmem [shape: f32[32,32], index: 5, kind: input, shape index: {}]
  %s6 = inlined_call_operand.vmem [shape: f32[1,32], index: 6, kind: input, shape index: {}]
  %s7 = inlined_call_operand.vmem [shape: f32[1,32], index: 7, kind: input, shape index: {}]
  %s8 = inlined_call_operand.vmem [shape: f32[1,32], index: 8, kind: input, shape index: {}]
  %s9 = inlined_call_operand.vmem [shape: f32[32,32], index: 9, kind: input, shape index: {}]
  %s10 = inlined_call_operand.vmem [shape: f32[1,32], index: 10, kind: input, shape index: {}]
  %s11 = inlined_call_operand.vmem [shape: f32[32,32], index: 11, kind: input, shape index: {}]
  %s12 = inlined_call_operand.vmem [shape: f32[1,32], index: 12, kind: input, shape index: {}]
  %s13 = inlined_call_operand.vmem [shape: f32[2,32,64], index: 13, kind: output, shape index: {}]
  %s14 = sld [smem:[#allocation0]]
  $region62: #{self_attention_forward.1} parent=0
    _
  %s16 = ssub.s32 1, %s14
  %s17 = scalar_select 0, %s16, %s14
  // Predicated region
  $region2: #{self_attention_forward.1} parent=0 // pred_check
    _
  $region3: #{self_attention_forward.1} parent=0 // pred_check_branch
    %19 = sbr.rel (0) target = $region5
  $region4: #{self_attention_forward.1} parent=0 // pred_region
    _
  $region5: #{self_attention_forward.1} parent=0 // pred_fallthru
    _
  // Predicated region
  $region6: #{self_attention_forward.1} parent=0 // pred_check
    _
  $region7: #{self_attention_forward.1} parent=0 // pred_check_branch
    %21 = sbr.rel (0) target = $region9
  $region8: #{self_attention_forward.1} parent=0 // pred_region
    _
  $region9: #{self_attention_forward.1} parent=0 // pred_fallthru
    _
  // Predicated region
  $region10: #{self_attention_forward.1} parent=0 // pred_check
    _
  $region11: #{self_attention_forward.1} parent=0 // pred_check_branch
    %23 = sbr.rel (0) target = $region13
  $region12: #{self_attention_forward.1} parent=0 // pred_region
    _
  $region13: #{self_attention_forward.1} parent=0 // pred_fallthru
    _
  // Predicated region
  $region14: #{self_attention_forward.1} parent=0 // pred_check
    _
  $region15: #{self_attention_forward.1} parent=0 // pred_check_branch
    %25 = sbr.rel (0) target = $region17
  $region16: #{self_attention_forward.1} parent=0 // pred_region
    _
  $region17: #{self_attention_forward.1} parent=0 // pred_fallthru
    _
  // Predicated region
  $region18: #{self_attention_forward.1} parent=0 // pred_check
    _
  $region19: #{self_attention_forward.1} parent=0 // pred_check_branch
    %27 = sbr.rel (0) target = $region21
  $region20: #{self_attention_forward.1} parent=0 // pred_region
    _
  $region21: #{self_attention_forward.1} parent=0 // pred_fallthru
    _
  // Predicated region
  $region22: #{self_attention_forward.1} parent=0 // pred_check
    _
  $region23: #{self_attention_forward.1} parent=0 // pred_check_branch
    %29 = sbr.rel (0) target = $region25
  $region24: #{self_attention_forward.1} parent=0 // pred_region
    _
  $region25: #{self_attention_forward.1} parent=0 // pred_fallthru
    _
  // Predicated region
  $region26: #{self_attention_forward.1} parent=0 // pred_check
    _
  $region27: #{self_attention_forward.1} parent=0 // pred_check_branch
    %31 = sbr.rel (0) target = $region29
  $region28: #{self_attention_forward.1} parent=0 // pred_region
    _
  $region29: #{self_attention_forward.1} parent=0 // pred_fallthru
    _
  // Predicated region
  $region30: #{self_attention_forward.1} parent=0 // pred_check
    _
  $region31: #{self_attention_forward.1} parent=0 // pred_check_branch
    %33 = sbr.rel (0) target = $region33
  $region32: #{self_attention_forward.1} parent=0 // pred_region
    _
  $region33: #{self_attention_forward.1} parent=0 // pred_fallthru
    _
  // Predicated region
  $region34: #{self_attention_forward.1} parent=0 // pred_check
    _
  $region35: #{self_attention_forward.1} parent=0 // pred_check_branch
    %35 = sbr.rel (0) target = $region37
  $region36: #{self_attention_forward.1} parent=0 // pred_region
    _
  $region37: #{self_attention_forward.1} parent=0 // pred_fallthru
    _
  // Predicated region
  $region38: #{self_attention_forward.1} parent=0 // pred_check
    _
  $region39: #{self_attention_forward.1} parent=0 // pred_check_branch
    %37 = sbr.rel (0) target = $region41
  $region40: #{self_attention_forward.1} parent=0 // pred_region
    _
  $region41: #{self_attention_forward.1} parent=0 // pred_fallthru
    _
  // Predicated region
  $region42: #{self_attention_forward.1} parent=0 // pred_check
    _
  $region43: #{self_attention_forward.1} parent=0 // pred_check_branch
    %39 = sbr.rel (0) target = $region45
  $region44: #{self_attention_forward.1} parent=0 // pred_region
    _
  $region45: #{self_attention_forward.1} parent=0 // pred_fallthru
    _
  // Predicated region
  $region46: #{self_attention_forward.1} parent=0 // pred_check
    _
  $region47: #{self_attention_forward.1} parent=0 // pred_check_branch
    %41 = sbr.rel (0) target = $region49
  $region48: #{self_attention_forward.1} parent=0 // pred_region
    _
  $region49: #{self_attention_forward.1} parent=0 // pred_fallthru
    _
  // Predicated region
  $region50: #{self_attention_forward.1} parent=0 // pred_check
    _
  $region51: #{self_attention_forward.1} parent=0 // pred_check_branch
    %43 = sbr.rel (0) target = $region53
  $region52: #{self_attention_forward.1} parent=0 // pred_region
    _
  $region53: #{self_attention_forward.1} parent=0 // pred_fallthru
    _
  %v44 = vld [vmem:[%s0] sm:$0xff]
  %v45 = vld [vmem:[%s0 + $0x8] sm:$0xff]
  %v46 = vld [vmem:[%s0 + $0x10] sm:$0xff]
  %v47 = vld [vmem:[%s0 + $0x18] sm:$0xff]
  %48 = vxpose.xlu0.b32.start [1/16] %v44, 128
  %49 = vxpose.xlu0.b32.cont [2/16] %v45, 128
  %50 = vxpose.xlu0.b32.cont [3/16] %v46, 128
  %51 = vxpose.xlu0.b32.cont [4/16] %v47, 128
  %52 = vxpose.xlu0.b32.cont [5/16] 0.0, 128
  %53 = vxpose.xlu0.b32.cont [6/16] 0.0, 128
  %54 = vxpose.xlu0.b32.cont [7/16] 0.0, 128
  %55 = vxpose.xlu0.b32.cont [8/16] 0.0, 128
  %56 = vxpose.xlu0.b32.cont [9/16] 0.0, 128
  %57 = vxpose.xlu0.b32.cont [10/16] 0.0, 128
  %58 = vxpose.xlu0.b32.cont [11/16] 0.0, 128
  %59 = vxpose.xlu0.b32.cont [12/16] 0.0, 128
  %60 = vxpose.xlu0.b32.cont [13/16] 0.0, 128
  %61 = vxpose.xlu0.b32.cont [14/16] 0.0, 128
  %62 = vxpose.xlu0.b32.cont [15/16] 0.0, 128
  %63 = vxpose.xlu0.b32.end [16/16] 0.0, 128
  %v64 = vpop.trf.xlu0
  %v65 = vpop.trf.xlu0
  %v66 = vpop.trf.xlu0
  %v67 = vpop.trf.xlu0
  %v68 = vpop.trf.xlu0
  %v69 = vpop.trf.xlu0
  %v70 = vpop.trf.xlu0
  %v71 = vpop.trf.xlu0
  %v72 = vpop.trf.xlu0
  %v73 = vpop.trf.xlu0
  %v74 = vpop.trf.xlu0
  %v75 = vpop.trf.xlu0
  %v76 = vpop.trf.xlu0
  %v77 = vpop.trf.xlu0
  %v78 = vpop.trf.xlu0
  %v79 = vpop.trf.xlu0
  %s80 = scalar_lea.vmem %s0, 32
  %v81 = vld [vmem:[%s80] sm:$0xff]
  %v82 = vld [vmem:[%s80 + $0x8] sm:$0xff]
  %v83 = vld [vmem:[%s80 + $0x10] sm:$0xff]
  %v84 = vld [vmem:[%s80 + $0x18] sm:$0xff]
  %85 = vxpose.xlu0.b32.start [1/16] %v81, 128
  %86 = vxpose.xlu0.b32.cont [2/16] %v82, 128
  %87 = vxpose.xlu0.b32.cont [3/16] %v83, 128
  %88 = vxpose.xlu0.b32.cont [4/16] %v84, 128
  %89 = vxpose.xlu0.b32.cont [5/16] 0.0, 128
  %90 = vxpose.xlu0.b32.cont [6/16] 0.0, 128
  %91 = vxpose.xlu0.b32.cont [7/16] 0.0, 128
  %92 = vxpose.xlu0.b32.cont [8/16] 0.0, 128
  %93 = vxpose.xlu0.b32.cont [9/16] 0.0, 128
  %94 = vxpose.xlu0.b32.cont [10/16] 0.0, 128
  %95 = vxpose.xlu0.b32.cont [11/16] 0.0, 128
  %96 = vxpose.xlu0.b32.cont [12/16] 0.0, 128
  %97 = vxpose.xlu0.b32.cont [13/16] 0.0, 128
  %98 = vxpose.xlu0.b32.cont [14/16] 0.0, 128
  %99 = vxpose.xlu0.b32.cont [15/16] 0.0, 128
  %100 = vxpose.xlu0.b32.end [16/16] 0.0, 128
  %v101 = vpop.trf.xlu0
  %v102 = vpop.trf.xlu0
  %v103 = vpop.trf.xlu0
  %v104 = vpop.trf.xlu0
  %v105 = vpop.trf.xlu0
  %v106 = vpop.trf.xlu0
  %v107 = vpop.trf.xlu0
  %v108 = vpop.trf.xlu0
  %v109 = vpop.trf.xlu0
  %v110 = vpop.trf.xlu0
  %v111 = vpop.trf.xlu0
  %v112 = vpop.trf.xlu0
  %v113 = vpop.trf.xlu0
  %v114 = vpop.trf.xlu0
  %v115 = vpop.trf.xlu0
  %v116 = vpop.trf.xlu0
  %v117 = vld [vmem:[%s1] sm:$0x1]
  %v118 = vld [vmem:[%s2] sm:$0x1]
  %vm119 = vcmask 261120
  %v120 = vsel %vm119, %v64, 0.0
  %121 = vadd.xlane.f32.xlu0 %v120
  %v122 = vpop.xlane.xlu0 %121
  %v123 = vsel %vm119, %v65, 0.0
  %124 = vadd.xlane.f32.xlu0 %v123
  %v125 = vpop.xlane.xlu0 %124
  %v126 = vsel %vm119, %v66, 0.0
  %127 = vadd.xlane.f32.xlu0 %v126
  %v128 = vpop.xlane.xlu0 %127
  %v129 = vsel %vm119, %v67, 0.0
  %130 = vadd.xlane.f32.xlu0 %v129
  %v131 = vpop.xlane.xlu0 %130
  %v132 = vsel %vm119, %v68, 0.0
  %133 = vadd.xlane.f32.xlu0 %v132
  %v134 = vpop.xlane.xlu0 %133
  %v135 = vsel %vm119, %v69, 0.0
  %136 = vadd.xlane.f32.xlu0 %v135
  %v137 = vpop.xlane.xlu0 %136
  %v138 = vsel %vm119, %v70, 0.0
  %139 = vadd.xlane.f32.xlu0 %v138
  %v140 = vpop.xlane.xlu0 %139
  %v141 = vsel %vm119, %v71, 0.0
  %142 = vadd.xlane.f32.xlu0 %v141
  %v143 = vpop.xlane.xlu0 %142
  %v144 = vsel %vm119, %v101, 0.0
  %145 = vadd.xlane.f32.xlu0 %v144
  %v146 = vpop.xlane.xlu0 %145
  %v147 = vsel %vm119, %v102, 0.0
  %148 = vadd.xlane.f32.xlu0 %v147
  %v149 = vpop.xlane.xlu0 %148
  %v150 = vsel %vm119, %v103, 0.0
  %151 = vadd.xlane.f32.xlu0 %v150
  %v152 = vpop.xlane.xlu0 %151
  %v153 = vsel %vm119, %v104, 0.0
  %154 = vadd.xlane.f32.xlu0 %v153
  %v155 = vpop.xlane.xlu0 %154
  %v156 = vsel %vm119, %v105, 0.0
  %157 = vadd.xlane.f32.xlu0 %v156
  %v158 = vpop.xlane.xlu0 %157
  %v159 = vsel %vm119, %v106, 0.0
  %160 = vadd.xlane.f32.xlu0 %v159
  %v161 = vpop.xlane.xlu0 %160
  %v162 = vsel %vm119, %v107, 0.0
  %163 = vadd.xlane.f32.xlu0 %v162
  %v164 = vpop.xlane.xlu0 %163
  %v165 = vsel %vm119, %v108, 0.0
  %166 = vadd.xlane.f32.xlu0 %v165
  %v167 = vpop.xlane.xlu0 %166
  %v168 = vrcp.pop 32.0
  %v169 = vmul.f32 %v122, %v168
  %v170 = vmul.f32 %v125, %v168
  %v171 = vmul.f32 %v128, %v168
  %v172 = vmul.f32 %v131, %v168
  %v173 = vmul.f32 %v134, %v168
  %v174 = vmul.f32 %v137, %v168
  %v175 = vmul.f32 %v140, %v168
  %v176 = vmul.f32 %v143, %v168
  %v177 = vmul.f32 %v146, %v168
  %v178 = vmul.f32 %v149, %v168
  %v179 = vmul.f32 %v152, %v168
  %v180 = vmul.f32 %v155, %v168
  %v181 = vmul.f32 %v158, %v168
  %v182 = vmul.f32 %v161, %v168
  %v183 = vmul.f32 %v164, %v168
  %v184 = vmul.f32 %v167, %v168
  %v185 = vsub.f32 %v64, %v169
  %v186 = vsub.f32 %v65, %v170
  %v187 = vsub.f32 %v66, %v171
  %v188 = vsub.f32 %v67, %v172
  %v189 = vsub.f32 %v68, %v173
  %v190 = vsub.f32 %v69, %v174
  %v191 = vsub.f32 %v70, %v175
  %v192 = vsub.f32 %v71, %v176
  %v193 = vsub.f32 %v101, %v177
  %v194 = vsub.f32 %v102, %v178
  %v195 = vsub.f32 %v103, %v179
  %v196 = vsub.f32 %v104, %v180
  %v197 = vsub.f32 %v105, %v181
  %v198 = vsub.f32 %v106, %v182
  %v199 = vsub.f32 %v107, %v183
  %v200 = vsub.f32 %v108, %v184
  %v201 = vmul.f32 %v185, %v185
  %v202 = vmul.f32 %v186, %v186
  %v203 = vmul.f32 %v187, %v187
  %v204 = vmul.f32 %v188, %v188
  %v205 = vmul.f32 %v189, %v189
  %v206 = vmul.f32 %v190, %v190
  %v207 = vmul.f32 %v191, %v191
  %v208 = vmul.f32 %v192, %v192
  %v209 = vmul.f32 %v193, %v193
  %v210 = vmul.f32 %v194, %v194
  %v211 = vmul.f32 %v195, %v195
  %v212 = vmul.f32 %v196, %v196
  %v213 = vmul.f32 %v197, %v197
  %v214 = vmul.f32 %v198, %v198
  %v215 = vmul.f32 %v199, %v199
  %v216 = vmul.f32 %v200, %v200
  %v217 = vsel %vm119, %v201, 0.0
  %218 = vadd.xlane.f32.xlu0 %v217
  %v219 = vpop.xlane.xlu0 %218
  %v220 = vsel %vm119, %v202, 0.0
  %221 = vadd.xlane.f32.xlu0 %v220
  %v222 = vpop.xlane.xlu0 %221
  %v223 = vsel %vm119, %v203, 0.0
  %224 = vadd.xlane.f32.xlu0 %v223
  %v225 = vpop.xlane.xlu0 %224
  %v226 = vsel %vm119, %v204, 0.0
  %227 = vadd.xlane.f32.xlu0 %v226
  %v228 = vpop.xlane.xlu0 %227
  %v229 = vsel %vm119, %v205, 0.0
  %230 = vadd.xlane.f32.xlu0 %v229
  %v231 = vpop.xlane.xlu0 %230
  %v232 = vsel %vm119, %v206, 0.0
  %233 = vadd.xlane.f32.xlu0 %v232
  %v234 = vpop.xlane.xlu0 %233
  %v235 = vsel %vm119, %v207, 0.0
  %236 = vadd.xlane.f32.xlu0 %v235
  %v237 = vpop.xlane.xlu0 %236
  %v238 = vsel %vm119, %v208, 0.0
  %239 = vadd.xlane.f32.xlu0 %v238
  %v240 = vpop.xlane.xlu0 %239
  %v241 = vsel %vm119, %v209, 0.0
  %242 = vadd.xlane.f32.xlu0 %v241
  %v243 = vpop.xlane.xlu0 %242
  %v244 = vsel %vm119, %v210, 0.0
  %245 = vadd.xlane.f32.xlu0 %v244
  %v246 = vpop.xlane.xlu0 %245
  %v247 = vsel %vm119, %v211, 0.0
  %248 = vadd.xlane.f32.xlu0 %v247
  %v249 = vpop.xlane.xlu0 %248
  %v250 = vsel %vm119, %v212, 0.0
  %251 = vadd.xlane.f32.xlu0 %v250
  %v252 = vpop.xlane.xlu0 %251
  %v253 = vsel %vm119, %v213, 0.0
  %254 = vadd.xlane.f32.xlu0 %v253
  %v255 = vpop.xlane.xlu0 %254
  %v256 = vsel %vm119, %v214, 0.0
  %257 = vadd.xlane.f32.xlu0 %v256
  %v258 = vpop.xlane.xlu0 %257
  %v259 = vsel %vm119, %v215, 0.0
  %260 = vadd.xlane.f32.xlu0 %v259
  %v261 = vpop.xlane.xlu0 %260
  %v262 = vsel %vm119, %v216, 0.0
  %263 = vadd.xlane.f32.xlu0 %v262
  %v264 = vpop.xlane.xlu0 %263
  %v265 = vmul.f32 %v219, %v168
  %v266 = vmul.f32 %v222, %v168
  %v267 = vmul.f32 %v225, %v168
  %v268 = vmul.f32 %v228, %v168
  %v269 = vmul.f32 %v231, %v168
  %v270 = vmul.f32 %v234, %v168
  %v271 = vmul.f32 %v237, %v168
  %v272 = vmul.f32 %v240, %v168
  %v273 = vmul.f32 %v243, %v168
  %v274 = vmul.f32 %v246, %v168
  %v275 = vmul.f32 %v249, %v168
  %v276 = vmul.f32 %v252, %v168
  %v277 = vmul.f32 %v255, %v168
  %v278 = vmul.f32 %v258, %v168
  %v279 = vmul.f32 %v261, %v168
  %v280 = vmul.f32 %v264, %v168
  %v281 = vadd.f32 %v265, 1e-05
  %v282 = vadd.f32 %v266, 1e-05
  %v283 = vadd.f32 %v267, 1e-05
  %v284 = vadd.f32 %v268, 1e-05
  %v285 = vadd.f32 %v269, 1e-05
  %v286 = vadd.f32 %v270, 1e-05
  %v287 = vadd.f32 %v271, 1e-05
  %v288 = vadd.f32 %v272, 1e-05
  %v289 = vadd.f32 %v273, 1e-05
  %v290 = vadd.f32 %v274, 1e-05
  %v291 = vadd.f32 %v275, 1e-05
  %v292 = vadd.f32 %v276, 1e-05
  %v293 = vadd.f32 %v277, 1e-05
  %v294 = vadd.f32 %v278, 1e-05
  %v295 = vadd.f32 %v279, 1e-05
  %v296 = vadd.f32 %v280, 1e-05
  %v297 = vrsqrt.pop %v281
  %v298 = vrsqrt.pop %v282
  %v299 = vrsqrt.pop %v283
  %v300 = vrsqrt.pop %v284
  %v301 = vrsqrt.pop %v285
  %v302 = vrsqrt.pop %v286
  %v303 = vrsqrt.pop %v287
  %v304 = vrsqrt.pop %v288
  %v305 = vrsqrt.pop %v289
  %v306 = vrsqrt.pop %v290
  %v307 = vrsqrt.pop %v291
  %v308 = vrsqrt.pop %v292
  %v309 = vrsqrt.pop %v293
  %v310 = vrsqrt.pop %v294
  %v311 = vrsqrt.pop %v295
  %v312 = vrsqrt.pop %v296
  %v313 = vmul.f32 %v185, %v297
  %v314 = vmul.f32 %v186, %v298
  %v315 = vmul.f32 %v187, %v299
  %v316 = vmul.f32 %v188, %v300
  %v317 = vmul.f32 %v189, %v301
  %v318 = vmul.f32 %v190, %v302
  %v319 = vmul.f32 %v191, %v303
  %v320 = vmul.f32 %v192, %v304
  %v321 = vmul.f32 %v193, %v305
  %v322 = vmul.f32 %v194, %v306
  %v323 = vmul.f32 %v195, %v307
  %v324 = vmul.f32 %v196, %v308
  %v325 = vmul.f32 %v197, %v309
  %v326 = vmul.f32 %v198, %v310
  %v327 = vmul.f32 %v199, %v311
  %v328 = vmul.f32 %v200, %v312
  %v330 = vlaneseq
  %v331 = vshrl.u32 %v330, 7
  %v332 = vsub.s32 0, %v331
  %v333 = vrot.slane %v117, %v332
  %v335 = vmul.f32 %v313, %v333
  %v336 = vmul.f32 %v314, %v333
  %v337 = vmul.f32 %v315, %v333
  %v338 = vmul.f32 %v316, %v333
  %v339 = vmul.f32 %v317, %v333
  %v340 = vmul.f32 %v318, %v333
  %v341 = vmul.f32 %v319, %v333
  %v342 = vmul.f32 %v320, %v333
  %v343 = vmul.f32 %v321, %v333
  %v344 = vmul.f32 %v322, %v333
  %v345 = vmul.f32 %v323, %v333
  %v346 = vmul.f32 %v324, %v333
  %v347 = vmul.f32 %v325, %v333
  %v348 = vmul.f32 %v326, %v333
  %v349 = vmul.f32 %v327, %v333
  %v350 = vmul.f32 %v328, %v333
  %v352 = vlaneseq
  %v353 = vshrl.u32 %v352, 7
  %v354 = vsub.s32 0, %v353
  %v355 = vrot.slane %v118, %v354
  %v357 = vadd.f32 %v335, %v355
  %v358 = vadd.f32 %v336, %v355
  %v359 = vadd.f32 %v337, %v355
  %v360 = vadd.f32 %v338, %v355
  %v361 = vadd.f32 %v339, %v355
  %v362 = vadd.f32 %v340, %v355
  %v363 = vadd.f32 %v341, %v355
  %v364 = vadd.f32 %v342, %v355
  %v365 = vadd.f32 %v343, %v355
  %v366 = vadd.f32 %v344, %v355
  %v367 = vadd.f32 %v345, %v355
  %v368 = vadd.f32 %v346, %v355
  %v369 = vadd.f32 %v347, %v355
  %v370 = vadd.f32 %v348, %v355
  %v371 = vadd.f32 %v349, %v355
  %v372 = vadd.f32 %v350, %v355
  %v373 = vld [vmem:[%s3] sm:$0xff]
  %v374 = vld [vmem:[%s3 + $0x8] sm:$0xff]
  %v375 = vld [vmem:[%s3 + $0x10] sm:$0xff]
  %v376 = vld [vmem:[%s3 + $0x18] sm:$0xff]
  %v377 = vld [vmem:[%s4] sm:$0x1]
  %v379 = vlaneseq
  %v380 = vshrl.u32 %v379, 7
  %v381 = vsub.s32 0, %v380
  %v382 = vrot.slane %v377, %v381
  %v385 = vsel %vm119, %v357, 0
  %v388 = vsel %vm119, %v358, 0
  %v391 = vsel %vm119, %v359, 0
  %v394 = vsel %vm119, %v360, 0
  %v397 = vsel %vm119, %v361, 0
  %v400 = vsel %vm119, %v362, 0
  %v403 = vsel %vm119, %v363, 0
  %v406 = vsel %vm119, %v364, 0
  %v409 = vsel %vm119, %v365, 0
  %v412 = vsel %vm119, %v366, 0
  %v415 = vsel %vm119, %v367, 0
  %v418 = vsel %vm119, %v368, 0
  %v421 = vsel %vm119, %v369, 0
  %v424 = vsel %vm119, %v370, 0
  %v427 = vsel %vm119, %v371, 0
  %v430 = vsel %vm119, %v372, 0
  %432 = vmatprep.subr.mxu0 0.0
  %433 = vmatpush1.msra.mxu0 %v373
  %434 = vmatprep.subr.mxu0 0.0
  %435 = vmatpush1.msra.mxu0 %v374
  %436 = vmatprep.subr.mxu0 0.0
  %437 = vmatpush1.msra.mxu0 %v375
  %438 = vmatprep.subr.mxu0 0.0
  %439 = vmatpush1.msra.mxu0 %v376
  %440 = vmatprep.subr.mxu0 0.0
  %441 = vmatpush1.msra.mxu0 0.0
  %442 = vmatprep.subr.mxu0 0.0
  %443 = vmatpush1.msra.mxu0 0.0
  %444 = vmatprep.subr.mxu0 0.0
  %445 = vmatpush1.msra.mxu0 0.0
  %446 = vmatprep.subr.mxu0 0.0
  %447 = vmatpush1.msra.mxu0 0.0
  %448 = vmatprep.subr.mxu0 0.0
  %449 = vmatpush1.msra.mxu0 0.0
  %450 = vmatprep.subr.mxu0 0.0
  %451 = vmatpush1.msra.mxu0 0.0
  %452 = vmatprep.subr.mxu0 0.0
  %453 = vmatpush1.msra.mxu0 0.0
  %454 = vmatprep.subr.mxu0 0.0
  %455 = vmatpush1.msra.mxu0 0.0
  %456 = vmatprep.subr.mxu0 0.0
  %457 = vmatpush1.msra.mxu0 0.0
  %458 = vmatprep.subr.mxu0 0.0
  %459 = vmatpush1.msra.mxu0 0.0
  %460 = vmatprep.subr.mxu0 0.0
  %461 = vmatpush1.msra.mxu0 0.0
  %462 = vmatprep.subr.mxu0 0.0
  %463 = vmatpush1.msra.mxu0 0.0
  %464 = vmatprep.subr.mxu0 0.0
  %465 = vmatpush1.msra.mxu0 0.0
  %466 = vmatprep.subr.mxu0 0.0
  %467 = vmatpush1.msra.mxu0 0.0
  %468 = vmatprep.subr.mxu0 0.0
  %469 = vmatpush1.msra.mxu0 0.0
  %470 = vmatprep.subr.mxu0 0.0
  %471 = vmatpush1.msra.mxu0 0.0
  %472 = vmatprep.subr.mxu0 0.0
  %473 = vmatpush1.msra.mxu0 0.0
  %474 = vmatprep.subr.mxu0 0.0
  %475 = vmatpush1.msra.mxu0 0.0
  %476 = vmatprep.subr.mxu0 0.0
  %477 = vmatpush1.msra.mxu0 0.0
  %478 = vmatprep.subr.mxu0 0.0
  %479 = vmatpush1.msra.mxu0 0.0
  %480 = vmatprep.subr.mxu0 0.0
  %481 = vmatpush1.msra.mxu0 0.0
  %482 = vmatprep.subr.mxu0 0.0
  %483 = vmatpush1.msra.mxu0 0.0
  %484 = vmatprep.subr.mxu0 0.0
  %485 = vmatpush1.msra.mxu0 0.0
  %486 = vmatprep.subr.mxu0 0.0
  %487 = vmatpush1.msra.mxu0 0.0
  %488 = vmatprep.subr.mxu0 0.0
  %489 = vmatpush1.msra.mxu0 0.0
  %490 = vmatprep.subr.mxu0 0.0
  %491 = vmatpush1.msra.mxu0 0.0
  %492 = vmatprep.subr.mxu0 0.0
  %493 = vmatpush1.msra.mxu0 0.0
  %494 = vmatprep.subr.mxu0 0.0
  %495 = vmatpush1.msra.mxu0 0.0
  %496 = vmatprep.mubr.f32.mxu0 0.0
  %497 = vmatmul.mubr.f32.gmra.mrb[0].mxu0 %v385
  %v498 = vpop.f32.mrb[0].mxu0
  %v499 = vadd.f32 %v382, %v498
  %v500 = vpop.f32.mrb[0].mxu0
  %501 = vmatprep.mubr.f32.mxu0 0.0
  %502 = vmatmul.mubr.f32.gmra.mrb[0].mxu0 %v388
  %v503 = vpop.f32.mrb[0].mxu0
  %v504 = vadd.f32 %v382, %v503
  %v505 = vpop.f32.mrb[0].mxu0
  %506 = vmatprep.mubr.f32.mxu0 0.0
  %507 = vmatmul.mubr.f32.gmra.mrb[0].mxu0 %v391
  %v508 = vpop.f32.mrb[0].mxu0
  %v509 = vadd.f32 %v382, %v508
  %v510 = vpop.f32.mrb[0].mxu0
  %511 = vmatprep.mubr.f32.mxu0 0.0
  %512 = vmatmul.mubr.f32.gmra.mrb[0].mxu0 %v394
  %v513 = vpop.f32.mrb[0].mxu0
  %v514 = vadd.f32 %v382, %v513
  %v515 = vpop.f32.mrb[0].mxu0
  %516 = vmatprep.mubr.f32.mxu0 0.0
  %517 = vmatmul.mubr.f32.gmra.mrb[0].mxu0 %v397
  %v518 = vpop.f32.mrb[0].mxu0
  %v519 = vadd.f32 %v382, %v518
  %v520 = vpop.f32.mrb[0].mxu0
  %521 = vmatprep.mubr.f32.mxu0 0.0
  %522 = vmatmul.mubr.f32.gmra.mrb[0].mxu0 %v400
  %v523 = vpop.f32.mrb[0].mxu0
  %v524 = vadd.f32 %v382, %v523
  %v525 = vpop.f32.mrb[0].mxu0
  %526 = vmatprep.mubr.f32.mxu0 0.0
  %527 = vmatmul.mubr.f32.gmra.mrb[0].mxu0 %v403
  %v528 = vpop.f32.mrb[0].mxu0
  %v529 = vadd.f32 %v382, %v528
  %v530 = vpop.f32.mrb[0].mxu0
  %531 = vmatprep.mubr.f32.mxu0 0.0
  %532 = vmatmul.mubr.f32.gmra.mrb[0].mxu0 %v406
  %v533 = vpop.f32.mrb[0].mxu0
  %v534 = vadd.f32 %v382, %v533
  %v535 = vpop.f32.mrb[0].mxu0
  %536 = vmatprep.mubr.f32.mxu0 0.0
  %537 = vmatmul.mubr.f32.gmra.mrb[0].mxu0 %v409
  %v538 = vpop.f32.mrb[0].mxu0
  %v539 = vadd.f32 %v382, %v538
  %v540 = vpop.f32.mrb[0].mxu0
  %541 = vmatprep.mubr.f32.mxu0 0.0
  %542 = vmatmul.mubr.f32.gmra.mrb[0].mxu0 %v412
  %v543 = vpop.f32.mrb[0].mxu0
  %v544 = vadd.f32 %v382, %v543
  %v545 = vpop.f32.mrb[0].mxu0
  %546 = vmatprep.mubr.f32.mxu0 0.0
  %547 = vmatmul.mubr.f32.gmra.mrb[0].mxu0 %v415
  %v548 = vpop.f32.mrb[0].mxu0
  %v549 = vadd.f32 %v382, %v548
  %v550 = vpop.f32.mrb[0].mxu0
  %551 = vmatprep.mubr.f32.mxu0 0.0
  %552 = vmatmul.mubr.f32.gmra.mrb[0].mxu0 %v418
  %v553 = vpop.f32.mrb[0].mxu0
  %v554 = vadd.f32 %v382, %v553
  %v555 = vpop.f32.mrb[0].mxu0
  %556 = vmatprep.mubr.f32.mxu0 0.0
  %557 = vmatmul.mubr.f32.gmra.mrb[0].mxu0 %v421
  %v558 = vpop.f32.mrb[0].mxu0
  %v559 = vadd.f32 %v382, %v558
  %v560 = vpop.f32.mrb[0].mxu0
  %561 = vmatprep.mubr.f32.mxu0 0.0
  %562 = vmatmul.mubr.f32.gmra.mrb[0].mxu0 %v424
  %v563 = vpop.f32.mrb[0].mxu0
  %v564 = vadd.f32 %v382, %v563
  %v565 = vpop.f32.mrb[0].mxu0
  %566 = vmatprep.mubr.f32.mxu0 0.0
  %567 = vmatmul.mubr.f32.gmra.mrb[0].mxu0 %v427
  %v568 = vpop.f32.mrb[0].mxu0
  %v569 = vadd.f32 %v382, %v568
  %v570 = vpop.f32.mrb[0].mxu0
  %571 = vmatprep.mubr.f32.mxu0 0.0
  %572 = vmatmul.mubr.f32.gmra.mrb[0].mxu0 %v430
  %v573 = vpop.f32.mrb[0].mxu0
  %v574 = vadd.f32 %v382, %v573
  %v575 = vpop.f32.mrb[0].mxu0
  %576 = vdwg.mxu0
  %v577 = vmul.f32 %v499, 0.35355338
  %v578 = vmul.f32 %v504, 0.35355338
  %v579 = vmul.f32 %v509, 0.35355338
  %v580 = vmul.f32 %v514, 0.35355338
  %v581 = vmul.f32 %v519, 0.35355338
  %v582 = vmul.f32 %v524, 0.35355338
  %v583 = vmul.f32 %v529, 0.35355338
  %v584 = vmul.f32 %v534, 0.35355338
  %v585 = vmul.f32 %v539, 0.35355338
  %v586 = vmul.f32 %v544, 0.35355338
  %v587 = vmul.f32 %v549, 0.35355338
  %v588 = vmul.f32 %v554, 0.35355338
  %v589 = vmul.f32 %v559, 0.35355338
  %v590 = vmul.f32 %v564, 0.35355338
  %v591 = vmul.f32 %v569, 0.35355338
  %v592 = vmul.f32 %v574, 0.35355338
  %v593 = vld [vmem:[%s5] sm:$0xff]
  %v594 = vld [vmem:[%s5 + $0x8] sm:$0xff]
  %v595 = vld [vmem:[%s5 + $0x10] sm:$0xff]
  %v596 = vld [vmem:[%s5 + $0x18] sm:$0xff]
  %605 = vrot.lane.b32.xlu0 %v499, 96
  %v606 = vpop.permute.xlu0 %605
  %607 = vrot.lane.b32.xlu0 %v504, 96
  %v608 = vpop.permute.xlu0 %607
  %609 = vrot.lane.b32.xlu0 %v509, 96
  %v610 = vpop.permute.xlu0 %609
  %611 = vrot.lane.b32.xlu0 %v514, 96
  %v612 = vpop.permute.xlu0 %611
  %613 = vrot.lane.b32.xlu0 %v519, 96
  %v614 = vpop.permute.xlu0 %613
  %615 = vrot.lane.b32.xlu0 %v524, 96
  %v616 = vpop.permute.xlu0 %615
  %617 = vrot.lane.b32.xlu0 %v529, 96
  %v618 = vpop.permute.xlu0 %617
  %619 = vrot.lane.b32.xlu0 %v534, 96
  %v620 = vpop.permute.xlu0 %619
  %vm621 = vcmask 64512
  %v623 = vsel %vm621, %v577, 0
  %v626 = vsel %vm621, %v578, 0
  %v629 = vsel %vm621, %v579, 0
  %v632 = vsel %vm621, %v580, 0
  %v635 = vsel %vm621, %v581, 0
  %v638 = vsel %vm621, %v582, 0
  %v641 = vsel %vm621, %v583, 0
  %v644 = vsel %vm621, %v584, 0
  %v646 = vsel %vm621, %v606, 0
  %v648 = vsel %vm621, %v608, 0
  %v650 = vsel %vm621, %v610, 0
  %v652 = vsel %vm621, %v612, 0
  %v654 = vsel %vm621, %v614, 0
  %v656 = vsel %vm621, %v616, 0
  %v658 = vsel %vm621, %v618, 0
  %v660 = vsel %vm621, %v620, 0
  %662 = vmatprep.subr.mxu0 0.0
  %663 = vmatpush1.xpose.msra.mxu0 %v646
  %664 = vmatprep.subr.mxu0 0.0
  %665 = vmatpush1.xpose.msra.mxu0 %v648
  %666 = vmatprep.subr.mxu0 0.0
  %667 = vmatpush1.xpose.msra.mxu0 %v650
  %668 = vmatprep.subr.mxu0 0.0
  %669 = vmatpush1.xpose.msra.mxu0 %v652
  %670 = vmatprep.subr.mxu0 0.0
  %671 = vmatpush1.xpose.msra.mxu0 %v654
  %672 = vmatprep.subr.mxu0 0.0
  %673 = vmatpush1.xpose.msra.mxu0 %v656
  %674 = vmatprep.subr.mxu0 0.0
  %675 = vmatpush1.xpose.msra.mxu0 %v658
  %676 = vmatprep.subr.mxu0 0.0
  %677 = vmatpush1.xpose.msra.mxu0 %v660
  %678 = vmatprep.subr.mxu0 0.0
  %679 = vmatpush1.xpose.msra.mxu0 0.0
  %680 = vmatprep.subr.mxu0 0.0
  %681 = vmatpush1.xpose.msra.mxu0 0.0
  %682 = vmatprep.subr.mxu0 0.0
  %683 = vmatpush1.xpose.msra.mxu0 0.0
  %684 = vmatprep.subr.mxu0 0.0
  %685 = vmatpush1.xpose.msra.mxu0 0.0
  %686 = vmatprep.subr.mxu0 0.0
  %687 = vmatpush1.xpose.msra.mxu0 0.0
  %688 = vmatprep.subr.mxu0 0.0
  %689 = vmatpush1.xpose.msra.mxu0 0.0
  %690 = vmatprep.subr.mxu0 0.0
  %691 = vmatpush1.xpose.msra.mxu0 0.0
  %692 = vmatprep.subr.mxu0 0.0
  %693 = vmatpush1.xpose.msra.mxu0 0.0
  %694 = vmatprep.subr.mxu0 0.0
  %695 = vmatpush1.xpose.msra.mxu0 0.0
  %696 = vmatprep.subr.mxu0 0.0
  %697 = vmatpush1.xpose.msra.mxu0 0.0
  %698 = vmatprep.subr.mxu0 0.0
  %699 = vmatpush1.xpose.msra.mxu0 0.0
  %700 = vmatprep.subr.mxu0 0.0
  %701 = vmatpush1.xpose.msra.mxu0 0.0
  %702 = vmatprep.subr.mxu0 0.0
  %703 = vmatpush1.xpose.msra.mxu0 0.0
  %704 = vmatprep.subr.mxu0 0.0
  %705 = vmatpush1.xpose.msra.mxu0 0.0
  %706 = vmatprep.subr.mxu0 0.0
  %707 = vmatpush1.xpose.msra.mxu0 0.0
  %708 = vmatprep.subr.mxu0 0.0
  %709 = vmatpush1.xpose.msra.mxu0 0.0
  %710 = vmatprep.subr.mxu0 0.0
  %711 = vmatpush1.xpose.msra.mxu0 0.0
  %712 = vmatprep.subr.mxu0 0.0
  %713 = vmatpush1.xpose.msra.mxu0 0.0
  %714 = vmatprep.subr.mxu0 0.0
  %715 = vmatpush1.xpose.msra.mxu0 0.0
  %716 = vmatprep.subr.mxu0 0.0
  %717 = vmatpush1.xpose.msra.mxu0 0.0
  %718 = vmatprep.subr.mxu0 0.0
  %719 = vmatpush1.xpose.msra.mxu0 0.0
  %720 = vmatprep.subr.mxu0 0.0
  %721 = vmatpush1.xpose.msra.mxu0 0.0
  %722 = vmatprep.subr.mxu0 0.0
  %723 = vmatpush1.xpose.msra.mxu0 0.0
  %724 = vmatprep.subr.mxu0 0.0
  %725 = vmatpush1.xpose.msra.mxu0 0.0
  %726 = vmatprep.mubr.f32.mxu0 0.0
  %727 = vmatmul.mubr.f32.gmra.mrb[0].mxu0 %v623
  %v728 = vpop.f32.mrb[0].mxu0
  %v729 = vadd.f32 0.0, %v728
  %v730 = vpop.f32.mrb[0].mxu0
  %731 = vmatprep.mubr.f32.mxu0 0.0
  %732 = vmatmul.mubr.f32.gmra.mrb[0].mxu0 %v626
  %v733 = vpop.f32.mrb[0].mxu0
  %v734 = vadd.f32 0.0, %v733
  %v735 = vpop.f32.mrb[0].mxu0
  %736 = vmatprep.mubr.f32.mxu0 0.0
  %737 = vmatmul.mubr.f32.gmra.mrb[0].mxu0 %v629
  %v738 = vpop.f32.mrb[0].mxu0
  %v739 = vadd.f32 0.0, %v738
  %v740 = vpop.f32.mrb[0].mxu0
  %741 = vmatprep.mubr.f32.mxu0 0.0
  %742 = vmatmul.mubr.f32.gmra.mrb[0].mxu0 %v632
  %v743 = vpop.f32.mrb[0].mxu0
  %v744 = vadd.f32 0.0, %v743
  %v745 = vpop.f32.mrb[0].mxu0
  %746 = vmatprep.mubr.f32.mxu0 0.0
  %747 = vmatmul.mubr.f32.gmra.mrb[0].mxu0 %v635
  %v748 = vpop.f32.mrb[0].mxu0
  %v749 = vadd.f32 0.0, %v748
  %v750 = vpop.f32.mrb[0].mxu0
  %751 = vmatprep.mubr.f32.mxu0 0.0
  %752 = vmatmul.mubr.f32.gmra.mrb[0].mxu0 %v638
  %v753 = vpop.f32.mrb[0].mxu0
  %v754 = vadd.f32 0.0, %v753
  %v755 = vpop.f32.mrb[0].mxu0
  %756 = vmatprep.mubr.f32.mxu0 0.0
  %757 = vmatmul.mubr.f32.gmra.mrb[0].mxu0 %v641
  %v758 = vpop.f32.mrb[0].mxu0
  %v759 = vadd.f32 0.0, %v758
  %v760 = vpop.f32.mrb[0].mxu0
  %761 = vmatprep.mubr.f32.mxu0 0.0
  %762 = vmatmul.mubr.f32.gmra.mrb[0].mxu0 %v644
  %v763 = vpop.f32.mrb[0].mxu0
  %v764 = vadd.f32 0.0, %v763
  %v765 = vpop.f32.mrb[0].mxu0
  %766 = vdwg.mxu0
  %vm767 = vcmask 523264
  %v768 = vsel %vm767, %v729, -inf
  %769 = vmax.xlane.f32.xlu0 %v768
  %v770 = vpop.xlane.xlu0 %769
  %v771 = vsel %vm767, %v734, -inf
  %772 = vmax.xlane.f32.xlu0 %v771
  %v773 = vpop.xlane.xlu0 %772
  %v774 = vsel %vm767, %v739, -inf
  %775 = vmax.xlane.f32.xlu0 %v774
  %v776 = vpop.xlane.xlu0 %775
  %v777 = vsel %vm767, %v744, -inf
  %778 = vmax.xlane.f32.xlu0 %v777
  %v779 = vpop.xlane.xlu0 %778
  %v780 = vsel %vm767, %v749, -inf
  %781 = vmax.xlane.f32.xlu0 %v780
  %v782 = vpop.xlane.xlu0 %781
  %v783 = vsel %vm767, %v754, -inf
  %784 = vmax.xlane.f32.xlu0 %v783
  %v785 = vpop.xlane.xlu0 %784
  %v786 = vsel %vm767, %v759, -inf
  %787 = vmax.xlane.f32.xlu0 %v786
  %v788 = vpop.xlane.xlu0 %787
  %v789 = vsel %vm767, %v764, -inf
  %790 = vmax.xlane.f32.xlu0 %v789
  %v791 = vpop.xlane.xlu0 %790
  %v792 = vsub.f32 %v729, %v770
  %v793 = vsub.f32 %v734, %v773
  %v794 = vsub.f32 %v739, %v776
  %v795 = vsub.f32 %v744, %v779
  %v796 = vsub.f32 %v749, %v782
  %v797 = vsub.f32 %v754, %v785
  %v798 = vsub.f32 %v759, %v788
  %v799 = vsub.f32 %v764, %v791
  %v800 = vmul.f32 %v792, 1.442695
  %v801 = vpow.pop %v800
  %v802 = vmul.f32 %v793, 1.442695
  %v803 = vpow.pop %v802
  %v804 = vmul.f32 %v794, 1.442695
  %v805 = vpow.pop %v804
  %v806 = vmul.f32 %v795, 1.442695
  %v807 = vpow.pop %v806
  %v808 = vmul.f32 %v796, 1.442695
  %v809 = vpow.pop %v808
  %v810 = vmul.f32 %v797, 1.442695
  %v811 = vpow.pop %v810
  %v812 = vmul.f32 %v798, 1.442695
  %v813 = vpow.pop %v812
  %v814 = vmul.f32 %v799, 1.442695
  %v815 = vpow.pop %v814
  %v816 = vsel %vm767, %v801, 0.0
  %817 = vadd.xlane.f32.xlu0 %v816
  %v818 = vpop.xlane.xlu0 %817
  %v819 = vsel %vm767, %v803, 0.0
  %820 = vadd.xlane.f32.xlu0 %v819
  %v821 = vpop.xlane.xlu0 %820
  %v822 = vsel %vm767, %v805, 0.0
  %823 = vadd.xlane.f32.xlu0 %v822
  %v824 = vpop.xlane.xlu0 %823
  %v825 = vsel %vm767, %v807, 0.0
  %826 = vadd.xlane.f32.xlu0 %v825
  %v827 = vpop.xlane.xlu0 %826
  %v828 = vsel %vm767, %v809, 0.0
  %829 = vadd.xlane.f32.xlu0 %v828
  %v830 = vpop.xlane.xlu0 %829
  %v831 = vsel %vm767, %v811, 0.0
  %832 = vadd.xlane.f32.xlu0 %v831
  %v833 = vpop.xlane.xlu0 %832
  %v834 = vsel %vm767, %v813, 0.0
  %835 = vadd.xlane.f32.xlu0 %v834
  %v836 = vpop.xlane.xlu0 %835
  %v837 = vsel %vm767, %v815, 0.0
  %838 = vadd.xlane.f32.xlu0 %v837
  %v839 = vpop.xlane.xlu0 %838
  %v840 = vrcp.pop %v818
  %v841 = vmul.f32 %v801, %v840
  %v842 = vrcp.pop %v821
  %v843 = vmul.f32 %v803, %v842
  %v844 = vrcp.pop %v824
  %v845 = vmul.f32 %v805, %v844
  %v846 = vrcp.pop %v827
  %v847 = vmul.f32 %v807, %v846
  %v848 = vrcp.pop %v830
  %v849 = vmul.f32 %v809, %v848
  %v850 = vrcp.pop %v833
  %v851 = vmul.f32 %v811, %v850
  %v852 = vrcp.pop %v836
  %v853 = vmul.f32 %v813, %v852
  %v854 = vrcp.pop %v839
  %v855 = vmul.f32 %v815, %v854
  %856 = vrot.lane.b32.xlu0 %v499, 64
  %v857 = vpop.permute.xlu0 %856
  %858 = vrot.lane.b32.xlu0 %v504, 64
  %v859 = vpop.permute.xlu0 %858
  %860 = vrot.lane.b32.xlu0 %v509, 64
  %v861 = vpop.permute.xlu0 %860
  %862 = vrot.lane.b32.xlu0 %v514, 64
  %v863 = vpop.permute.xlu0 %862
  %864 = vrot.lane.b32.xlu0 %v519, 64
  %v865 = vpop.permute.xlu0 %864
  %866 = vrot.lane.b32.xlu0 %v524, 64
  %v867 = vpop.permute.xlu0 %866
  %868 = vrot.lane.b32.xlu0 %v529, 64
  %v869 = vpop.permute.xlu0 %868
  %870 = vrot.lane.b32.xlu0 %v534, 64
  %v871 = vpop.permute.xlu0 %870
  %v881 = vsel %vm767, %v841, 0
  %v884 = vsel %vm767, %v843, 0
  %v887 = vsel %vm767, %v845, 0
  %v890 = vsel %vm767, %v847, 0
  %v893 = vsel %vm767, %v849, 0
  %v896 = vsel %vm767, %v851, 0
  %v899 = vsel %vm767, %v853, 0
  %v902 = vsel %vm767, %v855, 0
  %904 = vmatprep.subr.mxu0 0.0
  %905 = vmatpush1.msra.mxu0 %v857
  %906 = vmatprep.subr.mxu0 0.0
  %907 = vmatpush1.msra.mxu0 %v859
  %908 = vmatprep.subr.mxu0 0.0
  %909 = vmatpush1.msra.mxu0 %v861
  %910 = vmatprep.subr.mxu0 0.0
  %911 = vmatpush1.msra.mxu0 %v863
  %912 = vmatprep.subr.mxu0 0.0
  %913 = vmatpush1.msra.mxu0 %v865
  %914 = vmatprep.subr.mxu0 0.0
  %915 = vmatpush1.msra.mxu0 %v867
  %916 = vmatprep.subr.mxu0 0.0
  %917 = vmatpush1.msra.mxu0 %v869
  %918 = vmatprep.subr.mxu0 0.0
  %919 = vmatpush1.msra.mxu0 %v871
  %920 = vmatprep.subr.mxu0 0.0
  %921 = vmatpush1.msra.mxu0 0.0
  %922 = vmatprep.subr.mxu0 0.0
  %923 = vmatpush1.msra.mxu0 0.0
  %924 = vmatprep.subr.mxu0 0.0
  %925 = vmatpush1.msra.mxu0 0.0
  %926 = vmatprep.subr.mxu0 0.0
  %927 = vmatpush1.msra.mxu0 0.0
  %928 = vmatprep.subr.mxu0 0.0
  %929 = vmatpush1.msra.mxu0 0.0
  %930 = vmatprep.subr.mxu0 0.0
  %931 = vmatpush1.msra.mxu0 0.0
  %932 = vmatprep.subr.mxu0 0.0
  %933 = vmatpush1.msra.mxu0 0.0
  %934 = vmatprep.subr.mxu0 0.0
  %935 = vmatpush1.msra.mxu0 0.0
  %936 = vmatprep.subr.mxu0 0.0
  %937 = vmatpush1.msra.mxu0 0.0
  %938 = vmatprep.subr.mxu0 0.0
  %939 = vmatpush1.msra.mxu0 0.0
  %940 = vmatprep.subr.mxu0 0.0
  %941 = vmatpush1.msra.mxu0 0.0
  %942 = vmatprep.subr.mxu0 0.0
  %943 = vmatpush1.msra.mxu0 0.0
  %944 = vmatprep.subr.mxu0 0.0
  %945 = vmatpush1.msra.mxu0 0.0
  %946 = vmatprep.subr.mxu0 0.0
  %947 = vmatpush1.msra.mxu0 0.0
  %948 = vmatprep.subr.mxu0 0.0
  %949 = vmatpush1.msra.mxu0 0.0
  %950 = vmatprep.subr.mxu0 0.0
  %951 = vmatpush1.msra.mxu0 0.0
  %952 = vmatprep.subr.mxu0 0.0
  %953 = vmatpush1.msra.mxu0 0.0
  %954 = vmatprep.subr.mxu0 0.0
  %955 = vmatpush1.msra.mxu0 0.0
  %956 = vmatprep.subr.mxu0 0.0
  %957 = vmatpush1.msra.mxu0 0.0
  %958 = vmatprep.subr.mxu0 0.0
  %959 = vmatpush1.msra.mxu0 0.0
  %960 = vmatprep.subr.mxu0 0.0
  %961 = vmatpush1.msra.mxu0 0.0
  %962 = vmatprep.subr.mxu0 0.0
  %963 = vmatpush1.msra.mxu0 0.0
  %964 = vmatprep.subr.mxu0 0.0
  %965 = vmatpush1.msra.mxu0 0.0
  %966 = vmatprep.subr.mxu0 0.0
  %967 = vmatpush1.msra.mxu0 0.0
  %968 = vmatprep.mubr.f32.mxu0 0.0
  %969 = vmatmul.mubr.f32.gmra.mrb[0].mxu0 %v881
  %v970 = vpop.f32.mrb[0].mxu0
  %v971 = vadd.f32 0.0, %v970
  %v972 = vpop.f32.mrb[0].mxu0
  %973 = vmatprep.mubr.f32.mxu0 0.0
  %974 = vmatmul.mubr.f32.gmra.mrb[0].mxu0 %v884
  %v975 = vpop.f32.mrb[0].mxu0
  %v976 = vadd.f32 0.0, %v975
  %v977 = vpop.f32.mrb[0].mxu0
  %978 = vmatprep.mubr.f32.mxu0 0.0
  %979 = vmatmul.mubr.f32.gmra.mrb[0].mxu0 %v887
  %v980 = vpop.f32.mrb[0].mxu0
  %v981 = vadd.f32 0.0, %v980
  %v982 = vpop.f32.mrb[0].mxu0
  %983 = vmatprep.mubr.f32.mxu0 0.0
  %984 = vmatmul.mubr.f32.gmra.mrb[0].mxu0 %v890
  %v985 = vpop.f32.mrb[0].mxu0
  %v986 = vadd.f32 0.0, %v985
  %v987 = vpop.f32.mrb[0].mxu0
  %988 = vmatprep.mubr.f32.mxu0 0.0
  %989 = vmatmul.mubr.f32.gmra.mrb[0].mxu0 %v893
  %v990 = vpop.f32.mrb[0].mxu0
  %v991 = vadd.f32 0.0, %v990
  %v992 = vpop.f32.mrb[0].mxu0
  %993 = vmatprep.mubr.f32.mxu0 0.0
  %994 = vmatmul.mubr.f32.gmra.mrb[0].mxu0 %v896
  %v995 = vpop.f32.mrb[0].mxu0
  %v996 = vadd.f32 0.0, %v995
  %v997 = vpop.f32.mrb[0].mxu0
  %998 = vmatprep.mubr.f32.mxu0 0.0
  %999 = vmatmul.mubr.f32.gmra.mrb[0].mxu0 %v899
  %v1000 = vpop.f32.mrb[0].mxu0
  %v1001 = vadd.f32 0.0, %v1000
  %v1002 = vpop.f32.mrb[0].mxu0
  %1003 = vmatprep.mubr.f32.mxu0 0.0
  %1004 = vmatmul.mubr.f32.gmra.mrb[0].mxu0 %v902
  %v1005 = vpop.f32.mrb[0].mxu0
  %v1006 = vadd.f32 0.0, %v1005
  %v1007 = vpop.f32.mrb[0].mxu0
  %1008 = vdwg.mxu0
  %1009 = vrot.lane.b32.xlu0 %v577, 120
  %v1010 = vpop.permute.xlu0 %1009
  %1011 = vrot.lane.b32.xlu0 %v578, 120
  %v1012 = vpop.permute.xlu0 %1011
  %1013 = vrot.lane.b32.xlu0 %v579, 120
  %v1014 = vpop.permute.xlu0 %1013
  %1015 = vrot.lane.b32.xlu0 %v580, 120
  %v1016 = vpop.permute.xlu0 %1015
  %1017 = vrot.lane.b32.xlu0 %v581, 120
  %v1018 = vpop.permute.xlu0 %1017
  %1019 = vrot.lane.b32.xlu0 %v582, 120
  %v1020 = vpop.permute.xlu0 %1019
  %1021 = vrot.lane.b32.xlu0 %v583, 120
  %v1022 = vpop.permute.xlu0 %1021
  %1023 = vrot.lane.b32.xlu0 %v584, 120
  %v1024 = vpop.permute.xlu0 %1023
  %1025 = vrot.lane.b32.xlu0 %v499, 88
  %v1026 = vpop.permute.xlu0 %1025
  %1027 = vrot.lane.b32.xlu0 %v504, 88
  %v1028 = vpop.permute.xlu0 %1027
  %1029 = vrot.lane.b32.xlu0 %v509, 88
  %v1030 = vpop.permute.xlu0 %1029
  %1031 = vrot.lane.b32.xlu0 %v514, 88
  %v1032 = vpop.permute.xlu0 %1031
  %1033 = vrot.lane.b32.xlu0 %v519, 88
  %v1034 = vpop.permute.xlu0 %1033
  %1035 = vrot.lane.b32.xlu0 %v524, 88
  %v1036 = vpop.permute.xlu0 %1035
  %1037 = vrot.lane.b32.xlu0 %v529, 88
  %v1038 = vpop.permute.xlu0 %1037
  %1039 = vrot.lane.b32.xlu0 %v534, 88
  %v1040 = vpop.permute.xlu0 %1039
  %v1041 = vsel %vm621, %v1010, 0
  %v1043 = vsel %vm621, %v1012, 0
  %v1045 = vsel %vm621, %v1014, 0
  %v1047 = vsel %vm621, %v1016, 0
  %v1049 = vsel %vm621, %v1018, 0
  %v1051 = vsel %vm621, %v1020, 0
  %v1053 = vsel %vm621, %v1022, 0
  %v1055 = vsel %vm621, %v1024, 0
  %v1057 = vsel %vm621, %v1026, 0
  %v1059 = vsel %vm621, %v1028, 0
  %v1061 = vsel %vm621, %v1030, 0
  %v1063 = vsel %vm621, %v1032, 0
  %v1065 = vsel %vm621, %v1034, 0
  %v1067 = vsel %vm621, %v1036, 0
  %v1069 = vsel %vm621, %v1038, 0
  %v1071 = vsel %vm621, %v1040, 0
  %1073 = vmatprep.subr.mxu0 0.0
  %1074 = vmatpush1.xpose.msra.mxu0 %v1057
  %1075 = vmatprep.subr.mxu0 0.0
  %1076 = vmatpush1.xpose.msra.mxu0 %v1059
  %1077 = vmatprep.subr.mxu0 0.0
  %1078 = vmatpush1.xpose.msra.mxu0 %v1061
  %1079 = vmatprep.subr.mxu0 0.0
  %1080 = vmatpush1.xpose.msra.mxu0 %v1063
  %1081 = vmatprep.subr.mxu0 0.0
  %1082 = vmatpush1.xpose.msra.mxu0 %v1065
  %1083 = vmatprep.subr.mxu0 0.0
  %1084 = vmatpush1.xpose.msra.mxu0 %v1067
  %1085 = vmatprep.subr.mxu0 0.0
  %1086 = vmatpush1.xpose.msra.mxu0 %v1069
  %1087 = vmatprep.subr.mxu0 0.0
  %1088 = vmatpush1.xpose.msra.mxu0 %v1071
  %1089 = vmatprep.subr.mxu0 0.0
  %1090 = vmatpush1.xpose.msra.mxu0 0.0
  %1091 = vmatprep.subr.mxu0 0.0
  %1092 = vmatpush1.xpose.msra.mxu0 0.0
  %1093 = vmatprep.subr.mxu0 0.0
  %1094 = vmatpush1.xpose.msra.mxu0 0.0
  %1095 = vmatprep.subr.mxu0 0.0
  %1096 = vmatpush1.xpose.msra.mxu0 0.0
  %1097 = vmatprep.subr.mxu0 0.0
  %1098 = vmatpush1.xpose.msra.mxu0 0.0
  %1099 = vmatprep.subr.mxu0 0.0
  %1100 = vmatpush1.xpose.msra.mxu0 0.0
  %1101 = vmatprep.subr.mxu0 0.0
  %1102 = vmatpush1.xpose.msra.mxu0 0.0
  %1103 = vmatprep.subr.mxu0 0.0
  %1104 = vmatpush1.xpose.msra.mxu0 0.0
  %1105 = vmatprep.subr.mxu0 0.0
  %1106 = vmatpush1.xpose.msra.mxu0 0.0
  %1107 = vmatprep.subr.mxu0 0.0
  %1108 = vmatpush1.xpose.msra.mxu0 0.0
  %1109 = vmatprep.subr.mxu0 0.0
  %1110 = vmatpush1.xpose.msra.mxu0 0.0
  %1111 = vmatprep.subr.mxu0 0.0
  %1112 = vmatpush1.xpose.msra.mxu0 0.0
  %1113 = vmatprep.subr.mxu0 0.0
  %1114 = vmatpush1.xpose.msra.mxu0 0.0
  %1115 = vmatprep.subr.mxu0 0.0
  %1116 = vmatpush1.xpose.msra.mxu0 0.0
  %1117 = vmatprep.subr.mxu0 0.0
  %1118 = vmatpush1.xpose.msra.mxu0 0.0
  %1119 = vmatprep.subr.mxu0 0.0
  %1120 = vmatpush1.xpose.msra.mxu0 0.0
  %1121 = vmatprep.subr.mxu0 0.0
  %1122 = vmatpush1.xpose.msra.mxu0 0.0
  %1123 = vmatprep.subr.mxu0 0.0
  %1124 = vmatpush1.xpose.msra.mxu0 0.0
  %1125 = vmatprep.subr.mxu0 0.0
  %1126 = vmatpush1.xpose.msra.mxu0 0.0
  %1127 = vmatprep.subr.mxu0 0.0
  %1128 = vmatpush1.xpose.msra.mxu0 0.0
  %1129 = vmatprep.subr.mxu0 0.0
  %1130 = vmatpush1.xpose.msra.mxu0 0.0
  %1131 = vmatprep.subr.mxu0 0.0
  %1132 = vmatpush1.xpose.msra.mxu0 0.0
  %1133 = vmatprep.subr.mxu0 0.0
  %1134 = vmatpush1.xpose.msra.mxu0 0.0
  %1135 = vmatprep.subr.mxu0 0.0
  %1136 = vmatpush1.xpose.msra.mxu0 0.0
  %1137 = vmatprep.mubr.f32.mxu0 0.0
  %1138 = vmatmul.mubr.f32.gmra.mrb[0].mxu0 %v1041
  %v1139 = vpop.f32.mrb[0].mxu0
  %v1140 = vadd.f32 0.0, %v1139
  %v1141 = vpop.f32.mrb[0].mxu0
  %1142 = vmatprep.mubr.f32.mxu0 0.0
  %1143 = vmatmul.mubr.f32.gmra.mrb[0].mxu0 %v1043
  %v1144 = vpop.f32.mrb[0].mxu0
  %v1145 = vadd.f32 0.0, %v1144
  %v1146 = vpop.f32.mrb[0].mxu0
  %1147 = vmatprep.mubr.f32.mxu0 0.0
  %1148 = vmatmul.mubr.f32.gmra.mrb[0].mxu0 %v1045
  %v1149 = vpop.f32.mrb[0].mxu0
  %v1150 = vadd.f32 0.0, %v1149
  %v1151 = vpop.f32.mrb[0].mxu0
  %1152 = vmatprep.mubr.f32.mxu0 0.0
  %1153 = vmatmul.mubr.f32.gmra.mrb[0].mxu0 %v1047
  %v1154 = vpop.f32.mrb[0].mxu0
  %v1155 = vadd.f32 0.0, %v1154
  %v1156 = vpop.f32.mrb[0].mxu0
  %1157 = vmatprep.mubr.f32.mxu0 0.0
  %1158 = vmatmul.mubr.f32.gmra.mrb[0].mxu0 %v1049
  %v1159 = vpop.f32.mrb[0].mxu0
  %v1160 = vadd.f32 0.0, %v1159
  %v1161 = vpop.f32.mrb[0].mxu0
  %1162 = vmatprep.mubr.f32.mxu0 0.0
  %1163 = vmatmul.mubr.f32.gmra.mrb[0].mxu0 %v1051
  %v1164 = vpop.f32.mrb[0].mxu0
  %v1165 = vadd.f32 0.0, %v1164
  %v1166 = vpop.f32.mrb[0].mxu0
  %1167 = vmatprep.mubr.f32.mxu0 0.0
  %1168 = vmatmul.mubr.f32.gmra.mrb[0].mxu0 %v1053
  %v1169 = vpop.f32.mrb[0].mxu0
  %v1170 = vadd.f32 0.0, %v1169
  %v1171 = vpop.f32.mrb[0].mxu0
  %1172 = vmatprep.mubr.f32.mxu0 0.0
  %1173 = vmatmul.mubr.f32.gmra.mrb[0].mxu0 %v1055
  %v1174 = vpop.f32.mrb[0].mxu0
  %v1175 = vadd.f32 0.0, %v1174
  %v1176 = vpop.f32.mrb[0].mxu0
  %1177 = vdwg.mxu0
  %v1178 = vsel %vm767, %v1140, -inf
  %1179 = vmax.xlane.f32.xlu0 %v1178
  %v1180 = vpop.xlane.xlu0 %1179
  %v1181 = vsel %vm767, %v1145, -inf
  %1182 = vmax.xlane.f32.xlu0 %v1181
  %v1183 = vpop.xlane.xlu0 %1182
  %v1184 = vsel %vm767, %v1150, -inf
  %1185 = vmax.xlane.f32.xlu0 %v1184
  %v1186 = vpop.xlane.xlu0 %1185
  %v1187 = vsel %vm767, %v1155, -inf
  %1188 = vmax.xlane.f32.xlu0 %v1187
  %v1189 = vpop.xlane.xlu0 %1188
  %v1190 = vsel %vm767, %v1160, -inf
  %1191 = vmax.xlane.f32.xlu0 %v1190
  %v1192 = vpop.xlane.xlu0 %1191
  %v1193 = vsel %vm767, %v1165, -inf
  %1194 = vmax.xlane.f32.xlu0 %v1193
  %v1195 = vpop.xlane.xlu0 %1194
  %v1196 = vsel %vm767, %v1170, -inf
  %1197 = vmax.xlane.f32.xlu0 %v1196
  %v1198 = vpop.xlane.xlu0 %1197
  %v1199 = vsel %vm767, %v1175, -inf
  %1200 = vmax.xlane.f32.xlu0 %v1199
  %v1201 = vpop.xlane.xlu0 %1200
  %v1202 = vsub.f32 %v1140, %v1180
  %v1203 = vsub.f32 %v1145, %v1183
  %v1204 = vsub.f32 %v1150, %v1186
  %v1205 = vsub.f32 %v1155, %v1189
  %v1206 = vsub.f32 %v1160, %v1192
  %v1207 = vsub.f32 %v1165, %v1195
  %v1208 = vsub.f32 %v1170, %v1198
  %v1209 = vsub.f32 %v1175, %v1201
  %v1210 = vmul.f32 %v1202, 1.442695
  %v1211 = vpow.pop %v1210
  %v1212 = vmul.f32 %v1203, 1.442695
  %v1213 = vpow.pop %v1212
  %v1214 = vmul.f32 %v1204, 1.442695
  %v1215 = vpow.pop %v1214
  %v1216 = vmul.f32 %v1205, 1.442695
  %v1217 = vpow.pop %v1216
  %v1218 = vmul.f32 %v1206, 1.442695
  %v1219 = vpow.pop %v1218
  %v1220 = vmul.f32 %v1207, 1.442695
  %v1221 = vpow.pop %v1220
  %v1222 = vmul.f32 %v1208, 1.442695
  %v1223 = vpow.pop %v1222
  %v1224 = vmul.f32 %v1209, 1.442695
  %v1225 = vpow.pop %v1224
  %v1226 = vsel %vm767, %v1211, 0.0
  %1227 = vadd.xlane.f32.xlu0 %v1226
  %v1228 = vpop.xlane.xlu0 %1227
  %v1229 = vsel %vm767, %v1213, 0.0
  %1230 = vadd.xlane.f32.xlu0 %v1229
  %v1231 = vpop.xlane.xlu0 %1230
  %v1232 = vsel %vm767, %v1215, 0.0
  %1233 = vadd.xlane.f32.xlu0 %v1232
  %v1234 = vpop.xlane.xlu0 %1233
  %v1235 = vsel %vm767, %v1217, 0.0
  %1236 = vadd.xlane.f32.xlu0 %v1235
  %v1237 = vpop.xlane.xlu0 %1236
  %v1238 = vsel %vm767, %v1219, 0.0
  %1239 = vadd.xlane.f32.xlu0 %v1238
  %v1240 = vpop.xlane.xlu0 %1239
  %v1241 = vsel %vm767, %v1221, 0.0
  %1242 = vadd.xlane.f32.xlu0 %v1241
  %v1243 = vpop.xlane.xlu0 %1242
  %v1244 = vsel %vm767, %v1223, 0.0
  %1245 = vadd.xlane.f32.xlu0 %v1244
  %v1246 = vpop.xlane.xlu0 %1245
  %v1247 = vsel %vm767, %v1225, 0.0
  %1248 = vadd.xlane.f32.xlu0 %v1247
  %v1249 = vpop.xlane.xlu0 %1248
  %v1250 = vrcp.pop %v1228
  %v1251 = vmul.f32 %v1211, %v1250
  %v1252 = vrcp.pop %v1231
  %v1253 = vmul.f32 %v1213, %v1252
  %v1254 = vrcp.pop %v1234
  %v1255 = vmul.f32 %v1215, %v1254
  %v1256 = vrcp.pop %v1237
  %v1257 = vmul.f32 %v1217, %v1256
  %v1258 = vrcp.pop %v1240
  %v1259 = vmul.f32 %v1219, %v1258
  %v1260 = vrcp.pop %v1243
  %v1261 = vmul.f32 %v1221, %v1260
  %v1262 = vrcp.pop %v1246
  %v1263 = vmul.f32 %v1223, %v1262
  %v1264 = vrcp.pop %v1249
  %v1265 = vmul.f32 %v1225, %v1264
  %1266 = vrot.lane.b32.xlu0 %v499, 56
  %v1267 = vpop.permute.xlu0 %1266
  %1268 = vrot.lane.b32.xlu0 %v504, 56
  %v1269 = vpop.permute.xlu0 %1268
  %1270 = vrot.lane.b32.xlu0 %v509, 56
  %v1271 = vpop.permute.xlu0 %1270
  %1272 = vrot.lane.b32.xlu0 %v514, 56
  %v1273 = vpop.permute.xlu0 %1272
  %1274 = vrot.lane.b32.xlu0 %v519, 56
  %v1275 = vpop.permute.xlu0 %1274
  %1276 = vrot.lane.b32.xlu0 %v524, 56
  %v1277 = vpop.permute.xlu0 %1276
  %1278 = vrot.lane.b32.xlu0 %v529, 56
  %v1279 = vpop.permute.xlu0 %1278
  %1280 = vrot.lane.b32.xlu0 %v534, 56
  %v1281 = vpop.permute.xlu0 %1280
  %v1291 = vsel %vm767, %v1251, 0
  %v1294 = vsel %vm767, %v1253, 0
  %v1297 = vsel %vm767, %v1255, 0
  %v1300 = vsel %vm767, %v1257, 0
  %v1303 = vsel %vm767, %v1259, 0
  %v1306 = vsel %vm767, %v1261, 0
  %v1309 = vsel %vm767, %v1263, 0
  %v1312 = vsel %vm767, %v1265, 0
  %1314 = vmatprep.subr.mxu0 0.0
  %1315 = vmatpush1.msra.mxu0 %v1267
  %1316 = vmatprep.subr.mxu0 0.0
  %1317 = vmatpush1.msra.mxu0 %v1269
  %1318 = vmatprep.subr.mxu0 0.0
  %1319 = vmatpush1.msra.mxu0 %v1271
  %1320 = vmatprep.subr.mxu0 0.0
  %1321 = vmatpush1.msra.mxu0 %v1273
  %1322 = vmatprep.subr.mxu0 0.0
  %1323 = vmatpush1.msra.mxu0 %v1275
  %1324 = vmatprep.subr.mxu0 0.0
  %1325 = vmatpush1.msra.mxu0 %v1277
  %1326 = vmatprep.subr.mxu0 0.0
  %1327 = vmatpush1.msra.mxu0 %v1279
  %1328 = vmatprep.subr.mxu0 0.0
  %1329 = vmatpush1.msra.mxu0 %v1281
  %1330 = vmatprep.subr.mxu0 0.0
  %1331 = vmatpush1.msra.mxu0 0.0
  %1332 = vmatprep.subr.mxu0 0.0
  %1333 = vmatpush1.msra.mxu0 0.0
  %1334 = vmatprep.subr.mxu0 0.0
  %1335 = vmatpush1.msra.mxu0 0.0
  %1336 = vmatprep.subr.mxu0 0.0
  %1337 = vmatpush1.msra.mxu0 0.0
  %1338 = vmatprep.subr.mxu0 0.0
  %1339 = vmatpush1.msra.mxu0 0.0
  %1340 = vmatprep.subr.mxu0 0.0
  %1341 = vmatpush1.msra.mxu0 0.0
  %1342 = vmatprep.subr.mxu0 0.0
  %1343 = vmatpush1.msra.mxu0 0.0
  %1344 = vmatprep.subr.mxu0 0.0
  %1345 = vmatpush1.msra.mxu0 0.0
  %1346 = vmatprep.subr.mxu0 0.0
  %1347 = vmatpush1.msra.mxu0 0.0
  %1348 = vmatprep.subr.mxu0 0.0
  %1349 = vmatpush1.msra.mxu0 0.0
  %1350 = vmatprep.subr.mxu0 0.0
  %1351 = vmatpush1.msra.mxu0 0.0
  %1352 = vmatprep.subr.mxu0 0.0
  %1353 = vmatpush1.msra.mxu0 0.0
  %1354 = vmatprep.subr.mxu0 0.0
  %1355 = vmatpush1.msra.mxu0 0.0
  %1356 = vmatprep.subr.mxu0 0.0
  %1357 = vmatpush1.msra.mxu0 0.0
  %1358 = vmatprep.subr.mxu0 0.0
  %1359 = vmatpush1.msra.mxu0 0.0
  %1360 = vmatprep.subr.mxu0 0.0
  %1361 = vmatpush1.msra.mxu0 0.0
  %1362 = vmatprep.subr.mxu0 0.0
  %1363 = vmatpush1.msra.mxu0 0.0
  %1364 = vmatprep.subr.mxu0 0.0
  %1365 = vmatpush1.msra.mxu0 0.0
  %1366 = vmatprep.subr.mxu0 0.0
  %1367 = vmatpush1.msra.mxu0 0.0
  %1368 = vmatprep.subr.mxu0 0.0
  %1369 = vmatpush1.msra.mxu0 0.0
  %1370 = vmatprep.subr.mxu0 0.0
  %1371 = vmatpush1.msra.mxu0 0.0
  %1372 = vmatprep.subr.mxu0 0.0
  %1373 = vmatpush1.msra.mxu0 0.0
  %1374 = vmatprep.subr.mxu0 0.0
  %1375 = vmatpush1.msra.mxu0 0.0
  %1376 = vmatprep.subr.mxu0 0.0
  %1377 = vmatpush1.msra.mxu0 0.0
  %1378 = vmatprep.mubr.f32.mxu0 0.0
  %1379 = vmatmul.mubr.f32.gmra.mrb[0].mxu0 %v1291
  %v1380 = vpop.f32.mrb[0].mxu0
  %v1381 = vadd.f32 0.0, %v1380
  %v1382 = vpop.f32.mrb[0].mxu0
  %1383 = vmatprep.mubr.f32.mxu0 0.0
  %1384 = vmatmul.mubr.f32.gmra.mrb[0].mxu0 %v1294
  %v1385 = vpop.f32.mrb[0].mxu0
  %v1386 = vadd.f32 0.0, %v1385
  %v1387 = vpop.f32.mrb[0].mxu0
  %1388 = vmatprep.mubr.f32.mxu0 0.0
  %1389 = vmatmul.mubr.f32.gmra.mrb[0].mxu0 %v1297
  %v1390 = vpop.f32.mrb[0].mxu0
  %v1391 = vadd.f32 0.0, %v1390
  %v1392 = vpop.f32.mrb[0].mxu0
  %1393 = vmatprep.mubr.f32.mxu0 0.0
  %1394 = vmatmul.mubr.f32.gmra.mrb[0].mxu0 %v1300
  %v1395 = vpop.f32.mrb[0].mxu0
  %v1396 = vadd.f32 0.0, %v1395
  %v1397 = vpop.f32.mrb[0].mxu0
  %1398 = vmatprep.mubr.f32.mxu0 0.0
  %1399 = vmatmul.mubr.f32.gmra.mrb[0].mxu0 %v1303
  %v1400 = vpop.f32.mrb[0].mxu0
  %v1401 = vadd.f32 0.0, %v1400
  %v1402 = vpop.f32.mrb[0].mxu0
  %1403 = vmatprep.mubr.f32.mxu0 0.0
  %1404 = vmatmul.mubr.f32.gmra.mrb[0].mxu0 %v1306
  %v1405 = vpop.f32.mrb[0].mxu0
  %v1406 = vadd.f32 0.0, %v1405
  %v1407 = vpop.f32.mrb[0].mxu0
  %1408 = vmatprep.mubr.f32.mxu0 0.0
  %1409 = vmatmul.mubr.f32.gmra.mrb[0].mxu0 %v1309
  %v1410 = vpop.f32.mrb[0].mxu0
  %v1411 = vadd.f32 0.0, %v1410
  %v1412 = vpop.f32.mrb[0].mxu0
  %1413 = vmatprep.mubr.f32.mxu0 0.0
  %1414 = vmatmul.mubr.f32.gmra.mrb[0].mxu0 %v1312
  %v1415 = vpop.f32.mrb[0].mxu0
  %v1416 = vadd.f32 0.0, %v1415
  %v1417 = vpop.f32.mrb[0].mxu0
  %1418 = vdwg.mxu0
  %v1420 = vsel %vm621, %v1381, 0
  %v1423 = vsel %vm621, %v1386, 0
  %v1426 = vsel %vm621, %v1391, 0
  %v1429 = vsel %vm621, %v1396, 0
  %v1432 = vsel %vm621, %v1401, 0
  %v1435 = vsel %vm621, %v1406, 0
  %v1438 = vsel %vm621, %v1411, 0
  %v1441 = vsel %vm621, %v1416, 0
  %1443 = vmatprep.subr.mxu0 0.0
  %1444 = vmatpush1.msra.mxu0 %v594
  %1445 = vmatprep.subr.mxu0 0.0
  %1446 = vmatpush1.msra.mxu0 0.0
  %1447 = vmatprep.subr.mxu0 0.0
  %1448 = vmatpush1.msra.mxu0 0.0
  %1449 = vmatprep.subr.mxu0 0.0
  %1450 = vmatpush1.msra.mxu0 0.0
  %1451 = vmatprep.subr.mxu0 0.0
  %1452 = vmatpush1.msra.mxu0 0.0
  %1453 = vmatprep.subr.mxu0 0.0
  %1454 = vmatpush1.msra.mxu0 0.0
  %1455 = vmatprep.subr.mxu0 0.0
  %1456 = vmatpush1.msra.mxu0 0.0
  %1457 = vmatprep.subr.mxu0 0.0
  %1458 = vmatpush1.msra.mxu0 0.0
  %1459 = vmatprep.subr.mxu0 0.0
  %1460 = vmatpush1.msra.mxu0 0.0
  %1461 = vmatprep.subr.mxu0 0.0
  %1462 = vmatpush1.msra.mxu0 0.0
  %1463 = vmatprep.subr.mxu0 0.0
  %1464 = vmatpush1.msra.mxu0 0.0
  %1465 = vmatprep.subr.mxu0 0.0
  %1466 = vmatpush1.msra.mxu0 0.0
  %1467 = vmatprep.subr.mxu0 0.0
  %1468 = vmatpush1.msra.mxu0 0.0
  %1469 = vmatprep.subr.mxu0 0.0
  %1470 = vmatpush1.msra.mxu0 0.0
  %1471 = vmatprep.subr.mxu0 0.0
  %1472 = vmatpush1.msra.mxu0 0.0
  %1473 = vmatprep.subr.mxu0 0.0
  %1474 = vmatpush1.msra.mxu0 0.0
  %1475 = vmatprep.subr.mxu0 0.0
  %1476 = vmatpush1.msra.mxu0 0.0
  %1477 = vmatprep.subr.mxu0 0.0
  %1478 = vmatpush1.msra.mxu0 0.0
  %1479 = vmatprep.subr.mxu0 0.0
  %1480 = vmatpush1.msra.mxu0 0.0
  %1481 = vmatprep.subr.mxu0 0.0
  %1482 = vmatpush1.msra.mxu0 0.0
  %1483 = vmatprep.subr.mxu0 0.0
  %1484 = vmatpush1.msra.mxu0 0.0
  %1485 = vmatprep.subr.mxu0 0.0
  %1486 = vmatpush1.msra.mxu0 0.0
  %1487 = vmatprep.subr.mxu0 0.0
  %1488 = vmatpush1.msra.mxu0 0.0
  %1489 = vmatprep.subr.mxu0 0.0
  %1490 = vmatpush1.msra.mxu0 0.0
  %1491 = vmatprep.subr.mxu0 0.0
  %1492 = vmatpush1.msra.mxu0 0.0
  %1493 = vmatprep.subr.mxu0 0.0
  %1494 = vmatpush1.msra.mxu0 0.0
  %1495 = vmatprep.subr.mxu0 0.0
  %1496 = vmatpush1.msra.mxu0 0.0
  %1497 = vmatprep.subr.mxu0 0.0
  %1498 = vmatpush1.msra.mxu0 0.0
  %1499 = vmatprep.subr.mxu0 0.0
  %1500 = vmatpush1.msra.mxu0 0.0
  %1501 = vmatprep.subr.mxu0 0.0
  %1502 = vmatpush1.msra.mxu0 0.0
  %1503 = vmatprep.subr.mxu0 0.0
  %1504 = vmatpush1.msra.mxu0 0.0
  %1505 = vmatprep.subr.mxu0 0.0
  %1506 = vmatpush1.msra.mxu0 0.0
  %1507 = vmatprep.mubr.f32.mxu0 0.0
  %1508 = vmatmul.mubr.f32.gmra.mrb[0].mxu0 %v1420
  %v1509 = vpop.f32.mrb[0].mxu0
  %v1510 = vadd.f32 0.0, %v1509
  %v1511 = vpop.f32.mrb[0].mxu0
  %1512 = vmatprep.mubr.f32.mxu0 0.0
  %1513 = vmatmul.mubr.f32.gmra.mrb[0].mxu0 %v1423
  %v1514 = vpop.f32.mrb[0].mxu0
  %v1515 = vadd.f32 0.0, %v1514
  %v1516 = vpop.f32.mrb[0].mxu0
  %1517 = vmatprep.mubr.f32.mxu0 0.0
  %1518 = vmatmul.mubr.f32.gmra.mrb[0].mxu0 %v1426
  %v1519 = vpop.f32.mrb[0].mxu0
  %v1520 = vadd.f32 0.0, %v1519
  %v1521 = vpop.f32.mrb[0].mxu0
  %1522 = vmatprep.mubr.f32.mxu0 0.0
  %1523 = vmatmul.mubr.f32.gmra.mrb[0].mxu0 %v1429
  %v1524 = vpop.f32.mrb[0].mxu0
  %v1525 = vadd.f32 0.0, %v1524
  %v1526 = vpop.f32.mrb[0].mxu0
  %1527 = vmatprep.mubr.f32.mxu0 0.0
  %1528 = vmatmul.mubr.f32.gmra.mrb[0].mxu0 %v1432
  %v1529 = vpop.f32.mrb[0].mxu0
  %v1530 = vadd.f32 0.0, %v1529
  %v1531 = vpop.f32.mrb[0].mxu0
  %1532 = vmatprep.mubr.f32.mxu0 0.0
  %1533 = vmatmul.mubr.f32.gmra.mrb[0].mxu0 %v1435
  %v1534 = vpop.f32.mrb[0].mxu0
  %v1535 = vadd.f32 0.0, %v1534
  %v1536 = vpop.f32.mrb[0].mxu0
  %1537 = vmatprep.mubr.f32.mxu0 0.0
  %1538 = vmatmul.mubr.f32.gmra.mrb[0].mxu0 %v1438
  %v1539 = vpop.f32.mrb[0].mxu0
  %v1540 = vadd.f32 0.0, %v1539
  %v1541 = vpop.f32.mrb[0].mxu0
  %1542 = vmatprep.mubr.f32.mxu0 0.0
  %1543 = vmatmul.mubr.f32.gmra.mrb[0].mxu0 %v1441
  %v1544 = vpop.f32.mrb[0].mxu0
  %v1545 = vadd.f32 0.0, %v1544
  %v1546 = vpop.f32.mrb[0].mxu0
  %1547 = vdwg.mxu0
  %v1549 = vsel %vm621, %v971, 0
  %v1552 = vsel %vm621, %v976, 0
  %v1555 = vsel %vm621, %v981, 0
  %v1558 = vsel %vm621, %v986, 0
  %v1561 = vsel %vm621, %v991, 0
  %v1564 = vsel %vm621, %v996, 0
  %v1567 = vsel %vm621, %v1001, 0
  %v1570 = vsel %vm621, %v1006, 0
  %1572 = vmatprep.subr.mxu0 0.0
  %1573 = vmatpush1.msra.mxu0 %v593
  %1574 = vmatprep.subr.mxu0 0.0
  %1575 = vmatpush1.msra.mxu0 0.0
  %1576 = vmatprep.subr.mxu0 0.0
  %1577 = vmatpush1.msra.mxu0 0.0
  %1578 = vmatprep.subr.mxu0 0.0
  %1579 = vmatpush1.msra.mxu0 0.0
  %1580 = vmatprep.subr.mxu0 0.0
  %1581 = vmatpush1.msra.mxu0 0.0
  %1582 = vmatprep.subr.mxu0 0.0
  %1583 = vmatpush1.msra.mxu0 0.0
  %1584 = vmatprep.subr.mxu0 0.0
  %1585 = vmatpush1.msra.mxu0 0.0
  %1586 = vmatprep.subr.mxu0 0.0
  %1587 = vmatpush1.msra.mxu0 0.0
  %1588 = vmatprep.subr.mxu0 0.0
  %1589 = vmatpush1.msra.mxu0 0.0
  %1590 = vmatprep.subr.mxu0 0.0
  %1591 = vmatpush1.msra.mxu0 0.0
  %1592 = vmatprep.subr.mxu0 0.0
  %1593 = vmatpush1.msra.mxu0 0.0
  %1594 = vmatprep.subr.mxu0 0.0
  %1595 = vmatpush1.msra.mxu0 0.0
  %1596 = vmatprep.subr.mxu0 0.0
  %1597 = vmatpush1.msra.mxu0 0.0
  %1598 = vmatprep.subr.mxu0 0.0
  %1599 = vmatpush1.msra.mxu0 0.0
  %1600 = vmatprep.subr.mxu0 0.0
  %1601 = vmatpush1.msra.mxu0 0.0
  %1602 = vmatprep.subr.mxu0 0.0
  %1603 = vmatpush1.msra.mxu0 0.0
  %1604 = vmatprep.subr.mxu0 0.0
  %1605 = vmatpush1.msra.mxu0 0.0
  %1606 = vmatprep.subr.mxu0 0.0
  %1607 = vmatpush1.msra.mxu0 0.0
  %1608 = vmatprep.subr.mxu0 0.0
  %1609 = vmatpush1.msra.mxu0 0.0
  %1610 = vmatprep.subr.mxu0 0.0
  %1611 = vmatpush1.msra.mxu0 0.0
  %1612 = vmatprep.subr.mxu0 0.0
  %1613 = vmatpush1.msra.mxu0 0.0
  %1614 = vmatprep.subr.mxu0 0.0
  %1615 = vmatpush1.msra.mxu0 0.0
  %1616 = vmatprep.subr.mxu0 0.0
  %1617 = vmatpush1.msra.mxu0 0.0
  %1618 = vmatprep.subr.mxu0 0.0
  %1619 = vmatpush1.msra.mxu0 0.0
  %1620 = vmatprep.subr.mxu0 0.0
  %1621 = vmatpush1.msra.mxu0 0.0
  %1622 = vmatprep.subr.mxu0 0.0
  %1623 = vmatpush1.msra.mxu0 0.0
  %1624 = vmatprep.subr.mxu0 0.0
  %1625 = vmatpush1.msra.mxu0 0.0
  %1626 = vmatprep.subr.mxu0 0.0
  %1627 = vmatpush1.msra.mxu0 0.0
  %1628 = vmatprep.subr.mxu0 0.0
  %1629 = vmatpush1.msra.mxu0 0.0
  %1630 = vmatprep.subr.mxu0 0.0
  %1631 = vmatpush1.msra.mxu0 0.0
  %1632 = vmatprep.subr.mxu0 0.0
  %1633 = vmatpush1.msra.mxu0 0.0
  %1634 = vmatprep.subr.mxu0 0.0
  %1635 = vmatpush1.msra.mxu0 0.0
  %1636 = vmatprep.mubr.f32.mxu0 0.0
  %1637 = vmatmul.mubr.f32.gmra.mrb[0].mxu0 %v1549
  %v1638 = vpop.f32.mrb[0].mxu0
  %v1639 = vadd.f32 %v1510, %v1638
  %v1640 = vpop.f32.mrb[0].mxu0
  %1641 = vmatprep.mubr.f32.mxu0 0.0
  %1642 = vmatmul.mubr.f32.gmra.mrb[0].mxu0 %v1552
  %v1643 = vpop.f32.mrb[0].mxu0
  %v1644 = vadd.f32 %v1515, %v1643
  %v1645 = vpop.f32.mrb[0].mxu0
  %1646 = vmatprep.mubr.f32.mxu0 0.0
  %1647 = vmatmul.mubr.f32.gmra.mrb[0].mxu0 %v1555
  %v1648 = vpop.f32.mrb[0].mxu0
  %v1649 = vadd.f32 %v1520, %v1648
  %v1650 = vpop.f32.mrb[0].mxu0
  %1651 = vmatprep.mubr.f32.mxu0 0.0
  %1652 = vmatmul.mubr.f32.gmra.mrb[0].mxu0 %v1558
  %v1653 = vpop.f32.mrb[0].mxu0
  %v1654 = vadd.f32 %v1525, %v1653
  %v1655 = vpop.f32.mrb[0].mxu0
  %1656 = vmatprep.mubr.f32.mxu0 0.0
  %1657 = vmatmul.mubr.f32.gmra.mrb[0].mxu0 %v1561
  %v1658 = vpop.f32.mrb[0].mxu0
  %v1659 = vadd.f32 %v1530, %v1658
  %v1660 = vpop.f32.mrb[0].mxu0
  %1661 = vmatprep.mubr.f32.mxu0 0.0
  %1662 = vmatmul.mubr.f32.gmra.mrb[0].mxu0 %v1564
  %v1663 = vpop.f32.mrb[0].mxu0
  %v1664 = vadd.f32 %v1535, %v1663
  %v1665 = vpop.f32.mrb[0].mxu0
  %1666 = vmatprep.mubr.f32.mxu0 0.0
  %1667 = vmatmul.mubr.f32.gmra.mrb[0].mxu0 %v1567
  %v1668 = vpop.f32.mrb[0].mxu0
  %v1669 = vadd.f32 %v1540, %v1668
  %v1670 = vpop.f32.mrb[0].mxu0
  %1671 = vmatprep.mubr.f32.mxu0 0.0
  %1672 = vmatmul.mubr.f32.gmra.mrb[0].mxu0 %v1570
  %v1673 = vpop.f32.mrb[0].mxu0
  %v1674 = vadd.f32 %v1545, %v1673
  %v1675 = vpop.f32.mrb[0].mxu0
  %1676 = vdwg.mxu0
  %1677 = vrot.lane.b32.xlu0 %v577, 112
  %v1678 = vpop.permute.xlu0 %1677
  %1679 = vrot.lane.b32.xlu0 %v578, 112
  %v1680 = vpop.permute.xlu0 %1679
  %1681 = vrot.lane.b32.xlu0 %v579, 112
  %v1682 = vpop.permute.xlu0 %1681
  %1683 = vrot.lane.b32.xlu0 %v580, 112
  %v1684 = vpop.permute.xlu0 %1683
  %1685 = vrot.lane.b32.xlu0 %v581, 112
  %v1686 = vpop.permute.xlu0 %1685
  %1687 = vrot.lane.b32.xlu0 %v582, 112
  %v1688 = vpop.permute.xlu0 %1687
  %1689 = vrot.lane.b32.xlu0 %v583, 112
  %v1690 = vpop.permute.xlu0 %1689
  %1691 = vrot.lane.b32.xlu0 %v584, 112
  %v1692 = vpop.permute.xlu0 %1691
  %1693 = vrot.lane.b32.xlu0 %v499, 80
  %v1694 = vpop.permute.xlu0 %1693
  %1695 = vrot.lane.b32.xlu0 %v504, 80
  %v1696 = vpop.permute.xlu0 %1695
  %1697 = vrot.lane.b32.xlu0 %v509, 80
  %v1698 = vpop.permute.xlu0 %1697
  %1699 = vrot.lane.b32.xlu0 %v514, 80
  %v1700 = vpop.permute.xlu0 %1699
  %1701 = vrot.lane.b32.xlu0 %v519, 80
  %v1702 = vpop.permute.xlu0 %1701
  %1703 = vrot.lane.b32.xlu0 %v524, 80
  %v1704 = vpop.permute.xlu0 %1703
  %1705 = vrot.lane.b32.xlu0 %v529, 80
  %v1706 = vpop.permute.xlu0 %1705
  %1707 = vrot.lane.b32.xlu0 %v534, 80
  %v1708 = vpop.permute.xlu0 %1707
  %v1709 = vsel %vm621, %v1678, 0
  %v1711 = vsel %vm621, %v1680, 0
  %v1713 = vsel %vm621, %v1682, 0
  %v1715 = vsel %vm621, %v1684, 0
  %v1717 = vsel %vm621, %v1686, 0
  %v1719 = vsel %vm621, %v1688, 0
  %v1721 = vsel %vm621, %v1690, 0
  %v1723 = vsel %vm621, %v1692, 0
  %v1725 = vsel %vm621, %v1694, 0
  %v1727 = vsel %vm621, %v1696, 0
  %v1729 = vsel %vm621, %v1698, 0
  %v1731 = vsel %vm621, %v1700, 0
  %v1733 = vsel %vm621, %v1702, 0
  %v1735 = vsel %vm621, %v1704, 0
  %v1737 = vsel %vm621, %v1706, 0
  %v1739 = vsel %vm621, %v1708, 0
  %1741 = vmatprep.subr.mxu0 0.0
  %1742 = vmatpush1.xpose.msra.mxu0 %v1725
  %1743 = vmatprep.subr.mxu0 0.0
  %1744 = vmatpush1.xpose.msra.mxu0 %v1727
  %1745 = vmatprep.subr.mxu0 0.0
  %1746 = vmatpush1.xpose.msra.mxu0 %v1729
  %1747 = vmatprep.subr.mxu0 0.0
  %1748 = vmatpush1.xpose.msra.mxu0 %v1731
  %1749 = vmatprep.subr.mxu0 0.0
  %1750 = vmatpush1.xpose.msra.mxu0 %v1733
  %1751 = vmatprep.subr.mxu0 0.0
  %1752 = vmatpush1.xpose.msra.mxu0 %v1735
  %1753 = vmatprep.subr.mxu0 0.0
  %1754 = vmatpush1.xpose.msra.mxu0 %v1737
  %1755 = vmatprep.subr.mxu0 0.0
  %1756 = vmatpush1.xpose.msra.mxu0 %v1739
  %1757 = vmatprep.subr.mxu0 0.0
  %1758 = vmatpush1.xpose.msra.mxu0 0.0
  %1759 = vmatprep.subr.mxu0 0.0
  %1760 = vmatpush1.xpose.msra.mxu0 0.0
  %1761 = vmatprep.subr.mxu0 0.0
  %1762 = vmatpush1.xpose.msra.mxu0 0.0
  %1763 = vmatprep.subr.mxu0 0.0
  %1764 = vmatpush1.xpose.msra.mxu0 0.0
  %1765 = vmatprep.subr.mxu0 0.0
  %1766 = vmatpush1.xpose.msra.mxu0 0.0
  %1767 = vmatprep.subr.mxu0 0.0
  %1768 = vmatpush1.xpose.msra.mxu0 0.0
  %1769 = vmatprep.subr.mxu0 0.0
  %1770 = vmatpush1.xpose.msra.mxu0 0.0
  %1771 = vmatprep.subr.mxu0 0.0
  %1772 = vmatpush1.xpose.msra.mxu0 0.0
  %1773 = vmatprep.subr.mxu0 0.0
  %1774 = vmatpush1.xpose.msra.mxu0 0.0
  %1775 = vmatprep.subr.mxu0 0.0
  %1776 = vmatpush1.xpose.msra.mxu0 0.0
  %1777 = vmatprep.subr.mxu0 0.0
  %1778 = vmatpush1.xpose.msra.mxu0 0.0
  %1779 = vmatprep.subr.mxu0 0.0
  %1780 = vmatpush1.xpose.msra.mxu0 0.0
  %1781 = vmatprep.subr.mxu0 0.0
  %1782 = vmatpush1.xpose.msra.mxu0 0.0
  %1783 = vmatprep.subr.mxu0 0.0
  %1784 = vmatpush1.xpose.msra.mxu0 0.0
  %1785 = vmatprep.subr.mxu0 0.0
  %1786 = vmatpush1.xpose.msra.mxu0 0.0
  %1787 = vmatprep.subr.mxu0 0.0
  %1788 = vmatpush1.xpose.msra.mxu0 0.0
  %1789 = vmatprep.subr.mxu0 0.0
  %1790 = vmatpush1.xpose.msra.mxu0 0.0
  %1791 = vmatprep.subr.mxu0 0.0
  %1792 = vmatpush1.xpose.msra.mxu0 0.0
  %1793 = vmatprep.subr.mxu0 0.0
  %1794 = vmatpush1.xpose.msra.mxu0 0.0
  %1795 = vmatprep.subr.mxu0 0.0
  %1796 = vmatpush1.xpose.msra.mxu0 0.0
  %1797 = vmatprep.subr.mxu0 0.0
  %1798 = vmatpush1.xpose.msra.mxu0 0.0
  %1799 = vmatprep.subr.mxu0 0.0
  %1800 = vmatpush1.xpose.msra.mxu0 0.0
  %1801 = vmatprep.subr.mxu0 0.0
  %1802 = vmatpush1.xpose.msra.mxu0 0.0
  %1803 = vmatprep.subr.mxu0 0.0
  %1804 = vmatpush1.xpose.msra.mxu0 0.0
  %1805 = vmatprep.mubr.f32.mxu0 0.0
  %1806 = vmatmul.mubr.f32.gmra.mrb[0].mxu0 %v1709
  %v1807 = vpop.f32.mrb[0].mxu0
  %v1808 = vadd.f32 0.0, %v1807
  %v1809 = vpop.f32.mrb[0].mxu0
  %1810 = vmatprep.mubr.f32.mxu0 0.0
  %1811 = vmatmul.mubr.f32.gmra.mrb[0].mxu0 %v1711
  %v1812 = vpop.f32.mrb[0].mxu0
  %v1813 = vadd.f32 0.0, %v1812
  %v1814 = vpop.f32.mrb[0].mxu0
  %1815 = vmatprep.mubr.f32.mxu0 0.0
  %1816 = vmatmul.mubr.f32.gmra.mrb[0].mxu0 %v1713
  %v1817 = vpop.f32.mrb[0].mxu0
  %v1818 = vadd.f32 0.0, %v1817
  %v1819 = vpop.f32.mrb[0].mxu0
  %1820 = vmatprep.mubr.f32.mxu0 0.0
  %1821 = vmatmul.mubr.f32.gmra.mrb[0].mxu0 %v1715
  %v1822 = vpop.f32.mrb[0].mxu0
  %v1823 = vadd.f32 0.0, %v1822
  %v1824 = vpop.f32.mrb[0].mxu0
  %1825 = vmatprep.mubr.f32.mxu0 0.0
  %1826 = vmatmul.mubr.f32.gmra.mrb[0].mxu0 %v1717
  %v1827 = vpop.f32.mrb[0].mxu0
  %v1828 = vadd.f32 0.0, %v1827
  %v1829 = vpop.f32.mrb[0].mxu0
  %1830 = vmatprep.mubr.f32.mxu0 0.0
  %1831 = vmatmul.mubr.f32.gmra.mrb[0].mxu0 %v1719
  %v1832 = vpop.f32.mrb[0].mxu0
  %v1833 = vadd.f32 0.0, %v1832
  %v1834 = vpop.f32.mrb[0].mxu0
  %1835 = vmatprep.mubr.f32.mxu0 0.0
  %1836 = vmatmul.mubr.f32.gmra.mrb[0].mxu0 %v1721
  %v1837 = vpop.f32.mrb[0].mxu0
  %v1838 = vadd.f32 0.0, %v1837
  %v1839 = vpop.f32.mrb[0].mxu0
  %1840 = vmatprep.mubr.f32.mxu0 0.0
  %1841 = vmatmul.mubr.f32.gmra.mrb[0].mxu0 %v1723
  %v1842 = vpop.f32.mrb[0].mxu0
  %v1843 = vadd.f32 0.0, %v1842
  %v1844 = vpop.f32.mrb[0].mxu0
  %1845 = vdwg.mxu0
  %v1846 = vsel %vm767, %v1808, -inf
  %1847 = vmax.xlane.f32.xlu0 %v1846
  %v1848 = vpop.xlane.xlu0 %1847
  %v1849 = vsel %vm767, %v1813, -inf
  %1850 = vmax.xlane.f32.xlu0 %v1849
  %v1851 = vpop.xlane.xlu0 %1850
  %v1852 = vsel %vm767, %v1818, -inf
  %1853 = vmax.xlane.f32.xlu0 %v1852
  %v1854 = vpop.xlane.xlu0 %1853
  %v1855 = vsel %vm767, %v1823, -inf
  %1856 = vmax.xlane.f32.xlu0 %v1855
  %v1857 = vpop.xlane.xlu0 %1856
  %v1858 = vsel %vm767, %v1828, -inf
  %1859 = vmax.xlane.f32.xlu0 %v1858
  %v1860 = vpop.xlane.xlu0 %1859
  %v1861 = vsel %vm767, %v1833, -inf
  %1862 = vmax.xlane.f32.xlu0 %v1861
  %v1863 = vpop.xlane.xlu0 %1862
  %v1864 = vsel %vm767, %v1838, -inf
  %1865 = vmax.xlane.f32.xlu0 %v1864
  %v1866 = vpop.xlane.xlu0 %1865
  %v1867 = vsel %vm767, %v1843, -inf
  %1868 = vmax.xlane.f32.xlu0 %v1867
  %v1869 = vpop.xlane.xlu0 %1868
  %v1870 = vsub.f32 %v1808, %v1848
  %v1871 = vsub.f32 %v1813, %v1851
  %v1872 = vsub.f32 %v1818, %v1854
  %v1873 = vsub.f32 %v1823, %v1857
  %v1874 = vsub.f32 %v1828, %v1860
  %v1875 = vsub.f32 %v1833, %v1863
  %v1876 = vsub.f32 %v1838, %v1866
  %v1877 = vsub.f32 %v1843, %v1869
  %v1878 = vmul.f32 %v1870, 1.442695
  %v1879 = vpow.pop %v1878
  %v1880 = vmul.f32 %v1871, 1.442695
  %v1881 = vpow.pop %v1880
  %v1882 = vmul.f32 %v1872, 1.442695
  %v1883 = vpow.pop %v1882
  %v1884 = vmul.f32 %v1873, 1.442695
  %v1885 = vpow.pop %v1884
  %v1886 = vmul.f32 %v1874, 1.442695
  %v1887 = vpow.pop %v1886
  %v1888 = vmul.f32 %v1875, 1.442695
  %v1889 = vpow.pop %v1888
  %v1890 = vmul.f32 %v1876, 1.442695
  %v1891 = vpow.pop %v1890
  %v1892 = vmul.f32 %v1877, 1.442695
  %v1893 = vpow.pop %v1892
  %v1894 = vsel %vm767, %v1879, 0.0
  %1895 = vadd.xlane.f32.xlu0 %v1894
  %v1896 = vpop.xlane.xlu0 %1895
  %v1897 = vsel %vm767, %v1881, 0.0
  %1898 = vadd.xlane.f32.xlu0 %v1897
  %v1899 = vpop.xlane.xlu0 %1898
  %v1900 = vsel %vm767, %v1883, 0.0
  %1901 = vadd.xlane.f32.xlu0 %v1900
  %v1902 = vpop.xlane.xlu0 %1901
  %v1903 = vsel %vm767, %v1885, 0.0
  %1904 = vadd.xlane.f32.xlu0 %v1903
  %v1905 = vpop.xlane.xlu0 %1904
  %v1906 = vsel %vm767, %v1887, 0.0
  %1907 = vadd.xlane.f32.xlu0 %v1906
  %v1908 = vpop.xlane.xlu0 %1907
  %v1909 = vsel %vm767, %v1889, 0.0
  %1910 = vadd.xlane.f32.xlu0 %v1909
  %v1911 = vpop.xlane.xlu0 %1910
  %v1912 = vsel %vm767, %v1891, 0.0
  %1913 = vadd.xlane.f32.xlu0 %v1912
  %v1914 = vpop.xlane.xlu0 %1913
  %v1915 = vsel %vm767, %v1893, 0.0
  %1916 = vadd.xlane.f32.xlu0 %v1915
  %v1917 = vpop.xlane.xlu0 %1916
  %v1918 = vrcp.pop %v1896
  %v1919 = vmul.f32 %v1879, %v1918
  %v1920 = vrcp.pop %v1899
  %v1921 = vmul.f32 %v1881, %v1920
  %v1922 = vrcp.pop %v1902
  %v1923 = vmul.f32 %v1883, %v1922
  %v1924 = vrcp.pop %v1905
  %v1925 = vmul.f32 %v1885, %v1924
  %v1926 = vrcp.pop %v1908
  %v1927 = vmul.f32 %v1887, %v1926
  %v1928 = vrcp.pop %v1911
  %v1929 = vmul.f32 %v1889, %v1928
  %v1930 = vrcp.pop %v1914
  %v1931 = vmul.f32 %v1891, %v1930
  %v1932 = vrcp.pop %v1917
  %v1933 = vmul.f32 %v1893, %v1932
  %1934 = vrot.lane.b32.xlu0 %v499, 48
  %v1935 = vpop.permute.xlu0 %1934
  %1936 = vrot.lane.b32.xlu0 %v504, 48
  %v1937 = vpop.permute.xlu0 %1936
  %1938 = vrot.lane.b32.xlu0 %v509, 48
  %v1939 = vpop.permute.xlu0 %1938
  %1940 = vrot.lane.b32.xlu0 %v514, 48
  %v1941 = vpop.permute.xlu0 %1940
  %1942 = vrot.lane.b32.xlu0 %v519, 48
  %v1943 = vpop.permute.xlu0 %1942
  %1944 = vrot.lane.b32.xlu0 %v524, 48
  %v1945 = vpop.permute.xlu0 %1944
  %1946 = vrot.lane.b32.xlu0 %v529, 48
  %v1947 = vpop.permute.xlu0 %1946
  %1948 = vrot.lane.b32.xlu0 %v534, 48
  %v1949 = vpop.permute.xlu0 %1948
  %v1959 = vsel %vm767, %v1919, 0
  %v1962 = vsel %vm767, %v1921, 0
  %v1965 = vsel %vm767, %v1923, 0
  %v1968 = vsel %vm767, %v1925, 0
  %v1971 = vsel %vm767, %v1927, 0
  %v1974 = vsel %vm767, %v1929, 0
  %v1977 = vsel %vm767, %v1931, 0
  %v1980 = vsel %vm767, %v1933, 0
  %1982 = vmatprep.subr.mxu0 0.0
  %1983 = vmatpush1.msra.mxu0 %v1935
  %1984 = vmatprep.subr.mxu0 0.0
  %1985 = vmatpush1.msra.mxu0 %v1937
  %1986 = vmatprep.subr.mxu0 0.0
  %1987 = vmatpush1.msra.mxu0 %v1939
  %1988 = vmatprep.subr.mxu0 0.0
  %1989 = vmatpush1.msra.mxu0 %v1941
  %1990 = vmatprep.subr.mxu0 0.0
  %1991 = vmatpush1.msra.mxu0 %v1943
  %1992 = vmatprep.subr.mxu0 0.0
  %1993 = vmatpush1.msra.mxu0 %v1945
  %1994 = vmatprep.subr.mxu0 0.0
  %1995 = vmatpush1.msra.mxu0 %v1947
  %1996 = vmatprep.subr.mxu0 0.0
  %1997 = vmatpush1.msra.mxu0 %v1949
  %1998 = vmatprep.subr.mxu0 0.0
  %1999 = vmatpush1.msra.mxu0 0.0
  %2000 = vmatprep.subr.mxu0 0.0
  %2001 = vmatpush1.msra.mxu0 0.0
  %2002 = vmatprep.subr.mxu0 0.0
  %2003 = vmatpush1.msra.mxu0 0.0
  %2004 = vmatprep.subr.mxu0 0.0
  %2005 = vmatpush1.msra.mxu0 0.0
  %2006 = vmatprep.subr.mxu0 0.0
  %2007 = vmatpush1.msra.mxu0 0.0
  %2008 = vmatprep.subr.mxu0 0.0
  %2009 = vmatpush1.msra.mxu0 0.0
  %2010 = vmatprep.subr.mxu0 0.0
  %2011 = vmatpush1.msra.mxu0 0.0
  %2012 = vmatprep.subr.mxu0 0.0
  %2013 = vmatpush1.msra.mxu0 0.0
  %2014 = vmatprep.subr.mxu0 0.0
  %2015 = vmatpush1.msra.mxu0 0.0
  %2016 = vmatprep.subr.mxu0 0.0
  %2017 = vmatpush1.msra.mxu0 0.0
  %2018 = vmatprep.subr.mxu0 0.0
  %2019 = vmatpush1.msra.mxu0 0.0
  %2020 = vmatprep.subr.mxu0 0.0
  %2021 = vmatpush1.msra.mxu0 0.0
  %2022 = vmatprep.subr.mxu0 0.0
  %2023 = vmatpush1.msra.mxu0 0.0
  %2024 = vmatprep.subr.mxu0 0.0
  %2025 = vmatpush1.msra.mxu0 0.0
  %2026 = vmatprep.subr.mxu0 0.0
  %2027 = vmatpush1.msra.mxu0 0.0
  %2028 = vmatprep.subr.mxu0 0.0
  %2029 = vmatpush1.msra.mxu0 0.0
  %2030 = vmatprep.subr.mxu0 0.0
  %2031 = vmatpush1.msra.mxu0 0.0
  %2032 = vmatprep.subr.mxu0 0.0
  %2033 = vmatpush1.msra.mxu0 0.0
  %2034 = vmatprep.subr.mxu0 0.0
  %2035 = vmatpush1.msra.mxu0 0.0
  %2036 = vmatprep.subr.mxu0 0.0
  %2037 = vmatpush1.msra.mxu0 0.0
  %2038 = vmatprep.subr.mxu0 0.0
  %2039 = vmatpush1.msra.mxu0 0.0
  %2040 = vmatprep.subr.mxu0 0.0
  %2041 = vmatpush1.msra.mxu0 0.0
  %2042 = vmatprep.subr.mxu0 0.0
  %2043 = vmatpush1.msra.mxu0 0.0
  %2044 = vmatprep.subr.mxu0 0.0
  %2045 = vmatpush1.msra.mxu0 0.0
  %2046 = vmatprep.mubr.f32.mxu0 0.0
  %2047 = vmatmul.mubr.f32.gmra.mrb[0].mxu0 %v1959
  %v2048 = vpop.f32.mrb[0].mxu0
  %v2049 = vadd.f32 0.0, %v2048
  %v2050 = vpop.f32.mrb[0].mxu0
  %2051 = vmatprep.mubr.f32.mxu0 0.0
  %2052 = vmatmul.mubr.f32.gmra.mrb[0].mxu0 %v1962
  %v2053 = vpop.f32.mrb[0].mxu0
  %v2054 = vadd.f32 0.0, %v2053
  %v2055 = vpop.f32.mrb[0].mxu0
  %2056 = vmatprep.mubr.f32.mxu0 0.0
  %2057 = vmatmul.mubr.f32.gmra.mrb[0].mxu0 %v1965
  %v2058 = vpop.f32.mrb[0].mxu0
  %v2059 = vadd.f32 0.0, %v2058
  %v2060 = vpop.f32.mrb[0].mxu0
  %2061 = vmatprep.mubr.f32.mxu0 0.0
  %2062 = vmatmul.mubr.f32.gmra.mrb[0].mxu0 %v1968
  %v2063 = vpop.f32.mrb[0].mxu0
  %v2064 = vadd.f32 0.0, %v2063
  %v2065 = vpop.f32.mrb[0].mxu0
  %2066 = vmatprep.mubr.f32.mxu0 0.0
  %2067 = vmatmul.mubr.f32.gmra.mrb[0].mxu0 %v1971
  %v2068 = vpop.f32.mrb[0].mxu0
  %v2069 = vadd.f32 0.0, %v2068
  %v2070 = vpop.f32.mrb[0].mxu0
  %2071 = vmatprep.mubr.f32.mxu0 0.0
  %2072 = vmatmul.mubr.f32.gmra.mrb[0].mxu0 %v1974
  %v2073 = vpop.f32.mrb[0].mxu0
  %v2074 = vadd.f32 0.0, %v2073
  %v2075 = vpop.f32.mrb[0].mxu0
  %2076 = vmatprep.mubr.f32.mxu0 0.0
  %2077 = vmatmul.mubr.f32.gmra.mrb[0].mxu0 %v1977
  %v2078 = vpop.f32.mrb[0].mxu0
  %v2079 = vadd.f32 0.0, %v2078
  %v2080 = vpop.f32.mrb[0].mxu0
  %2081 = vmatprep.mubr.f32.mxu0 0.0
  %2082 = vmatmul.mubr.f32.gmra.mrb[0].mxu0 %v1980
  %v2083 = vpop.f32.mrb[0].mxu0
  %v2084 = vadd.f32 0.0, %v2083
  %v2085 = vpop.f32.mrb[0].mxu0
  %2086 = vdwg.mxu0
  %v2088 = vsel %vm621, %v2049, 0
  %v2091 = vsel %vm621, %v2054, 0
  %v2094 = vsel %vm621, %v2059, 0
  %v2097 = vsel %vm621, %v2064, 0
  %v2100 = vsel %vm621, %v2069, 0
  %v2103 = vsel %vm621, %v2074, 0
  %v2106 = vsel %vm621, %v2079, 0
  %v2109 = vsel %vm621, %v2084, 0
  %2111 = vmatprep.subr.mxu0 0.0
  %2112 = vmatpush1.msra.mxu0 %v595
  %2113 = vmatprep.subr.mxu0 0.0
  %2114 = vmatpush1.msra.mxu0 0.0
  %2115 = vmatprep.subr.mxu0 0.0
  %2116 = vmatpush1.msra.mxu0 0.0
  %2117 = vmatprep.subr.mxu0 0.0
  %2118 = vmatpush1.msra.mxu0 0.0
  %2119 = vmatprep.subr.mxu0 0.0
  %2120 = vmatpush1.msra.mxu0 0.0
  %2121 = vmatprep.subr.mxu0 0.0
  %2122 = vmatpush1.msra.mxu0 0.0
  %2123 = vmatprep.subr.mxu0 0.0
  %2124 = vmatpush1.msra.mxu0 0.0
  %2125 = vmatprep.subr.mxu0 0.0
  %2126 = vmatpush1.msra.mxu0 0.0
  %2127 = vmatprep.subr.mxu0 0.0
  %2128 = vmatpush1.msra.mxu0 0.0
  %2129 = vmatprep.subr.mxu0 0.0
  %2130 = vmatpush1.msra.mxu0 0.0
  %2131 = vmatprep.subr.mxu0 0.0
  %2132 = vmatpush1.msra.mxu0 0.0
  %2133 = vmatprep.subr.mxu0 0.0
  %2134 = vmatpush1.msra.mxu0 0.0
  %2135 = vmatprep.subr.mxu0 0.0
  %2136 = vmatpush1.msra.mxu0 0.0
  %2137 = vmatprep.subr.mxu0 0.0
  %2138 = vmatpush1.msra.mxu0 0.0
  %2139 = vmatprep.subr.mxu0 0.0
  %2140 = vmatpush1.msra.mxu0 0.0
  %2141 = vmatprep.subr.mxu0 0.0
  %2142 = vmatpush1.msra.mxu0 0.0
  %2143 = vmatprep.subr.mxu0 0.0
  %2144 = vmatpush1.msra.mxu0 0.0
  %2145 = vmatprep.subr.mxu0 0.0
  %2146 = vmatpush1.msra.mxu0 0.0
  %2147 = vmatprep.subr.mxu0 0.0
  %2148 = vmatpush1.msra.mxu0 0.0
  %2149 = vmatprep.subr.mxu0 0.0
  %2150 = vmatpush1.msra.mxu0 0.0
  %2151 = vmatprep.subr.mxu0 0.0
  %2152 = vmatpush1.msra.mxu0 0.0
  %2153 = vmatprep.subr.mxu0 0.0
  %2154 = vmatpush1.msra.mxu0 0.0
  %2155 = vmatprep.subr.mxu0 0.0
  %2156 = vmatpush1.msra.mxu0 0.0
  %2157 = vmatprep.subr.mxu0 0.0
  %2158 = vmatpush1.msra.mxu0 0.0
  %2159 = vmatprep.subr.mxu0 0.0
  %2160 = vmatpush1.msra.mxu0 0.0
  %2161 = vmatprep.subr.mxu0 0.0
  %2162 = vmatpush1.msra.mxu0 0.0
  %2163 = vmatprep.subr.mxu0 0.0
  %2164 = vmatpush1.msra.mxu0 0.0
  %2165 = vmatprep.subr.mxu0 0.0
  %2166 = vmatpush1.msra.mxu0 0.0
  %2167 = vmatprep.subr.mxu0 0.0
  %2168 = vmatpush1.msra.mxu0 0.0
  %2169 = vmatprep.subr.mxu0 0.0
  %2170 = vmatpush1.msra.mxu0 0.0
  %2171 = vmatprep.subr.mxu0 0.0
  %2172 = vmatpush1.msra.mxu0 0.0
  %2173 = vmatprep.subr.mxu0 0.0
  %2174 = vmatpush1.msra.mxu0 0.0
  %2175 = vmatprep.mubr.f32.mxu0 0.0
  %2176 = vmatmul.mubr.f32.gmra.mrb[0].mxu0 %v2088
  %v2177 = vpop.f32.mrb[0].mxu0
  %v2178 = vadd.f32 0.0, %v2177
  %v2179 = vpop.f32.mrb[0].mxu0
  %2180 = vmatprep.mubr.f32.mxu0 0.0
  %2181 = vmatmul.mubr.f32.gmra.mrb[0].mxu0 %v2091
  %v2182 = vpop.f32.mrb[0].mxu0
  %v2183 = vadd.f32 0.0, %v2182
  %v2184 = vpop.f32.mrb[0].mxu0
  %2185 = vmatprep.mubr.f32.mxu0 0.0
  %2186 = vmatmul.mubr.f32.gmra.mrb[0].mxu0 %v2094
  %v2187 = vpop.f32.mrb[0].mxu0
  %v2188 = vadd.f32 0.0, %v2187
  %v2189 = vpop.f32.mrb[0].mxu0
  %2190 = vmatprep.mubr.f32.mxu0 0.0
  %2191 = vmatmul.mubr.f32.gmra.mrb[0].mxu0 %v2097
  %v2192 = vpop.f32.mrb[0].mxu0
  %v2193 = vadd.f32 0.0, %v2192
  %v2194 = vpop.f32.mrb[0].mxu0
  %2195 = vmatprep.mubr.f32.mxu0 0.0
  %2196 = vmatmul.mubr.f32.gmra.mrb[0].mxu0 %v2100
  %v2197 = vpop.f32.mrb[0].mxu0
  %v2198 = vadd.f32 0.0, %v2197
  %v2199 = vpop.f32.mrb[0].mxu0
  %2200 = vmatprep.mubr.f32.mxu0 0.0
  %2201 = vmatmul.mubr.f32.gmra.mrb[0].mxu0 %v2103
  %v2202 = vpop.f32.mrb[0].mxu0
  %v2203 = vadd.f32 0.0, %v2202
  %v2204 = vpop.f32.mrb[0].mxu0
  %2205 = vmatprep.mubr.f32.mxu0 0.0
  %2206 = vmatmul.mubr.f32.gmra.mrb[0].mxu0 %v2106
  %v2207 = vpop.f32.mrb[0].mxu0
  %v2208 = vadd.f32 0.0, %v2207
  %v2209 = vpop.f32.mrb[0].mxu0
  %2210 = vmatprep.mubr.f32.mxu0 0.0
  %2211 = vmatmul.mubr.f32.gmra.mrb[0].mxu0 %v2109
  %v2212 = vpop.f32.mrb[0].mxu0
  %v2213 = vadd.f32 0.0, %v2212
  %v2214 = vpop.f32.mrb[0].mxu0
  %2215 = vdwg.mxu0
  %v2216 = vadd.f32 %v1639, %v2178
  %v2217 = vadd.f32 %v1644, %v2183
  %v2218 = vadd.f32 %v1649, %v2188
  %v2219 = vadd.f32 %v1654, %v2193
  %v2220 = vadd.f32 %v1659, %v2198
  %v2221 = vadd.f32 %v1664, %v2203
  %v2222 = vadd.f32 %v1669, %v2208
  %v2223 = vadd.f32 %v1674, %v2213
  %2224 = vrot.lane.b32.xlu0 %v577, 104
  %v2225 = vpop.permute.xlu0 %2224
  %2226 = vrot.lane.b32.xlu0 %v578, 104
  %v2227 = vpop.permute.xlu0 %2226
  %2228 = vrot.lane.b32.xlu0 %v579, 104
  %v2229 = vpop.permute.xlu0 %2228
  %2230 = vrot.lane.b32.xlu0 %v580, 104
  %v2231 = vpop.permute.xlu0 %2230
  %2232 = vrot.lane.b32.xlu0 %v581, 104
  %v2233 = vpop.permute.xlu0 %2232
  %2234 = vrot.lane.b32.xlu0 %v582, 104
  %v2235 = vpop.permute.xlu0 %2234
  %2236 = vrot.lane.b32.xlu0 %v583, 104
  %v2237 = vpop.permute.xlu0 %2236
  %2238 = vrot.lane.b32.xlu0 %v584, 104
  %v2239 = vpop.permute.xlu0 %2238
  %2240 = vrot.lane.b32.xlu0 %v499, 72
  %v2241 = vpop.permute.xlu0 %2240
  %2242 = vrot.lane.b32.xlu0 %v504, 72
  %v2243 = vpop.permute.xlu0 %2242
  %2244 = vrot.lane.b32.xlu0 %v509, 72
  %v2245 = vpop.permute.xlu0 %2244
  %2246 = vrot.lane.b32.xlu0 %v514, 72
  %v2247 = vpop.permute.xlu0 %2246
  %2248 = vrot.lane.b32.xlu0 %v519, 72
  %v2249 = vpop.permute.xlu0 %2248
  %2250 = vrot.lane.b32.xlu0 %v524, 72
  %v2251 = vpop.permute.xlu0 %2250
  %2252 = vrot.lane.b32.xlu0 %v529, 72
  %v2253 = vpop.permute.xlu0 %2252
  %2254 = vrot.lane.b32.xlu0 %v534, 72
  %v2255 = vpop.permute.xlu0 %2254
  %v2256 = vsel %vm621, %v2225, 0
  %v2258 = vsel %vm621, %v2227, 0
  %v2260 = vsel %vm621, %v2229, 0
  %v2262 = vsel %vm621, %v2231, 0
  %v2264 = vsel %vm621, %v2233, 0
  %v2266 = vsel %vm621, %v2235, 0
  %v2268 = vsel %vm621, %v2237, 0
  %v2270 = vsel %vm621, %v2239, 0
  %v2272 = vsel %vm621, %v2241, 0
  %v2274 = vsel %vm621, %v2243, 0
  %v2276 = vsel %vm621, %v2245, 0
  %v2278 = vsel %vm621, %v2247, 0
  %v2280 = vsel %vm621, %v2249, 0
  %v2282 = vsel %vm621, %v2251, 0
  %v2284 = vsel %vm621, %v2253, 0
  %v2286 = vsel %vm621, %v2255, 0
  %2288 = vmatprep.subr.mxu0 0.0
  %2289 = vmatpush1.xpose.msra.mxu0 %v2272
  %2290 = vmatprep.subr.mxu0 0.0
  %2291 = vmatpush1.xpose.msra.mxu0 %v2274
  %2292 = vmatprep.subr.mxu0 0.0
  %2293 = vmatpush1.xpose.msra.mxu0 %v2276
  %2294 = vmatprep.subr.mxu0 0.0
  %2295 = vmatpush1.xpose.msra.mxu0 %v2278
  %2296 = vmatprep.subr.mxu0 0.0
  %2297 = vmatpush1.xpose.msra.mxu0 %v2280
  %2298 = vmatprep.subr.mxu0 0.0
  %2299 = vmatpush1.xpose.msra.mxu0 %v2282
  %2300 = vmatprep.subr.mxu0 0.0
  %2301 = vmatpush1.xpose.msra.mxu0 %v2284
  %2302 = vmatprep.subr.mxu0 0.0
  %2303 = vmatpush1.xpose.msra.mxu0 %v2286
  %2304 = vmatprep.subr.mxu0 0.0
  %2305 = vmatpush1.xpose.msra.mxu0 0.0
  %2306 = vmatprep.subr.mxu0 0.0
  %2307 = vmatpush1.xpose.msra.mxu0 0.0
  %2308 = vmatprep.subr.mxu0 0.0
  %2309 = vmatpush1.xpose.msra.mxu0 0.0
  %2310 = vmatprep.subr.mxu0 0.0
  %2311 = vmatpush1.xpose.msra.mxu0 0.0
  %2312 = vmatprep.subr.mxu0 0.0
  %2313 = vmatpush1.xpose.msra.mxu0 0.0
  %2314 = vmatprep.subr.mxu0 0.0
  %2315 = vmatpush1.xpose.msra.mxu0 0.0
  %2316 = vmatprep.subr.mxu0 0.0
  %2317 = vmatpush1.xpose.msra.mxu0 0.0
  %2318 = vmatprep.subr.mxu0 0.0
  %2319 = vmatpush1.xpose.msra.mxu0 0.0
  %2320 = vmatprep.subr.mxu0 0.0
  %2321 = vmatpush1.xpose.msra.mxu0 0.0
  %2322 = vmatprep.subr.mxu0 0.0
  %2323 = vmatpush1.xpose.msra.mxu0 0.0
  %2324 = vmatprep.subr.mxu0 0.0
  %2325 = vmatpush1.xpose.msra.mxu0 0.0
  %2326 = vmatprep.subr.mxu0 0.0
  %2327 = vmatpush1.xpose.msra.mxu0 0.0
  %2328 = vmatprep.subr.mxu0 0.0
  %2329 = vmatpush1.xpose.msra.mxu0 0.0
  %2330 = vmatprep.subr.mxu0 0.0
  %2331 = vmatpush1.xpose.msra.mxu0 0.0
  %2332 = vmatprep.subr.mxu0 0.0
  %2333 = vmatpush1.xpose.msra.mxu0 0.0
  %2334 = vmatprep.subr.mxu0 0.0
  %2335 = vmatpush1.xpose.msra.mxu0 0.0
  %2336 = vmatprep.subr.mxu0 0.0
  %2337 = vmatpush1.xpose.msra.mxu0 0.0
  %2338 = vmatprep.subr.mxu0 0.0
  %2339 = vmatpush1.xpose.msra.mxu0 0.0
  %2340 = vmatprep.subr.mxu0 0.0
  %2341 = vmatpush1.xpose.msra.mxu0 0.0
  %2342 = vmatprep.subr.mxu0 0.0
  %2343 = vmatpush1.xpose.msra.mxu0 0.0
  %2344 = vmatprep.subr.mxu0 0.0
  %2345 = vmatpush1.xpose.msra.mxu0 0.0
  %2346 = vmatprep.subr.mxu0 0.0
  %2347 = vmatpush1.xpose.msra.mxu0 0.0
  %2348 = vmatprep.subr.mxu0 0.0
  %2349 = vmatpush1.xpose.msra.mxu0 0.0
  %2350 = vmatprep.subr.mxu0 0.0
  %2351 = vmatpush1.xpose.msra.mxu0 0.0
  %2352 = vmatprep.mubr.f32.mxu0 0.0
  %2353 = vmatmul.mubr.f32.gmra.mrb[0].mxu0 %v2256
  %v2354 = vpop.f32.mrb[0].mxu0
  %v2355 = vadd.f32 0.0, %v2354
  %v2356 = vpop.f32.mrb[0].mxu0
  %2357 = vmatprep.mubr.f32.mxu0 0.0
  %2358 = vmatmul.mubr.f32.gmra.mrb[0].mxu0 %v2258
  %v2359 = vpop.f32.mrb[0].mxu0
  %v2360 = vadd.f32 0.0, %v2359
  %v2361 = vpop.f32.mrb[0].mxu0
  %2362 = vmatprep.mubr.f32.mxu0 0.0
  %2363 = vmatmul.mubr.f32.gmra.mrb[0].mxu0 %v2260
  %v2364 = vpop.f32.mrb[0].mxu0
  %v2365 = vadd.f32 0.0, %v2364
  %v2366 = vpop.f32.mrb[0].mxu0
  %2367 = vmatprep.mubr.f32.mxu0 0.0
  %2368 = vmatmul.mubr.f32.gmra.mrb[0].mxu0 %v2262
  %v2369 = vpop.f32.mrb[0].mxu0
  %v2370 = vadd.f32 0.0, %v2369
  %v2371 = vpop.f32.mrb[0].mxu0
  %2372 = vmatprep.mubr.f32.mxu0 0.0
  %2373 = vmatmul.mubr.f32.gmra.mrb[0].mxu0 %v2264
  %v2374 = vpop.f32.mrb[0].mxu0
  %v2375 = vadd.f32 0.0, %v2374
  %v2376 = vpop.f32.mrb[0].mxu0
  %2377 = vmatprep.mubr.f32.mxu0 0.0
  %2378 = vmatmul.mubr.f32.gmra.mrb[0].mxu0 %v2266
  %v2379 = vpop.f32.mrb[0].mxu0
  %v2380 = vadd.f32 0.0, %v2379
  %v2381 = vpop.f32.mrb[0].mxu0
  %2382 = vmatprep.mubr.f32.mxu0 0.0
  %2383 = vmatmul.mubr.f32.gmra.mrb[0].mxu0 %v2268
  %v2384 = vpop.f32.mrb[0].mxu0
  %v2385 = vadd.f32 0.0, %v2384
  %v2386 = vpop.f32.mrb[0].mxu0
  %2387 = vmatprep.mubr.f32.mxu0 0.0
  %2388 = vmatmul.mubr.f32.gmra.mrb[0].mxu0 %v2270
  %v2389 = vpop.f32.mrb[0].mxu0
  %v2390 = vadd.f32 0.0, %v2389
  %v2391 = vpop.f32.mrb[0].mxu0
  %2392 = vdwg.mxu0
  %v2393 = vsel %vm767, %v2355, -inf
  %2394 = vmax.xlane.f32.xlu0 %v2393
  %v2395 = vpop.xlane.xlu0 %2394
  %v2396 = vsel %vm767, %v2360, -inf
  %2397 = vmax.xlane.f32.xlu0 %v2396
  %v2398 = vpop.xlane.xlu0 %2397
  %v2399 = vsel %vm767, %v2365, -inf
  %2400 = vmax.xlane.f32.xlu0 %v2399
  %v2401 = vpop.xlane.xlu0 %2400
  %v2402 = vsel %vm767, %v2370, -inf
  %2403 = vmax.xlane.f32.xlu0 %v2402
  %v2404 = vpop.xlane.xlu0 %2403
  %v2405 = vsel %vm767, %v2375, -inf
  %2406 = vmax.xlane.f32.xlu0 %v2405
  %v2407 = vpop.xlane.xlu0 %2406
  %v2408 = vsel %vm767, %v2380, -inf
  %2409 = vmax.xlane.f32.xlu0 %v2408
  %v2410 = vpop.xlane.xlu0 %2409
  %v2411 = vsel %vm767, %v2385, -inf
  %2412 = vmax.xlane.f32.xlu0 %v2411
  %v2413 = vpop.xlane.xlu0 %2412
  %v2414 = vsel %vm767, %v2390, -inf
  %2415 = vmax.xlane.f32.xlu0 %v2414
  %v2416 = vpop.xlane.xlu0 %2415
  %v2417 = vsub.f32 %v2355, %v2395
  %v2418 = vsub.f32 %v2360, %v2398
  %v2419 = vsub.f32 %v2365, %v2401
  %v2420 = vsub.f32 %v2370, %v2404
  %v2421 = vsub.f32 %v2375, %v2407
  %v2422 = vsub.f32 %v2380, %v2410
  %v2423 = vsub.f32 %v2385, %v2413
  %v2424 = vsub.f32 %v2390, %v2416
  %v2425 = vmul.f32 %v2417, 1.442695
  %v2426 = vpow.pop %v2425
  %v2427 = vmul.f32 %v2418, 1.442695
  %v2428 = vpow.pop %v2427
  %v2429 = vmul.f32 %v2419, 1.442695
  %v2430 = vpow.pop %v2429
  %v2431 = vmul.f32 %v2420, 1.442695
  %v2432 = vpow.pop %v2431
  %v2433 = vmul.f32 %v2421, 1.442695
  %v2434 = vpow.pop %v2433
  %v2435 = vmul.f32 %v2422, 1.442695
  %v2436 = vpow.pop %v2435
  %v2437 = vmul.f32 %v2423, 1.442695
  %v2438 = vpow.pop %v2437
  %v2439 = vmul.f32 %v2424, 1.442695
  %v2440 = vpow.pop %v2439
  %v2441 = vsel %vm767, %v2426, 0.0
  %2442 = vadd.xlane.f32.xlu0 %v2441
  %v2443 = vpop.xlane.xlu0 %2442
  %v2444 = vsel %vm767, %v2428, 0.0
  %2445 = vadd.xlane.f32.xlu0 %v2444
  %v2446 = vpop.xlane.xlu0 %2445
  %v2447 = vsel %vm767, %v2430, 0.0
  %2448 = vadd.xlane.f32.xlu0 %v2447
  %v2449 = vpop.xlane.xlu0 %2448
  %v2450 = vsel %vm767, %v2432, 0.0
  %2451 = vadd.xlane.f32.xlu0 %v2450
  %v2452 = vpop.xlane.xlu0 %2451
  %v2453 = vsel %vm767, %v2434, 0.0
  %2454 = vadd.xlane.f32.xlu0 %v2453
  %v2455 = vpop.xlane.xlu0 %2454
  %v2456 = vsel %vm767, %v2436, 0.0
  %2457 = vadd.xlane.f32.xlu0 %v2456
  %v2458 = vpop.xlane.xlu0 %2457
  %v2459 = vsel %vm767, %v2438, 0.0
  %2460 = vadd.xlane.f32.xlu0 %v2459
  %v2461 = vpop.xlane.xlu0 %2460
  %v2462 = vsel %vm767, %v2440, 0.0
  %2463 = vadd.xlane.f32.xlu0 %v2462
  %v2464 = vpop.xlane.xlu0 %2463
  %v2465 = vrcp.pop %v2443
  %v2466 = vmul.f32 %v2426, %v2465
  %v2467 = vrcp.pop %v2446
  %v2468 = vmul.f32 %v2428, %v2467
  %v2469 = vrcp.pop %v2449
  %v2470 = vmul.f32 %v2430, %v2469
  %v2471 = vrcp.pop %v2452
  %v2472 = vmul.f32 %v2432, %v2471
  %v2473 = vrcp.pop %v2455
  %v2474 = vmul.f32 %v2434, %v2473
  %v2475 = vrcp.pop %v2458
  %v2476 = vmul.f32 %v2436, %v2475
  %v2477 = vrcp.pop %v2461
  %v2478 = vmul.f32 %v2438, %v2477
  %v2479 = vrcp.pop %v2464
  %v2480 = vmul.f32 %v2440, %v2479
  %2481 = vrot.lane.b32.xlu0 %v499, 40
  %v2482 = vpop.permute.xlu0 %2481
  %2483 = vrot.lane.b32.xlu0 %v504, 40
  %v2484 = vpop.permute.xlu0 %2483
  %2485 = vrot.lane.b32.xlu0 %v509, 40
  %v2486 = vpop.permute.xlu0 %2485
  %2487 = vrot.lane.b32.xlu0 %v514, 40
  %v2488 = vpop.permute.xlu0 %2487
  %2489 = vrot.lane.b32.xlu0 %v519, 40
  %v2490 = vpop.permute.xlu0 %2489
  %2491 = vrot.lane.b32.xlu0 %v524, 40
  %v2492 = vpop.permute.xlu0 %2491
  %2493 = vrot.lane.b32.xlu0 %v529, 40
  %v2494 = vpop.permute.xlu0 %2493
  %2495 = vrot.lane.b32.xlu0 %v534, 40
  %v2496 = vpop.permute.xlu0 %2495
  %v2506 = vsel %vm767, %v2466, 0
  %v2509 = vsel %vm767, %v2468, 0
  %v2512 = vsel %vm767, %v2470, 0
  %v2515 = vsel %vm767, %v2472, 0
  %v2518 = vsel %vm767, %v2474, 0
  %v2521 = vsel %vm767, %v2476, 0
  %v2524 = vsel %vm767, %v2478, 0
  %v2527 = vsel %vm767, %v2480, 0
  %2529 = vmatprep.subr.mxu0 0.0
  %2530 = vmatpush1.msra.mxu0 %v2482
  %2531 = vmatprep.subr.mxu0 0.0
  %2532 = vmatpush1.msra.mxu0 %v2484
  %2533 = vmatprep.subr.mxu0 0.0
  %2534 = vmatpush1.msra.mxu0 %v2486
  %2535 = vmatprep.subr.mxu0 0.0
  %2536 = vmatpush1.msra.mxu0 %v2488
  %2537 = vmatprep.subr.mxu0 0.0
  %2538 = vmatpush1.msra.mxu0 %v2490
  %2539 = vmatprep.subr.mxu0 0.0
  %2540 = vmatpush1.msra.mxu0 %v2492
  %2541 = vmatprep.subr.mxu0 0.0
  %2542 = vmatpush1.msra.mxu0 %v2494
  %2543 = vmatprep.subr.mxu0 0.0
  %2544 = vmatpush1.msra.mxu0 %v2496
  %2545 = vmatprep.subr.mxu0 0.0
  %2546 = vmatpush1.msra.mxu0 0.0
  %2547 = vmatprep.subr.mxu0 0.0
  %2548 = vmatpush1.msra.mxu0 0.0
  %2549 = vmatprep.subr.mxu0 0.0
  %2550 = vmatpush1.msra.mxu0 0.0
  %2551 = vmatprep.subr.mxu0 0.0
  %2552 = vmatpush1.msra.mxu0 0.0
  %2553 = vmatprep.subr.mxu0 0.0
  %2554 = vmatpush1.msra.mxu0 0.0
  %2555 = vmatprep.subr.mxu0 0.0
  %2556 = vmatpush1.msra.mxu0 0.0
  %2557 = vmatprep.subr.mxu0 0.0
  %2558 = vmatpush1.msra.mxu0 0.0
  %2559 = vmatprep.subr.mxu0 0.0
  %2560 = vmatpush1.msra.mxu0 0.0
  %2561 = vmatprep.subr.mxu0 0.0
  %2562 = vmatpush1.msra.mxu0 0.0
  %2563 = vmatprep.subr.mxu0 0.0
  %2564 = vmatpush1.msra.mxu0 0.0
  %2565 = vmatprep.subr.mxu0 0.0
  %2566 = vmatpush1.msra.mxu0 0.0
  %2567 = vmatprep.subr.mxu0 0.0
  %2568 = vmatpush1.msra.mxu0 0.0
  %2569 = vmatprep.subr.mxu0 0.0
  %2570 = vmatpush1.msra.mxu0 0.0
  %2571 = vmatprep.subr.mxu0 0.0
  %2572 = vmatpush1.msra.mxu0 0.0
  %2573 = vmatprep.subr.mxu0 0.0
  %2574 = vmatpush1.msra.mxu0 0.0
  %2575 = vmatprep.subr.mxu0 0.0
  %2576 = vmatpush1.msra.mxu0 0.0
  %2577 = vmatprep.subr.mxu0 0.0
  %2578 = vmatpush1.msra.mxu0 0.0
  %2579 = vmatprep.subr.mxu0 0.0
  %2580 = vmatpush1.msra.mxu0 0.0
  %2581 = vmatprep.subr.mxu0 0.0
  %2582 = vmatpush1.msra.mxu0 0.0
  %2583 = vmatprep.subr.mxu0 0.0
  %2584 = vmatpush1.msra.mxu0 0.0
  %2585 = vmatprep.subr.mxu0 0.0
  %2586 = vmatpush1.msra.mxu0 0.0
  %2587 = vmatprep.subr.mxu0 0.0
  %2588 = vmatpush1.msra.mxu0 0.0
  %2589 = vmatprep.subr.mxu0 0.0
  %2590 = vmatpush1.msra.mxu0 0.0
  %2591 = vmatprep.subr.mxu0 0.0
  %2592 = vmatpush1.msra.mxu0 0.0
  %2593 = vmatprep.mubr.f32.mxu0 0.0
  %2594 = vmatmul.mubr.f32.gmra.mrb[0].mxu0 %v2506
  %v2595 = vpop.f32.mrb[0].mxu0
  %v2596 = vadd.f32 0.0, %v2595
  %v2597 = vpop.f32.mrb[0].mxu0
  %2598 = vmatprep.mubr.f32.mxu0 0.0
  %2599 = vmatmul.mubr.f32.gmra.mrb[0].mxu0 %v2509
  %v2600 = vpop.f32.mrb[0].mxu0
  %v2601 = vadd.f32 0.0, %v2600
  %v2602 = vpop.f32.mrb[0].mxu0
  %2603 = vmatprep.mubr.f32.mxu0 0.0
  %2604 = vmatmul.mubr.f32.gmra.mrb[0].mxu0 %v2512
  %v2605 = vpop.f32.mrb[0].mxu0
  %v2606 = vadd.f32 0.0, %v2605
  %v2607 = vpop.f32.mrb[0].mxu0
  %2608 = vmatprep.mubr.f32.mxu0 0.0
  %2609 = vmatmul.mubr.f32.gmra.mrb[0].mxu0 %v2515
  %v2610 = vpop.f32.mrb[0].mxu0
  %v2611 = vadd.f32 0.0, %v2610
  %v2612 = vpop.f32.mrb[0].mxu0
  %2613 = vmatprep.mubr.f32.mxu0 0.0
  %2614 = vmatmul.mubr.f32.gmra.mrb[0].mxu0 %v2518
  %v2615 = vpop.f32.mrb[0].mxu0
  %v2616 = vadd.f32 0.0, %v2615
  %v2617 = vpop.f32.mrb[0].mxu0
  %2618 = vmatprep.mubr.f32.mxu0 0.0
  %2619 = vmatmul.mubr.f32.gmra.mrb[0].mxu0 %v2521
  %v2620 = vpop.f32.mrb[0].mxu0
  %v2621 = vadd.f32 0.0, %v2620
  %v2622 = vpop.f32.mrb[0].mxu0
  %2623 = vmatprep.mubr.f32.mxu0 0.0
  %2624 = vmatmul.mubr.f32.gmra.mrb[0].mxu0 %v2524
  %v2625 = vpop.f32.mrb[0].mxu0
  %v2626 = vadd.f32 0.0, %v2625
  %v2627 = vpop.f32.mrb[0].mxu0
  %2628 = vmatprep.mubr.f32.mxu0 0.0
  %2629 = vmatmul.mubr.f32.gmra.mrb[0].mxu0 %v2527
  %v2630 = vpop.f32.mrb[0].mxu0
  %v2631 = vadd.f32 0.0, %v2630
  %v2632 = vpop.f32.mrb[0].mxu0
  %2633 = vdwg.mxu0
  %v2635 = vsel %vm621, %v2596, 0
  %v2638 = vsel %vm621, %v2601, 0
  %v2641 = vsel %vm621, %v2606, 0
  %v2644 = vsel %vm621, %v2611, 0
  %v2647 = vsel %vm621, %v2616, 0
  %v2650 = vsel %vm621, %v2621, 0
  %v2653 = vsel %vm621, %v2626, 0
  %v2656 = vsel %vm621, %v2631, 0
  %2658 = vmatprep.subr.mxu0 0.0
  %2659 = vmatpush1.msra.mxu0 %v596
  %2660 = vmatprep.subr.mxu0 0.0
  %2661 = vmatpush1.msra.mxu0 0.0
  %2662 = vmatprep.subr.mxu0 0.0
  %2663 = vmatpush1.msra.mxu0 0.0
  %2664 = vmatprep.subr.mxu0 0.0
  %2665 = vmatpush1.msra.mxu0 0.0
  %2666 = vmatprep.subr.mxu0 0.0
  %2667 = vmatpush1.msra.mxu0 0.0
  %2668 = vmatprep.subr.mxu0 0.0
  %2669 = vmatpush1.msra.mxu0 0.0
  %2670 = vmatprep.subr.mxu0 0.0
  %2671 = vmatpush1.msra.mxu0 0.0
  %2672 = vmatprep.subr.mxu0 0.0
  %2673 = vmatpush1.msra.mxu0 0.0
  %2674 = vmatprep.subr.mxu0 0.0
  %2675 = vmatpush1.msra.mxu0 0.0
  %2676 = vmatprep.subr.mxu0 0.0
  %2677 = vmatpush1.msra.mxu0 0.0
  %2678 = vmatprep.subr.mxu0 0.0
  %2679 = vmatpush1.msra.mxu0 0.0
  %2680 = vmatprep.subr.mxu0 0.0
  %2681 = vmatpush1.msra.mxu0 0.0
  %2682 = vmatprep.subr.mxu0 0.0
  %2683 = vmatpush1.msra.mxu0 0.0
  %2684 = vmatprep.subr.mxu0 0.0
  %2685 = vmatpush1.msra.mxu0 0.0
  %2686 = vmatprep.subr.mxu0 0.0
  %2687 = vmatpush1.msra.mxu0 0.0
  %2688 = vmatprep.subr.mxu0 0.0
  %2689 = vmatpush1.msra.mxu0 0.0
  %2690 = vmatprep.subr.mxu0 0.0
  %2691 = vmatpush1.msra.mxu0 0.0
  %2692 = vmatprep.subr.mxu0 0.0
  %2693 = vmatpush1.msra.mxu0 0.0
  %2694 = vmatprep.subr.mxu0 0.0
  %2695 = vmatpush1.msra.mxu0 0.0
  %2696 = vmatprep.subr.mxu0 0.0
  %2697 = vmatpush1.msra.mxu0 0.0
  %2698 = vmatprep.subr.mxu0 0.0
  %2699 = vmatpush1.msra.mxu0 0.0
  %2700 = vmatprep.subr.mxu0 0.0
  %2701 = vmatpush1.msra.mxu0 0.0
  %2702 = vmatprep.subr.mxu0 0.0
  %2703 = vmatpush1.msra.mxu0 0.0
  %2704 = vmatprep.subr.mxu0 0.0
  %2705 = vmatpush1.msra.mxu0 0.0
  %2706 = vmatprep.subr.mxu0 0.0
  %2707 = vmatpush1.msra.mxu0 0.0
  %2708 = vmatprep.subr.mxu0 0.0
  %2709 = vmatpush1.msra.mxu0 0.0
  %2710 = vmatprep.subr.mxu0 0.0
  %2711 = vmatpush1.msra.mxu0 0.0
  %2712 = vmatprep.subr.mxu0 0.0
  %2713 = vmatpush1.msra.mxu0 0.0
  %2714 = vmatprep.subr.mxu0 0.0
  %2715 = vmatpush1.msra.mxu0 0.0
  %2716 = vmatprep.subr.mxu0 0.0
  %2717 = vmatpush1.msra.mxu0 0.0
  %2718 = vmatprep.subr.mxu0 0.0
  %2719 = vmatpush1.msra.mxu0 0.0
  %2720 = vmatprep.subr.mxu0 0.0
  %2721 = vmatpush1.msra.mxu0 0.0
  %2722 = vmatprep.mubr.f32.mxu0 0.0
  %2723 = vmatmul.mubr.f32.gmra.mrb[0].mxu0 %v2635
  %v2724 = vpop.f32.mrb[0].mxu0
  %v2725 = vadd.f32 0.0, %v2724
  %v2726 = vpop.f32.mrb[0].mxu0
  %2727 = vmatprep.mubr.f32.mxu0 0.0
  %2728 = vmatmul.mubr.f32.gmra.mrb[0].mxu0 %v2638
  %v2729 = vpop.f32.mrb[0].mxu0
  %v2730 = vadd.f32 0.0, %v2729
  %v2731 = vpop.f32.mrb[0].mxu0
  %2732 = vmatprep.mubr.f32.mxu0 0.0
  %2733 = vmatmul.mubr.f32.gmra.mrb[0].mxu0 %v2641
  %v2734 = vpop.f32.mrb[0].mxu0
  %v2735 = vadd.f32 0.0, %v2734
  %v2736 = vpop.f32.mrb[0].mxu0
  %2737 = vmatprep.mubr.f32.mxu0 0.0
  %2738 = vmatmul.mubr.f32.gmra.mrb[0].mxu0 %v2644
  %v2739 = vpop.f32.mrb[0].mxu0
  %v2740 = vadd.f32 0.0, %v2739
  %v2741 = vpop.f32.mrb[0].mxu0
  %2742 = vmatprep.mubr.f32.mxu0 0.0
  %2743 = vmatmul.mubr.f32.gmra.mrb[0].mxu0 %v2647
  %v2744 = vpop.f32.mrb[0].mxu0
  %v2745 = vadd.f32 0.0, %v2744
  %v2746 = vpop.f32.mrb[0].mxu0
  %2747 = vmatprep.mubr.f32.mxu0 0.0
  %2748 = vmatmul.mubr.f32.gmra.mrb[0].mxu0 %v2650
  %v2749 = vpop.f32.mrb[0].mxu0
  %v2750 = vadd.f32 0.0, %v2749
  %v2751 = vpop.f32.mrb[0].mxu0
  %2752 = vmatprep.mubr.f32.mxu0 0.0
  %2753 = vmatmul.mubr.f32.gmra.mrb[0].mxu0 %v2653
  %v2754 = vpop.f32.mrb[0].mxu0
  %v2755 = vadd.f32 0.0, %v2754
  %v2756 = vpop.f32.mrb[0].mxu0
  %2757 = vmatprep.mubr.f32.mxu0 0.0
  %2758 = vmatmul.mubr.f32.gmra.mrb[0].mxu0 %v2656
  %v2759 = vpop.f32.mrb[0].mxu0
  %v2760 = vadd.f32 0.0, %v2759
  %v2761 = vpop.f32.mrb[0].mxu0
  %2762 = vdwg.mxu0
  %v2763 = vadd.f32 %v2216, %v2725
  %v2764 = vadd.f32 %v2217, %v2730
  %v2765 = vadd.f32 %v2218, %v2735
  %v2766 = vadd.f32 %v2219, %v2740
  %v2767 = vadd.f32 %v2220, %v2745
  %v2768 = vadd.f32 %v2221, %v2750
  %v2769 = vadd.f32 %v2222, %v2755
  %v2770 = vadd.f32 %v2223, %v2760
  %2779 = vrot.lane.b32.xlu0 %v539, 96
  %v2780 = vpop.permute.xlu0 %2779
  %2781 = vrot.lane.b32.xlu0 %v544, 96
  %v2782 = vpop.permute.xlu0 %2781
  %2783 = vrot.lane.b32.xlu0 %v549, 96
  %v2784 = vpop.permute.xlu0 %2783
  %2785 = vrot.lane.b32.xlu0 %v554, 96
  %v2786 = vpop.permute.xlu0 %2785
  %2787 = vrot.lane.b32.xlu0 %v559, 96
  %v2788 = vpop.permute.xlu0 %2787
  %2789 = vrot.lane.b32.xlu0 %v564, 96
  %v2790 = vpop.permute.xlu0 %2789
  %2791 = vrot.lane.b32.xlu0 %v569, 96
  %v2792 = vpop.permute.xlu0 %2791
  %2793 = vrot.lane.b32.xlu0 %v574, 96
  %v2794 = vpop.permute.xlu0 %2793
  %v2796 = vsel %vm621, %v585, 0
  %v2799 = vsel %vm621, %v586, 0
  %v2802 = vsel %vm621, %v587, 0
  %v2805 = vsel %vm621, %v588, 0
  %v2808 = vsel %vm621, %v589, 0
  %v2811 = vsel %vm621, %v590, 0
  %v2814 = vsel %vm621, %v591, 0
  %v2817 = vsel %vm621, %v592, 0
  %v2819 = vsel %vm621, %v2780, 0
  %v2821 = vsel %vm621, %v2782, 0
  %v2823 = vsel %vm621, %v2784, 0
  %v2825 = vsel %vm621, %v2786, 0
  %v2827 = vsel %vm621, %v2788, 0
  %v2829 = vsel %vm621, %v2790, 0
  %v2831 = vsel %vm621, %v2792, 0
  %v2833 = vsel %vm621, %v2794, 0
  %2835 = vmatprep.subr.mxu0 0.0
  %2836 = vmatpush1.xpose.msra.mxu0 %v2819
  %2837 = vmatprep.subr.mxu0 0.0
  %2838 = vmatpush1.xpose.msra.mxu0 %v2821
  %2839 = vmatprep.subr.mxu0 0.0
  %2840 = vmatpush1.xpose.msra.mxu0 %v2823
  %2841 = vmatprep.subr.mxu0 0.0
  %2842 = vmatpush1.xpose.msra.mxu0 %v2825
  %2843 = vmatprep.subr.mxu0 0.0
  %2844 = vmatpush1.xpose.msra.mxu0 %v2827
  %2845 = vmatprep.subr.mxu0 0.0
  %2846 = vmatpush1.xpose.msra.mxu0 %v2829
  %2847 = vmatprep.subr.mxu0 0.0
  %2848 = vmatpush1.xpose.msra.mxu0 %v2831
  %2849 = vmatprep.subr.mxu0 0.0
  %2850 = vmatpush1.xpose.msra.mxu0 %v2833
  %2851 = vmatprep.subr.mxu0 0.0
  %2852 = vmatpush1.xpose.msra.mxu0 0.0
  %2853 = vmatprep.subr.mxu0 0.0
  %2854 = vmatpush1.xpose.msra.mxu0 0.0
  %2855 = vmatprep.subr.mxu0 0.0
  %2856 = vmatpush1.xpose.msra.mxu0 0.0
  %2857 = vmatprep.subr.mxu0 0.0
  %2858 = vmatpush1.xpose.msra.mxu0 0.0
  %2859 = vmatprep.subr.mxu0 0.0
  %2860 = vmatpush1.xpose.msra.mxu0 0.0
  %2861 = vmatprep.subr.mxu0 0.0
  %2862 = vmatpush1.xpose.msra.mxu0 0.0
  %2863 = vmatprep.subr.mxu0 0.0
  %2864 = vmatpush1.xpose.msra.mxu0 0.0
  %2865 = vmatprep.subr.mxu0 0.0
  %2866 = vmatpush1.xpose.msra.mxu0 0.0
  %2867 = vmatprep.subr.mxu0 0.0
  %2868 = vmatpush1.xpose.msra.mxu0 0.0
  %2869 = vmatprep.subr.mxu0 0.0
  %2870 = vmatpush1.xpose.msra.mxu0 0.0
  %2871 = vmatprep.subr.mxu0 0.0
  %2872 = vmatpush1.xpose.msra.mxu0 0.0
  %2873 = vmatprep.subr.mxu0 0.0
  %2874 = vmatpush1.xpose.msra.mxu0 0.0
  %2875 = vmatprep.subr.mxu0 0.0
  %2876 = vmatpush1.xpose.msra.mxu0 0.0
  %2877 = vmatprep.subr.mxu0 0.0
  %2878 = vmatpush1.xpose.msra.mxu0 0.0
  %2879 = vmatprep.subr.mxu0 0.0
  %2880 = vmatpush1.xpose.msra.mxu0 0.0
  %2881 = vmatprep.subr.mxu0 0.0
  %2882 = vmatpush1.xpose.msra.mxu0 0.0
  %2883 = vmatprep.subr.mxu0 0.0
  %2884 = vmatpush1.xpose.msra.mxu0 0.0
  %2885 = vmatprep.subr.mxu0 0.0
  %2886 = vmatpush1.xpose.msra.mxu0 0.0
  %2887 = vmatprep.subr.mxu0 0.0
  %2888 = vmatpush1.xpose.msra.mxu0 0.0
  %2889 = vmatprep.subr.mxu0 0.0
  %2890 = vmatpush1.xpose.msra.mxu0 0.0
  %2891 = vmatprep.subr.mxu0 0.0
  %2892 = vmatpush1.xpose.msra.mxu0 0.0
  %2893 = vmatprep.subr.mxu0 0.0
  %2894 = vmatpush1.xpose.msra.mxu0 0.0
  %2895 = vmatprep.subr.mxu0 0.0
  %2896 = vmatpush1.xpose.msra.mxu0 0.0
  %2897 = vmatprep.subr.mxu0 0.0
  %2898 = vmatpush1.xpose.msra.mxu0 0.0
  %2899 = vmatprep.mubr.f32.mxu0 0.0
  %2900 = vmatmul.mubr.f32.gmra.mrb[0].mxu0 %v2796
  %v2901 = vpop.f32.mrb[0].mxu0
  %v2902 = vadd.f32 0.0, %v2901
  %v2903 = vpop.f32.mrb[0].mxu0
  %2904 = vmatprep.mubr.f32.mxu0 0.0
  %2905 = vmatmul.mubr.f32.gmra.mrb[0].mxu0 %v2799
  %v2906 = vpop.f32.mrb[0].mxu0
  %v2907 = vadd.f32 0.0, %v2906
  %v2908 = vpop.f32.mrb[0].mxu0
  %2909 = vmatprep.mubr.f32.mxu0 0.0
  %2910 = vmatmul.mubr.f32.gmra.mrb[0].mxu0 %v2802
  %v2911 = vpop.f32.mrb[0].mxu0
  %v2912 = vadd.f32 0.0, %v2911
  %v2913 = vpop.f32.mrb[0].mxu0
  %2914 = vmatprep.mubr.f32.mxu0 0.0
  %2915 = vmatmul.mubr.f32.gmra.mrb[0].mxu0 %v2805
  %v2916 = vpop.f32.mrb[0].mxu0
  %v2917 = vadd.f32 0.0, %v2916
  %v2918 = vpop.f32.mrb[0].mxu0
  %2919 = vmatprep.mubr.f32.mxu0 0.0
  %2920 = vmatmul.mubr.f32.gmra.mrb[0].mxu0 %v2808
  %v2921 = vpop.f32.mrb[0].mxu0
  %v2922 = vadd.f32 0.0, %v2921
  %v2923 = vpop.f32.mrb[0].mxu0
  %2924 = vmatprep.mubr.f32.mxu0 0.0
  %2925 = vmatmul.mubr.f32.gmra.mrb[0].mxu0 %v2811
  %v2926 = vpop.f32.mrb[0].mxu0
  %v2927 = vadd.f32 0.0, %v2926
  %v2928 = vpop.f32.mrb[0].mxu0
  %2929 = vmatprep.mubr.f32.mxu0 0.0
  %2930 = vmatmul.mubr.f32.gmra.mrb[0].mxu0 %v2814
  %v2931 = vpop.f32.mrb[0].mxu0
  %v2932 = vadd.f32 0.0, %v2931
  %v2933 = vpop.f32.mrb[0].mxu0
  %2934 = vmatprep.mubr.f32.mxu0 0.0
  %2935 = vmatmul.mubr.f32.gmra.mrb[0].mxu0 %v2817
  %v2936 = vpop.f32.mrb[0].mxu0
  %v2937 = vadd.f32 0.0, %v2936
  %v2938 = vpop.f32.mrb[0].mxu0
  %2939 = vdwg.mxu0
  %v2940 = vsel %vm767, %v2902, -inf
  %2941 = vmax.xlane.f32.xlu0 %v2940
  %v2942 = vpop.xlane.xlu0 %2941
  %v2943 = vsel %vm767, %v2907, -inf
  %2944 = vmax.xlane.f32.xlu0 %v2943
  %v2945 = vpop.xlane.xlu0 %2944
  %v2946 = vsel %vm767, %v2912, -inf
  %2947 = vmax.xlane.f32.xlu0 %v2946
  %v2948 = vpop.xlane.xlu0 %2947
  %v2949 = vsel %vm767, %v2917, -inf
  %2950 = vmax.xlane.f32.xlu0 %v2949
  %v2951 = vpop.xlane.xlu0 %2950
  %v2952 = vsel %vm767, %v2922, -inf
  %2953 = vmax.xlane.f32.xlu0 %v2952
  %v2954 = vpop.xlane.xlu0 %2953
  %v2955 = vsel %vm767, %v2927, -inf
  %2956 = vmax.xlane.f32.xlu0 %v2955
  %v2957 = vpop.xlane.xlu0 %2956
  %v2958 = vsel %vm767, %v2932, -inf
  %2959 = vmax.xlane.f32.xlu0 %v2958
  %v2960 = vpop.xlane.xlu0 %2959
  %v2961 = vsel %vm767, %v2937, -inf
  %2962 = vmax.xlane.f32.xlu0 %v2961
  %v2963 = vpop.xlane.xlu0 %2962
  %v2964 = vsub.f32 %v2902, %v2942
  %v2965 = vsub.f32 %v2907, %v2945
  %v2966 = vsub.f32 %v2912, %v2948
  %v2967 = vsub.f32 %v2917, %v2951
  %v2968 = vsub.f32 %v2922, %v2954
  %v2969 = vsub.f32 %v2927, %v2957
  %v2970 = vsub.f32 %v2932, %v2960
  %v2971 = vsub.f32 %v2937, %v2963
  %v2972 = vmul.f32 %v2964, 1.442695
  %v2973 = vpow.pop %v2972
  %v2974 = vmul.f32 %v2965, 1.442695
  %v2975 = vpow.pop %v2974
  %v2976 = vmul.f32 %v2966, 1.442695
  %v2977 = vpow.pop %v2976
  %v2978 = vmul.f32 %v2967, 1.442695
  %v2979 = vpow.pop %v2978
  %v2980 = vmul.f32 %v2968, 1.442695
  %v2981 = vpow.pop %v2980
  %v2982 = vmul.f32 %v2969, 1.442695
  %v2983 = vpow.pop %v2982
  %v2984 = vmul.f32 %v2970, 1.442695
  %v2985 = vpow.pop %v2984
  %v2986 = vmul.f32 %v2971, 1.442695
  %v2987 = vpow.pop %v2986
  %v2988 = vsel %vm767, %v2973, 0.0
  %2989 = vadd.xlane.f32.xlu0 %v2988
  %v2990 = vpop.xlane.xlu0 %2989
  %v2991 = vsel %vm767, %v2975, 0.0
  %2992 = vadd.xlane.f32.xlu0 %v2991
  %v2993 = vpop.xlane.xlu0 %2992
  %v2994 = vsel %vm767, %v2977, 0.0
  %2995 = vadd.xlane.f32.xlu0 %v2994
  %v2996 = vpop.xlane.xlu0 %2995
  %v2997 = vsel %vm767, %v2979, 0.0
  %2998 = vadd.xlane.f32.xlu0 %v2997
  %v2999 = vpop.xlane.xlu0 %2998
  %v3000 = vsel %vm767, %v2981, 0.0
  %3001 = vadd.xlane.f32.xlu0 %v3000
  %v3002 = vpop.xlane.xlu0 %3001
  %v3003 = vsel %vm767, %v2983, 0.0
  %3004 = vadd.xlane.f32.xlu0 %v3003
  %v3005 = vpop.xlane.xlu0 %3004
  %v3006 = vsel %vm767, %v2985, 0.0
  %3007 = vadd.xlane.f32.xlu0 %v3006
  %v3008 = vpop.xlane.xlu0 %3007
  %v3009 = vsel %vm767, %v2987, 0.0
  %3010 = vadd.xlane.f32.xlu0 %v3009
  %v3011 = vpop.xlane.xlu0 %3010
  %v3012 = vrcp.pop %v2990
  %v3013 = vmul.f32 %v2973, %v3012
  %v3014 = vrcp.pop %v2993
  %v3015 = vmul.f32 %v2975, %v3014
  %v3016 = vrcp.pop %v2996
  %v3017 = vmul.f32 %v2977, %v3016
  %v3018 = vrcp.pop %v2999
  %v3019 = vmul.f32 %v2979, %v3018
  %v3020 = vrcp.pop %v3002
  %v3021 = vmul.f32 %v2981, %v3020
  %v3022 = vrcp.pop %v3005
  %v3023 = vmul.f32 %v2983, %v3022
  %v3024 = vrcp.pop %v3008
  %v3025 = vmul.f32 %v2985, %v3024
  %v3026 = vrcp.pop %v3011
  %v3027 = vmul.f32 %v2987, %v3026
  %3028 = vrot.lane.b32.xlu0 %v539, 64
  %v3029 = vpop.permute.xlu0 %3028
  %3030 = vrot.lane.b32.xlu0 %v544, 64
  %v3031 = vpop.permute.xlu0 %3030
  %3032 = vrot.lane.b32.xlu0 %v549, 64
  %v3033 = vpop.permute.xlu0 %3032
  %3034 = vrot.lane.b32.xlu0 %v554, 64
  %v3035 = vpop.permute.xlu0 %3034
  %3036 = vrot.lane.b32.xlu0 %v559, 64
  %v3037 = vpop.permute.xlu0 %3036
  %3038 = vrot.lane.b32.xlu0 %v564, 64
  %v3039 = vpop.permute.xlu0 %3038
  %3040 = vrot.lane.b32.xlu0 %v569, 64
  %v3041 = vpop.permute.xlu0 %3040
  %3042 = vrot.lane.b32.xlu0 %v574, 64
  %v3043 = vpop.permute.xlu0 %3042
  %v3053 = vsel %vm767, %v3013, 0
  %v3056 = vsel %vm767, %v3015, 0
  %v3059 = vsel %vm767, %v3017, 0
  %v3062 = vsel %vm767, %v3019, 0
  %v3065 = vsel %vm767, %v3021, 0
  %v3068 = vsel %vm767, %v3023, 0
  %v3071 = vsel %vm767, %v3025, 0
  %v3074 = vsel %vm767, %v3027, 0
  %3076 = vmatprep.subr.mxu0 0.0
  %3077 = vmatpush1.msra.mxu0 %v3029
  %3078 = vmatprep.subr.mxu0 0.0
  %3079 = vmatpush1.msra.mxu0 %v3031
  %3080 = vmatprep.subr.mxu0 0.0
  %3081 = vmatpush1.msra.mxu0 %v3033
  %3082 = vmatprep.subr.mxu0 0.0
  %3083 = vmatpush1.msra.mxu0 %v3035
  %3084 = vmatprep.subr.mxu0 0.0
  %3085 = vmatpush1.msra.mxu0 %v3037
  %3086 = vmatprep.subr.mxu0 0.0
  %3087 = vmatpush1.msra.mxu0 %v3039
  %3088 = vmatprep.subr.mxu0 0.0
  %3089 = vmatpush1.msra.mxu0 %v3041
  %3090 = vmatprep.subr.mxu0 0.0
  %3091 = vmatpush1.msra.mxu0 %v3043
  %3092 = vmatprep.subr.mxu0 0.0
  %3093 = vmatpush1.msra.mxu0 0.0
  %3094 = vmatprep.subr.mxu0 0.0
  %3095 = vmatpush1.msra.mxu0 0.0
  %3096 = vmatprep.subr.mxu0 0.0
  %3097 = vmatpush1.msra.mxu0 0.0
  %3098 = vmatprep.subr.mxu0 0.0
  %3099 = vmatpush1.msra.mxu0 0.0
  %3100 = vmatprep.subr.mxu0 0.0
  %3101 = vmatpush1.msra.mxu0 0.0
  %3102 = vmatprep.subr.mxu0 0.0
  %3103 = vmatpush1.msra.mxu0 0.0
  %3104 = vmatprep.subr.mxu0 0.0
  %3105 = vmatpush1.msra.mxu0 0.0
  %3106 = vmatprep.subr.mxu0 0.0
  %3107 = vmatpush1.msra.mxu0 0.0
  %3108 = vmatprep.subr.mxu0 0.0
  %3109 = vmatpush1.msra.mxu0 0.0
  %3110 = vmatprep.subr.mxu0 0.0
  %3111 = vmatpush1.msra.mxu0 0.0
  %3112 = vmatprep.subr.mxu0 0.0
  %3113 = vmatpush1.msra.mxu0 0.0
  %3114 = vmatprep.subr.mxu0 0.0
  %3115 = vmatpush1.msra.mxu0 0.0
  %3116 = vmatprep.subr.mxu0 0.0
  %3117 = vmatpush1.msra.mxu0 0.0
  %3118 = vmatprep.subr.mxu0 0.0
  %3119 = vmatpush1.msra.mxu0 0.0
  %3120 = vmatprep.subr.mxu0 0.0
  %3121 = vmatpush1.msra.mxu0 0.0
  %3122 = vmatprep.subr.mxu0 0.0
  %3123 = vmatpush1.msra.mxu0 0.0
  %3124 = vmatprep.subr.mxu0 0.0
  %3125 = vmatpush1.msra.mxu0 0.0
  %3126 = vmatprep.subr.mxu0 0.0
  %3127 = vmatpush1.msra.mxu0 0.0
  %3128 = vmatprep.subr.mxu0 0.0
  %3129 = vmatpush1.msra.mxu0 0.0
  %3130 = vmatprep.subr.mxu0 0.0
  %3131 = vmatpush1.msra.mxu0 0.0
  %3132 = vmatprep.subr.mxu0 0.0
  %3133 = vmatpush1.msra.mxu0 0.0
  %3134 = vmatprep.subr.mxu0 0.0
  %3135 = vmatpush1.msra.mxu0 0.0
  %3136 = vmatprep.subr.mxu0 0.0
  %3137 = vmatpush1.msra.mxu0 0.0
  %3138 = vmatprep.subr.mxu0 0.0
  %3139 = vmatpush1.msra.mxu0 0.0
  %3140 = vmatprep.mubr.f32.mxu0 0.0
  %3141 = vmatmul.mubr.f32.gmra.mrb[0].mxu0 %v3053
  %v3142 = vpop.f32.mrb[0].mxu0
  %v3143 = vadd.f32 0.0, %v3142
  %v3144 = vpop.f32.mrb[0].mxu0
  %3145 = vmatprep.mubr.f32.mxu0 0.0
  %3146 = vmatmul.mubr.f32.gmra.mrb[0].mxu0 %v3056
  %v3147 = vpop.f32.mrb[0].mxu0
  %v3148 = vadd.f32 0.0, %v3147
  %v3149 = vpop.f32.mrb[0].mxu0
  %3150 = vmatprep.mubr.f32.mxu0 0.0
  %3151 = vmatmul.mubr.f32.gmra.mrb[0].mxu0 %v3059
  %v3152 = vpop.f32.mrb[0].mxu0
  %v3153 = vadd.f32 0.0, %v3152
  %v3154 = vpop.f32.mrb[0].mxu0
  %3155 = vmatprep.mubr.f32.mxu0 0.0
  %3156 = vmatmul.mubr.f32.gmra.mrb[0].mxu0 %v3062
  %v3157 = vpop.f32.mrb[0].mxu0
  %v3158 = vadd.f32 0.0, %v3157
  %v3159 = vpop.f32.mrb[0].mxu0
  %3160 = vmatprep.mubr.f32.mxu0 0.0
  %3161 = vmatmul.mubr.f32.gmra.mrb[0].mxu0 %v3065
  %v3162 = vpop.f32.mrb[0].mxu0
  %v3163 = vadd.f32 0.0, %v3162
  %v3164 = vpop.f32.mrb[0].mxu0
  %3165 = vmatprep.mubr.f32.mxu0 0.0
  %3166 = vmatmul.mubr.f32.gmra.mrb[0].mxu0 %v3068
  %v3167 = vpop.f32.mrb[0].mxu0
  %v3168 = vadd.f32 0.0, %v3167
  %v3169 = vpop.f32.mrb[0].mxu0
  %3170 = vmatprep.mubr.f32.mxu0 0.0
  %3171 = vmatmul.mubr.f32.gmra.mrb[0].mxu0 %v3071
  %v3172 = vpop.f32.mrb[0].mxu0
  %v3173 = vadd.f32 0.0, %v3172
  %v3174 = vpop.f32.mrb[0].mxu0
  %3175 = vmatprep.mubr.f32.mxu0 0.0
  %3176 = vmatmul.mubr.f32.gmra.mrb[0].mxu0 %v3074
  %v3177 = vpop.f32.mrb[0].mxu0
  %v3178 = vadd.f32 0.0, %v3177
  %v3179 = vpop.f32.mrb[0].mxu0
  %3180 = vdwg.mxu0
  %3181 = vrot.lane.b32.xlu0 %v585, 120
  %v3182 = vpop.permute.xlu0 %3181
  %3183 = vrot.lane.b32.xlu0 %v586, 120
  %v3184 = vpop.permute.xlu0 %3183
  %3185 = vrot.lane.b32.xlu0 %v587, 120
  %v3186 = vpop.permute.xlu0 %3185
  %3187 = vrot.lane.b32.xlu0 %v588, 120
  %v3188 = vpop.permute.xlu0 %3187
  %3189 = vrot.lane.b32.xlu0 %v589, 120
  %v3190 = vpop.permute.xlu0 %3189
  %3191 = vrot.lane.b32.xlu0 %v590, 120
  %v3192 = vpop.permute.xlu0 %3191
  %3193 = vrot.lane.b32.xlu0 %v591, 120
  %v3194 = vpop.permute.xlu0 %3193
  %3195 = vrot.lane.b32.xlu0 %v592, 120
  %v3196 = vpop.permute.xlu0 %3195
  %3197 = vrot.lane.b32.xlu0 %v539, 88
  %v3198 = vpop.permute.xlu0 %3197
  %3199 = vrot.lane.b32.xlu0 %v544, 88
  %v3200 = vpop.permute.xlu0 %3199
  %3201 = vrot.lane.b32.xlu0 %v549, 88
  %v3202 = vpop.permute.xlu0 %3201
  %3203 = vrot.lane.b32.xlu0 %v554, 88
  %v3204 = vpop.permute.xlu0 %3203
  %3205 = vrot.lane.b32.xlu0 %v559, 88
  %v3206 = vpop.permute.xlu0 %3205
  %3207 = vrot.lane.b32.xlu0 %v564, 88
  %v3208 = vpop.permute.xlu0 %3207
  %3209 = vrot.lane.b32.xlu0 %v569, 88
  %v3210 = vpop.permute.xlu0 %3209
  %3211 = vrot.lane.b32.xlu0 %v574, 88
  %v3212 = vpop.permute.xlu0 %3211
  %v3213 = vsel %vm621, %v3182, 0
  %v3215 = vsel %vm621, %v3184, 0
  %v3217 = vsel %vm621, %v3186, 0
  %v3219 = vsel %vm621, %v3188, 0
  %v3221 = vsel %vm621, %v3190, 0
  %v3223 = vsel %vm621, %v3192, 0
  %v3225 = vsel %vm621, %v3194, 0
  %v3227 = vsel %vm621, %v3196, 0
  %v3229 = vsel %vm621, %v3198, 0
  %v3231 = vsel %vm621, %v3200, 0
  %v3233 = vsel %vm621, %v3202, 0
  %v3235 = vsel %vm621, %v3204, 0
  %v3237 = vsel %vm621, %v3206, 0
  %v3239 = vsel %vm621, %v3208, 0
  %v3241 = vsel %vm621, %v3210, 0
  %v3243 = vsel %vm621, %v3212, 0
  %3245 = vmatprep.subr.mxu0 0.0
  %3246 = vmatpush1.xpose.msra.mxu0 %v3229
  %3247 = vmatprep.subr.mxu0 0.0
  %3248 = vmatpush1.xpose.msra.mxu0 %v3231
  %3249 = vmatprep.subr.mxu0 0.0
  %3250 = vmatpush1.xpose.msra.mxu0 %v3233
  %3251 = vmatprep.subr.mxu0 0.0
  %3252 = vmatpush1.xpose.msra.mxu0 %v3235
  %3253 = vmatprep.subr.mxu0 0.0
  %3254 = vmatpush1.xpose.msra.mxu0 %v3237
  %3255 = vmatprep.subr.mxu0 0.0
  %3256 = vmatpush1.xpose.msra.mxu0 %v3239
  %3257 = vmatprep.subr.mxu0 0.0
  %3258 = vmatpush1.xpose.msra.mxu0 %v3241
  %3259 = vmatprep.subr.mxu0 0.0
  %3260 = vmatpush1.xpose.msra.mxu0 %v3243
  %3261 = vmatprep.subr.mxu0 0.0
  %3262 = vmatpush1.xpose.msra.mxu0 0.0
  %3263 = vmatprep.subr.mxu0 0.0
  %3264 = vmatpush1.xpose.msra.mxu0 0.0
  %3265 = vmatprep.subr.mxu0 0.0
  %3266 = vmatpush1.xpose.msra.mxu0 0.0
  %3267 = vmatprep.subr.mxu0 0.0
  %3268 = vmatpush1.xpose.msra.mxu0 0.0
  %3269 = vmatprep.subr.mxu0 0.0
  %3270 = vmatpush1.xpose.msra.mxu0 0.0
  %3271 = vmatprep.subr.mxu0 0.0
  %3272 = vmatpush1.xpose.msra.mxu0 0.0
  %3273 = vmatprep.subr.mxu0 0.0
  %3274 = vmatpush1.xpose.msra.mxu0 0.0
  %3275 = vmatprep.subr.mxu0 0.0
  %3276 = vmatpush1.xpose.msra.mxu0 0.0
  %3277 = vmatprep.subr.mxu0 0.0
  %3278 = vmatpush1.xpose.msra.mxu0 0.0
  %3279 = vmatprep.subr.mxu0 0.0
  %3280 = vmatpush1.xpose.msra.mxu0 0.0
  %3281 = vmatprep.subr.mxu0 0.0
  %3282 = vmatpush1.xpose.msra.mxu0 0.0
  %3283 = vmatprep.subr.mxu0 0.0
  %3284 = vmatpush1.xpose.msra.mxu0 0.0
  %3285 = vmatprep.subr.mxu0 0.0
  %3286 = vmatpush1.xpose.msra.mxu0 0.0
  %3287 = vmatprep.subr.mxu0 0.0
  %3288 = vmatpush1.xpose.msra.mxu0 0.0
  %3289 = vmatprep.subr.mxu0 0.0
  %3290 = vmatpush1.xpose.msra.mxu0 0.0
  %3291 = vmatprep.subr.mxu0 0.0
  %3292 = vmatpush1.xpose.msra.mxu0 0.0
  %3293 = vmatprep.subr.mxu0 0.0
  %3294 = vmatpush1.xpose.msra.mxu0 0.0
  %3295 = vmatprep.subr.mxu0 0.0
  %3296 = vmatpush1.xpose.msra.mxu0 0.0
  %3297 = vmatprep.subr.mxu0 0.0
  %3298 = vmatpush1.xpose.msra.mxu0 0.0
  %3299 = vmatprep.subr.mxu0 0.0
  %3300 = vmatpush1.xpose.msra.mxu0 0.0
  %3301 = vmatprep.subr.mxu0 0.0
  %3302 = vmatpush1.xpose.msra.mxu0 0.0
  %3303 = vmatprep.subr.mxu0 0.0
  %3304 = vmatpush1.xpose.msra.mxu0 0.0
  %3305 = vmatprep.subr.mxu0 0.0
  %3306 = vmatpush1.xpose.msra.mxu0 0.0
  %3307 = vmatprep.subr.mxu0 0.0
  %3308 = vmatpush1.xpose.msra.mxu0 0.0
  %3309 = vmatprep.mubr.f32.mxu0 0.0
  %3310 = vmatmul.mubr.f32.gmra.mrb[0].mxu0 %v3213
  %v3311 = vpop.f32.mrb[0].mxu0
  %v3312 = vadd.f32 0.0, %v3311
  %v3313 = vpop.f32.mrb[0].mxu0
  %3314 = vmatprep.mubr.f32.mxu0 0.0
  %3315 = vmatmul.mubr.f32.gmra.mrb[0].mxu0 %v3215
  %v3316 = vpop.f32.mrb[0].mxu0
  %v3317 = vadd.f32 0.0, %v3316
  %v3318 = vpop.f32.mrb[0].mxu0
  %3319 = vmatprep.mubr.f32.mxu0 0.0
  %3320 = vmatmul.mubr.f32.gmra.mrb[0].mxu0 %v3217
  %v3321 = vpop.f32.mrb[0].mxu0
  %v3322 = vadd.f32 0.0, %v3321
  %v3323 = vpop.f32.mrb[0].mxu0
  %3324 = vmatprep.mubr.f32.mxu0 0.0
  %3325 = vmatmul.mubr.f32.gmra.mrb[0].mxu0 %v3219
  %v3326 = vpop.f32.mrb[0].mxu0
  %v3327 = vadd.f32 0.0, %v3326
  %v3328 = vpop.f32.mrb[0].mxu0
  %3329 = vmatprep.mubr.f32.mxu0 0.0
  %3330 = vmatmul.mubr.f32.gmra.mrb[0].mxu0 %v3221
  %v3331 = vpop.f32.mrb[0].mxu0
  %v3332 = vadd.f32 0.0, %v3331
  %v3333 = vpop.f32.mrb[0].mxu0
  %3334 = vmatprep.mubr.f32.mxu0 0.0
  %3335 = vmatmul.mubr.f32.gmra.mrb[0].mxu0 %v3223
  %v3336 = vpop.f32.mrb[0].mxu0
  %v3337 = vadd.f32 0.0, %v3336
  %v3338 = vpop.f32.mrb[0].mxu0
  %3339 = vmatprep.mubr.f32.mxu0 0.0
  %3340 = vmatmul.mubr.f32.gmra.mrb[0].mxu0 %v3225
  %v3341 = vpop.f32.mrb[0].mxu0
  %v3342 = vadd.f32 0.0, %v3341
  %v3343 = vpop.f32.mrb[0].mxu0
  %3344 = vmatprep.mubr.f32.mxu0 0.0
  %3345 = vmatmul.mubr.f32.gmra.mrb[0].mxu0 %v3227
  %v3346 = vpop.f32.mrb[0].mxu0
  %v3347 = vadd.f32 0.0, %v3346
  %v3348 = vpop.f32.mrb[0].mxu0
  %3349 = vdwg.mxu0
  %v3350 = vsel %vm767, %v3312, -inf
  %3351 = vmax.xlane.f32.xlu0 %v3350
  %v3352 = vpop.xlane.xlu0 %3351
  %v3353 = vsel %vm767, %v3317, -inf
  %3354 = vmax.xlane.f32.xlu0 %v3353
  %v3355 = vpop.xlane.xlu0 %3354
  %v3356 = vsel %vm767, %v3322, -inf
  %3357 = vmax.xlane.f32.xlu0 %v3356
  %v3358 = vpop.xlane.xlu0 %3357
  %v3359 = vsel %vm767, %v3327, -inf
  %3360 = vmax.xlane.f32.xlu0 %v3359
  %v3361 = vpop.xlane.xlu0 %3360
  %v3362 = vsel %vm767, %v3332, -inf
  %3363 = vmax.xlane.f32.xlu0 %v3362
  %v3364 = vpop.xlane.xlu0 %3363
  %v3365 = vsel %vm767, %v3337, -inf
  %3366 = vmax.xlane.f32.xlu0 %v3365
  %v3367 = vpop.xlane.xlu0 %3366
  %v3368 = vsel %vm767, %v3342, -inf
  %3369 = vmax.xlane.f32.xlu0 %v3368
  %v3370 = vpop.xlane.xlu0 %3369
  %v3371 = vsel %vm767, %v3347, -inf
  %3372 = vmax.xlane.f32.xlu0 %v3371
  %v3373 = vpop.xlane.xlu0 %3372
  %v3374 = vsub.f32 %v3312, %v3352
  %v3375 = vsub.f32 %v3317, %v3355
  %v3376 = vsub.f32 %v3322, %v3358
  %v3377 = vsub.f32 %v3327, %v3361
  %v3378 = vsub.f32 %v3332, %v3364
  %v3379 = vsub.f32 %v3337, %v3367
  %v3380 = vsub.f32 %v3342, %v3370
  %v3381 = vsub.f32 %v3347, %v3373
  %v3382 = vmul.f32 %v3374, 1.442695
  %v3383 = vpow.pop %v3382
  %v3384 = vmul.f32 %v3375, 1.442695
  %v3385 = vpow.pop %v3384
  %v3386 = vmul.f32 %v3376, 1.442695
  %v3387 = vpow.pop %v3386
  %v3388 = vmul.f32 %v3377, 1.442695
  %v3389 = vpow.pop %v3388
  %v3390 = vmul.f32 %v3378, 1.442695
  %v3391 = vpow.pop %v3390
  %v3392 = vmul.f32 %v3379, 1.442695
  %v3393 = vpow.pop %v3392
  %v3394 = vmul.f32 %v3380, 1.442695
  %v3395 = vpow.pop %v3394
  %v3396 = vmul.f32 %v3381, 1.442695
  %v3397 = vpow.pop %v3396
  %v3398 = vsel %vm767, %v3383, 0.0
  %3399 = vadd.xlane.f32.xlu0 %v3398
  %v3400 = vpop.xlane.xlu0 %3399
  %v3401 = vsel %vm767, %v3385, 0.0
  %3402 = vadd.xlane.f32.xlu0 %v3401
  %v3403 = vpop.xlane.xlu0 %3402
  %v3404 = vsel %vm767, %v3387, 0.0
  %3405 = vadd.xlane.f32.xlu0 %v3404
  %v3406 = vpop.xlane.xlu0 %3405
  %v3407 = vsel %vm767, %v3389, 0.0
  %3408 = vadd.xlane.f32.xlu0 %v3407
  %v3409 = vpop.xlane.xlu0 %3408
  %v3410 = vsel %vm767, %v3391, 0.0
  %3411 = vadd.xlane.f32.xlu0 %v3410
  %v3412 = vpop.xlane.xlu0 %3411
  %v3413 = vsel %vm767, %v3393, 0.0
  %3414 = vadd.xlane.f32.xlu0 %v3413
  %v3415 = vpop.xlane.xlu0 %3414
  %v3416 = vsel %vm767, %v3395, 0.0
  %3417 = vadd.xlane.f32.xlu0 %v3416
  %v3418 = vpop.xlane.xlu0 %3417
  %v3419 = vsel %vm767, %v3397, 0.0
  %3420 = vadd.xlane.f32.xlu0 %v3419
  %v3421 = vpop.xlane.xlu0 %3420
  %v3422 = vrcp.pop %v3400
  %v3423 = vmul.f32 %v3383, %v3422
  %v3424 = vrcp.pop %v3403
  %v3425 = vmul.f32 %v3385, %v3424
  %v3426 = vrcp.pop %v3406
  %v3427 = vmul.f32 %v3387, %v3426
  %v3428 = vrcp.pop %v3409
  %v3429 = vmul.f32 %v3389, %v3428
  %v3430 = vrcp.pop %v3412
  %v3431 = vmul.f32 %v3391, %v3430
  %v3432 = vrcp.pop %v3415
  %v3433 = vmul.f32 %v3393, %v3432
  %v3434 = vrcp.pop %v3418
  %v3435 = vmul.f32 %v3395, %v3434
  %v3436 = vrcp.pop %v3421
  %v3437 = vmul.f32 %v3397, %v3436
  %3438 = vrot.lane.b32.xlu0 %v539, 56
  %v3439 = vpop.permute.xlu0 %3438
  %3440 = vrot.lane.b32.xlu0 %v544, 56
  %v3441 = vpop.permute.xlu0 %3440
  %3442 = vrot.lane.b32.xlu0 %v549, 56
  %v3443 = vpop.permute.xlu0 %3442
  %3444 = vrot.lane.b32.xlu0 %v554, 56
  %v3445 = vpop.permute.xlu0 %3444
  %3446 = vrot.lane.b32.xlu0 %v559, 56
  %v3447 = vpop.permute.xlu0 %3446
  %3448 = vrot.lane.b32.xlu0 %v564, 56
  %v3449 = vpop.permute.xlu0 %3448
  %3450 = vrot.lane.b32.xlu0 %v569, 56
  %v3451 = vpop.permute.xlu0 %3450
  %3452 = vrot.lane.b32.xlu0 %v574, 56
  %v3453 = vpop.permute.xlu0 %3452
  %v3463 = vsel %vm767, %v3423, 0
  %v3466 = vsel %vm767, %v3425, 0
  %v3469 = vsel %vm767, %v3427, 0
  %v3472 = vsel %vm767, %v3429, 0
  %v3475 = vsel %vm767, %v3431, 0
  %v3478 = vsel %vm767, %v3433, 0
  %v3481 = vsel %vm767, %v3435, 0
  %v3484 = vsel %vm767, %v3437, 0
  %3486 = vmatprep.subr.mxu0 0.0
  %3487 = vmatpush1.msra.mxu0 %v3439
  %3488 = vmatprep.subr.mxu0 0.0
  %3489 = vmatpush1.msra.mxu0 %v3441
  %3490 = vmatprep.subr.mxu0 0.0
  %3491 = vmatpush1.msra.mxu0 %v3443
  %3492 = vmatprep.subr.mxu0 0.0
  %3493 = vmatpush1.msra.mxu0 %v3445
  %3494 = vmatprep.subr.mxu0 0.0
  %3495 = vmatpush1.msra.mxu0 %v3447
  %3496 = vmatprep.subr.mxu0 0.0
  %3497 = vmatpush1.msra.mxu0 %v3449
  %3498 = vmatprep.subr.mxu0 0.0
  %3499 = vmatpush1.msra.mxu0 %v3451
  %3500 = vmatprep.subr.mxu0 0.0
  %3501 = vmatpush1.msra.mxu0 %v3453
  %3502 = vmatprep.subr.mxu0 0.0
  %3503 = vmatpush1.msra.mxu0 0.0
  %3504 = vmatprep.subr.mxu0 0.0
  %3505 = vmatpush1.msra.mxu0 0.0
  %3506 = vmatprep.subr.mxu0 0.0
  %3507 = vmatpush1.msra.mxu0 0.0
  %3508 = vmatprep.subr.mxu0 0.0
  %3509 = vmatpush1.msra.mxu0 0.0
  %3510 = vmatprep.subr.mxu0 0.0
  %3511 = vmatpush1.msra.mxu0 0.0
  %3512 = vmatprep.subr.mxu0 0.0
  %3513 = vmatpush1.msra.mxu0 0.0
  %3514 = vmatprep.subr.mxu0 0.0
  %3515 = vmatpush1.msra.mxu0 0.0
  %3516 = vmatprep.subr.mxu0 0.0
  %3517 = vmatpush1.msra.mxu0 0.0
  %3518 = vmatprep.subr.mxu0 0.0
  %3519 = vmatpush1.msra.mxu0 0.0
  %3520 = vmatprep.subr.mxu0 0.0
  %3521 = vmatpush1.msra.mxu0 0.0
  %3522 = vmatprep.subr.mxu0 0.0
  %3523 = vmatpush1.msra.mxu0 0.0
  %3524 = vmatprep.subr.mxu0 0.0
  %3525 = vmatpush1.msra.mxu0 0.0
  %3526 = vmatprep.subr.mxu0 0.0
  %3527 = vmatpush1.msra.mxu0 0.0
  %3528 = vmatprep.subr.mxu0 0.0
  %3529 = vmatpush1.msra.mxu0 0.0
  %3530 = vmatprep.subr.mxu0 0.0
  %3531 = vmatpush1.msra.mxu0 0.0
  %3532 = vmatprep.subr.mxu0 0.0
  %3533 = vmatpush1.msra.mxu0 0.0
  %3534 = vmatprep.subr.mxu0 0.0
  %3535 = vmatpush1.msra.mxu0 0.0
  %3536 = vmatprep.subr.mxu0 0.0
  %3537 = vmatpush1.msra.mxu0 0.0
  %3538 = vmatprep.subr.mxu0 0.0
  %3539 = vmatpush1.msra.mxu0 0.0
  %3540 = vmatprep.subr.mxu0 0.0
  %3541 = vmatpush1.msra.mxu0 0.0
  %3542 = vmatprep.subr.mxu0 0.0
  %3543 = vmatpush1.msra.mxu0 0.0
  %3544 = vmatprep.subr.mxu0 0.0
  %3545 = vmatpush1.msra.mxu0 0.0
  %3546 = vmatprep.subr.mxu0 0.0
  %3547 = vmatpush1.msra.mxu0 0.0
  %3548 = vmatprep.subr.mxu0 0.0
  %3549 = vmatpush1.msra.mxu0 0.0
  %3550 = vmatprep.mubr.f32.mxu0 0.0
  %3551 = vmatmul.mubr.f32.gmra.mrb[0].mxu0 %v3463
  %v3552 = vpop.f32.mrb[0].mxu0
  %v3553 = vadd.f32 0.0, %v3552
  %v3554 = vpop.f32.mrb[0].mxu0
  %3555 = vmatprep.mubr.f32.mxu0 0.0
  %3556 = vmatmul.mubr.f32.gmra.mrb[0].mxu0 %v3466
  %v3557 = vpop.f32.mrb[0].mxu0
  %v3558 = vadd.f32 0.0, %v3557
  %v3559 = vpop.f32.mrb[0].mxu0
  %3560 = vmatprep.mubr.f32.mxu0 0.0
  %3561 = vmatmul.mubr.f32.gmra.mrb[0].mxu0 %v3469
  %v3562 = vpop.f32.mrb[0].mxu0
  %v3563 = vadd.f32 0.0, %v3562
  %v3564 = vpop.f32.mrb[0].mxu0
  %3565 = vmatprep.mubr.f32.mxu0 0.0
  %3566 = vmatmul.mubr.f32.gmra.mrb[0].mxu0 %v3472
  %v3567 = vpop.f32.mrb[0].mxu0
  %v3568 = vadd.f32 0.0, %v3567
  %v3569 = vpop.f32.mrb[0].mxu0
  %3570 = vmatprep.mubr.f32.mxu0 0.0
  %3571 = vmatmul.mubr.f32.gmra.mrb[0].mxu0 %v3475
  %v3572 = vpop.f32.mrb[0].mxu0
  %v3573 = vadd.f32 0.0, %v3572
  %v3574 = vpop.f32.mrb[0].mxu0
  %3575 = vmatprep.mubr.f32.mxu0 0.0
  %3576 = vmatmul.mubr.f32.gmra.mrb[0].mxu0 %v3478
  %v3577 = vpop.f32.mrb[0].mxu0
  %v3578 = vadd.f32 0.0, %v3577
  %v3579 = vpop.f32.mrb[0].mxu0
  %3580 = vmatprep.mubr.f32.mxu0 0.0
  %3581 = vmatmul.mubr.f32.gmra.mrb[0].mxu0 %v3481
  %v3582 = vpop.f32.mrb[0].mxu0
  %v3583 = vadd.f32 0.0, %v3582
  %v3584 = vpop.f32.mrb[0].mxu0
  %3585 = vmatprep.mubr.f32.mxu0 0.0
  %3586 = vmatmul.mubr.f32.gmra.mrb[0].mxu0 %v3484
  %v3587 = vpop.f32.mrb[0].mxu0
  %v3588 = vadd.f32 0.0, %v3587
  %v3589 = vpop.f32.mrb[0].mxu0
  %3590 = vdwg.mxu0
  %v3592 = vsel %vm621, %v3553, 0
  %v3595 = vsel %vm621, %v3558, 0
  %v3598 = vsel %vm621, %v3563, 0
  %v3601 = vsel %vm621, %v3568, 0
  %v3604 = vsel %vm621, %v3573, 0
  %v3607 = vsel %vm621, %v3578, 0
  %v3610 = vsel %vm621, %v3583, 0
  %v3613 = vsel %vm621, %v3588, 0
  %3615 = vmatprep.subr.mxu0 0.0
  %3616 = vmatpush1.msra.mxu0 %v594
  %3617 = vmatprep.subr.mxu0 0.0
  %3618 = vmatpush1.msra.mxu0 0.0
  %3619 = vmatprep.subr.mxu0 0.0
  %3620 = vmatpush1.msra.mxu0 0.0
  %3621 = vmatprep.subr.mxu0 0.0
  %3622 = vmatpush1.msra.mxu0 0.0
  %3623 = vmatprep.subr.mxu0 0.0
  %3624 = vmatpush1.msra.mxu0 0.0
  %3625 = vmatprep.subr.mxu0 0.0
  %3626 = vmatpush1.msra.mxu0 0.0
  %3627 = vmatprep.subr.mxu0 0.0
  %3628 = vmatpush1.msra.mxu0 0.0
  %3629 = vmatprep.subr.mxu0 0.0
  %3630 = vmatpush1.msra.mxu0 0.0
  %3631 = vmatprep.subr.mxu0 0.0
  %3632 = vmatpush1.msra.mxu0 0.0
  %3633 = vmatprep.subr.mxu0 0.0
  %3634 = vmatpush1.msra.mxu0 0.0
  %3635 = vmatprep.subr.mxu0 0.0
  %3636 = vmatpush1.msra.mxu0 0.0
  %3637 = vmatprep.subr.mxu0 0.0
  %3638 = vmatpush1.msra.mxu0 0.0
  %3639 = vmatprep.subr.mxu0 0.0
  %3640 = vmatpush1.msra.mxu0 0.0
  %3641 = vmatprep.subr.mxu0 0.0
  %3642 = vmatpush1.msra.mxu0 0.0
  %3643 = vmatprep.subr.mxu0 0.0
  %3644 = vmatpush1.msra.mxu0 0.0
  %3645 = vmatprep.subr.mxu0 0.0
  %3646 = vmatpush1.msra.mxu0 0.0
  %3647 = vmatprep.subr.mxu0 0.0
  %3648 = vmatpush1.msra.mxu0 0.0
  %3649 = vmatprep.subr.mxu0 0.0
  %3650 = vmatpush1.msra.mxu0 0.0
  %3651 = vmatprep.subr.mxu0 0.0
  %3652 = vmatpush1.msra.mxu0 0.0
  %3653 = vmatprep.subr.mxu0 0.0
  %3654 = vmatpush1.msra.mxu0 0.0
  %3655 = vmatprep.subr.mxu0 0.0
  %3656 = vmatpush1.msra.mxu0 0.0
  %3657 = vmatprep.subr.mxu0 0.0
  %3658 = vmatpush1.msra.mxu0 0.0
  %3659 = vmatprep.subr.mxu0 0.0
  %3660 = vmatpush1.msra.mxu0 0.0
  %3661 = vmatprep.subr.mxu0 0.0
  %3662 = vmatpush1.msra.mxu0 0.0
  %3663 = vmatprep.subr.mxu0 0.0
  %3664 = vmatpush1.msra.mxu0 0.0
  %3665 = vmatprep.subr.mxu0 0.0
  %3666 = vmatpush1.msra.mxu0 0.0
  %3667 = vmatprep.subr.mxu0 0.0
  %3668 = vmatpush1.msra.mxu0 0.0
  %3669 = vmatprep.subr.mxu0 0.0
  %3670 = vmatpush1.msra.mxu0 0.0
  %3671 = vmatprep.subr.mxu0 0.0
  %3672 = vmatpush1.msra.mxu0 0.0
  %3673 = vmatprep.subr.mxu0 0.0
  %3674 = vmatpush1.msra.mxu0 0.0
  %3675 = vmatprep.subr.mxu0 0.0
  %3676 = vmatpush1.msra.mxu0 0.0
  %3677 = vmatprep.subr.mxu0 0.0
  %3678 = vmatpush1.msra.mxu0 0.0
  %3679 = vmatprep.mubr.f32.mxu0 0.0
  %3680 = vmatmul.mubr.f32.gmra.mrb[0].mxu0 %v3592
  %v3681 = vpop.f32.mrb[0].mxu0
  %v3682 = vadd.f32 0.0, %v3681
  %v3683 = vpop.f32.mrb[0].mxu0
  %3684 = vmatprep.mubr.f32.mxu0 0.0
  %3685 = vmatmul.mubr.f32.gmra.mrb[0].mxu0 %v3595
  %v3686 = vpop.f32.mrb[0].mxu0
  %v3687 = vadd.f32 0.0, %v3686
  %v3688 = vpop.f32.mrb[0].mxu0
  %3689 = vmatprep.mubr.f32.mxu0 0.0
  %3690 = vmatmul.mubr.f32.gmra.mrb[0].mxu0 %v3598
  %v3691 = vpop.f32.mrb[0].mxu0
  %v3692 = vadd.f32 0.0, %v3691
  %v3693 = vpop.f32.mrb[0].mxu0
  %3694 = vmatprep.mubr.f32.mxu0 0.0
  %3695 = vmatmul.mubr.f32.gmra.mrb[0].mxu0 %v3601
  %v3696 = vpop.f32.mrb[0].mxu0
  %v3697 = vadd.f32 0.0, %v3696
  %v3698 = vpop.f32.mrb[0].mxu0
  %3699 = vmatprep.mubr.f32.mxu0 0.0
  %3700 = vmatmul.mubr.f32.gmra.mrb[0].mxu0 %v3604
  %v3701 = vpop.f32.mrb[0].mxu0
  %v3702 = vadd.f32 0.0, %v3701
  %v3703 = vpop.f32.mrb[0].mxu0
  %3704 = vmatprep.mubr.f32.mxu0 0.0
  %3705 = vmatmul.mubr.f32.gmra.mrb[0].mxu0 %v3607
  %v3706 = vpop.f32.mrb[0].mxu0
  %v3707 = vadd.f32 0.0, %v3706
  %v3708 = vpop.f32.mrb[0].mxu0
  %3709 = vmatprep.mubr.f32.mxu0 0.0
  %3710 = vmatmul.mubr.f32.gmra.mrb[0].mxu0 %v3610
  %v3711 = vpop.f32.mrb[0].mxu0
  %v3712 = vadd.f32 0.0, %v3711
  %v3713 = vpop.f32.mrb[0].mxu0
  %3714 = vmatprep.mubr.f32.mxu0 0.0
  %3715 = vmatmul.mubr.f32.gmra.mrb[0].mxu0 %v3613
  %v3716 = vpop.f32.mrb[0].mxu0
  %v3717 = vadd.f32 0.0, %v3716
  %v3718 = vpop.f32.mrb[0].mxu0
  %3719 = vdwg.mxu0
  %v3721 = vsel %vm621, %v3143, 0
  %v3724 = vsel %vm621, %v3148, 0
  %v3727 = vsel %vm621, %v3153, 0
  %v3730 = vsel %vm621, %v3158, 0
  %v3733 = vsel %vm621, %v3163, 0
  %v3736 = vsel %vm621, %v3168, 0
  %v3739 = vsel %vm621, %v3173, 0
  %v3742 = vsel %vm621, %v3178, 0
  %3744 = vmatprep.subr.mxu0 0.0
  %3745 = vmatpush1.msra.mxu0 %v593
  %3746 = vmatprep.subr.mxu0 0.0
  %3747 = vmatpush1.msra.mxu0 0.0
  %3748 = vmatprep.subr.mxu0 0.0
  %3749 = vmatpush1.msra.mxu0 0.0
  %3750 = vmatprep.subr.mxu0 0.0
  %3751 = vmatpush1.msra.mxu0 0.0
  %3752 = vmatprep.subr.mxu0 0.0
  %3753 = vmatpush1.msra.mxu0 0.0
  %3754 = vmatprep.subr.mxu0 0.0
  %3755 = vmatpush1.msra.mxu0 0.0
  %3756 = vmatprep.subr.mxu0 0.0
  %3757 = vmatpush1.msra.mxu0 0.0
  %3758 = vmatprep.subr.mxu0 0.0
  %3759 = vmatpush1.msra.mxu0 0.0
  %3760 = vmatprep.subr.mxu0 0.0
  %3761 = vmatpush1.msra.mxu0 0.0
  %3762 = vmatprep.subr.mxu0 0.0
  %3763 = vmatpush1.msra.mxu0 0.0
  %3764 = vmatprep.subr.mxu0 0.0
  %3765 = vmatpush1.msra.mxu0 0.0
  %3766 = vmatprep.subr.mxu0 0.0
  %3767 = vmatpush1.msra.mxu0 0.0
  %3768 = vmatprep.subr.mxu0 0.0
  %3769 = vmatpush1.msra.mxu0 0.0
  %3770 = vmatprep.subr.mxu0 0.0
  %3771 = vmatpush1.msra.mxu0 0.0
  %3772 = vmatprep.subr.mxu0 0.0
  %3773 = vmatpush1.msra.mxu0 0.0
  %3774 = vmatprep.subr.mxu0 0.0
  %3775 = vmatpush1.msra.mxu0 0.0
  %3776 = vmatprep.subr.mxu0 0.0
  %3777 = vmatpush1.msra.mxu0 0.0
  %3778 = vmatprep.subr.mxu0 0.0
  %3779 = vmatpush1.msra.mxu0 0.0
  %3780 = vmatprep.subr.mxu0 0.0
  %3781 = vmatpush1.msra.mxu0 0.0
  %3782 = vmatprep.subr.mxu0 0.0
  %3783 = vmatpush1.msra.mxu0 0.0
  %3784 = vmatprep.subr.mxu0 0.0
  %3785 = vmatpush1.msra.mxu0 0.0
  %3786 = vmatprep.subr.mxu0 0.0
  %3787 = vmatpush1.msra.mxu0 0.0
  %3788 = vmatprep.subr.mxu0 0.0
  %3789 = vmatpush1.msra.mxu0 0.0
  %3790 = vmatprep.subr.mxu0 0.0
  %3791 = vmatpush1.msra.mxu0 0.0
  %3792 = vmatprep.subr.mxu0 0.0
  %3793 = vmatpush1.msra.mxu0 0.0
  %3794 = vmatprep.subr.mxu0 0.0
  %3795 = vmatpush1.msra.mxu0 0.0
  %3796 = vmatprep.subr.mxu0 0.0
  %3797 = vmatpush1.msra.mxu0 0.0
  %3798 = vmatprep.subr.mxu0 0.0
  %3799 = vmatpush1.msra.mxu0 0.0
  %3800 = vmatprep.subr.mxu0 0.0
  %3801 = vmatpush1.msra.mxu0 0.0
  %3802 = vmatprep.subr.mxu0 0.0
  %3803 = vmatpush1.msra.mxu0 0.0
  %3804 = vmatprep.subr.mxu0 0.0
  %3805 = vmatpush1.msra.mxu0 0.0
  %3806 = vmatprep.subr.mxu0 0.0
  %3807 = vmatpush1.msra.mxu0 0.0
  %3808 = vmatprep.mubr.f32.mxu0 0.0
  %3809 = vmatmul.mubr.f32.gmra.mrb[0].mxu0 %v3721
  %v3810 = vpop.f32.mrb[0].mxu0
  %v3811 = vadd.f32 %v3682, %v3810
  %v3812 = vpop.f32.mrb[0].mxu0
  %3813 = vmatprep.mubr.f32.mxu0 0.0
  %3814 = vmatmul.mubr.f32.gmra.mrb[0].mxu0 %v3724
  %v3815 = vpop.f32.mrb[0].mxu0
  %v3816 = vadd.f32 %v3687, %v3815
  %v3817 = vpop.f32.mrb[0].mxu0
  %3818 = vmatprep.mubr.f32.mxu0 0.0
  %3819 = vmatmul.mubr.f32.gmra.mrb[0].mxu0 %v3727
  %v3820 = vpop.f32.mrb[0].mxu0
  %v3821 = vadd.f32 %v3692, %v3820
  %v3822 = vpop.f32.mrb[0].mxu0
  %3823 = vmatprep.mubr.f32.mxu0 0.0
  %3824 = vmatmul.mubr.f32.gmra.mrb[0].mxu0 %v3730
  %v3825 = vpop.f32.mrb[0].mxu0
  %v3826 = vadd.f32 %v3697, %v3825
  %v3827 = vpop.f32.mrb[0].mxu0
  %3828 = vmatprep.mubr.f32.mxu0 0.0
  %3829 = vmatmul.mubr.f32.gmra.mrb[0].mxu0 %v3733
  %v3830 = vpop.f32.mrb[0].mxu0
  %v3831 = vadd.f32 %v3702, %v3830
  %v3832 = vpop.f32.mrb[0].mxu0
  %3833 = vmatprep.mubr.f32.mxu0 0.0
  %3834 = vmatmul.mubr.f32.gmra.mrb[0].mxu0 %v3736
  %v3835 = vpop.f32.mrb[0].mxu0
  %v3836 = vadd.f32 %v3707, %v3835
  %v3837 = vpop.f32.mrb[0].mxu0
  %3838 = vmatprep.mubr.f32.mxu0 0.0
  %3839 = vmatmul.mubr.f32.gmra.mrb[0].mxu0 %v3739
  %v3840 = vpop.f32.mrb[0].mxu0
  %v3841 = vadd.f32 %v3712, %v3840
  %v3842 = vpop.f32.mrb[0].mxu0
  %3843 = vmatprep.mubr.f32.mxu0 0.0
  %3844 = vmatmul.mubr.f32.gmra.mrb[0].mxu0 %v3742
  %v3845 = vpop.f32.mrb[0].mxu0
  %v3846 = vadd.f32 %v3717, %v3845
  %v3847 = vpop.f32.mrb[0].mxu0
  %3848 = vdwg.mxu0
  %3849 = vrot.lane.b32.xlu0 %v585, 112
  %v3850 = vpop.permute.xlu0 %3849
  %3851 = vrot.lane.b32.xlu0 %v586, 112
  %v3852 = vpop.permute.xlu0 %3851
  %3853 = vrot.lane.b32.xlu0 %v587, 112
  %v3854 = vpop.permute.xlu0 %3853
  %3855 = vrot.lane.b32.xlu0 %v588, 112
  %v3856 = vpop.permute.xlu0 %3855
  %3857 = vrot.lane.b32.xlu0 %v589, 112
  %v3858 = vpop.permute.xlu0 %3857
  %3859 = vrot.lane.b32.xlu0 %v590, 112
  %v3860 = vpop.permute.xlu0 %3859
  %3861 = vrot.lane.b32.xlu0 %v591, 112
  %v3862 = vpop.permute.xlu0 %3861
  %3863 = vrot.lane.b32.xlu0 %v592, 112
  %v3864 = vpop.permute.xlu0 %3863
  %3865 = vrot.lane.b32.xlu0 %v539, 80
  %v3866 = vpop.permute.xlu0 %3865
  %3867 = vrot.lane.b32.xlu0 %v544, 80
  %v3868 = vpop.permute.xlu0 %3867
  %3869 = vrot.lane.b32.xlu0 %v549, 80
  %v3870 = vpop.permute.xlu0 %3869
  %3871 = vrot.lane.b32.xlu0 %v554, 80
  %v3872 = vpop.permute.xlu0 %3871
  %3873 = vrot.lane.b32.xlu0 %v559, 80
  %v3874 = vpop.permute.xlu0 %3873
  %3875 = vrot.lane.b32.xlu0 %v564, 80
  %v3876 = vpop.permute.xlu0 %3875
  %3877 = vrot.lane.b32.xlu0 %v569, 80
  %v3878 = vpop.permute.xlu0 %3877
  %3879 = vrot.lane.b32.xlu0 %v574, 80
  %v3880 = vpop.permute.xlu0 %3879
  %v3881 = vsel %vm621, %v3850, 0
  %v3883 = vsel %vm621, %v3852, 0
  %v3885 = vsel %vm621, %v3854, 0
  %v3887 = vsel %vm621, %v3856, 0
  %v3889 = vsel %vm621, %v3858, 0
  %v3891 = vsel %vm621, %v3860, 0
  %v3893 = vsel %vm621, %v3862, 0
  %v3895 = vsel %vm621, %v3864, 0
  %v3897 = vsel %vm621, %v3866, 0
  %v3899 = vsel %vm621, %v3868, 0
  %v3901 = vsel %vm621, %v3870, 0
  %v3903 = vsel %vm621, %v3872, 0
  %v3905 = vsel %vm621, %v3874, 0
  %v3907 = vsel %vm621, %v3876, 0
  %v3909 = vsel %vm621, %v3878, 0
  %v3911 = vsel %vm621, %v3880, 0
  %3913 = vmatprep.subr.mxu0 0.0
  %3914 = vmatpush1.xpose.msra.mxu0 %v3897
  %3915 = vmatprep.subr.mxu0 0.0
  %3916 = vmatpush1.xpose.msra.mxu0 %v3899
  %3917 = vmatprep.subr.mxu0 0.0
  %3918 = vmatpush1.xpose.msra.mxu0 %v3901
  %3919 = vmatprep.subr.mxu0 0.0
  %3920 = vmatpush1.xpose.msra.mxu0 %v3903
  %3921 = vmatprep.subr.mxu0 0.0
  %3922 = vmatpush1.xpose.msra.mxu0 %v3905
  %3923 = vmatprep.subr.mxu0 0.0
  %3924 = vmatpush1.xpose.msra.mxu0 %v3907
  %3925 = vmatprep.subr.mxu0 0.0
  %3926 = vmatpush1.xpose.msra.mxu0 %v3909
  %3927 = vmatprep.subr.mxu0 0.0
  %3928 = vmatpush1.xpose.msra.mxu0 %v3911
  %3929 = vmatprep.subr.mxu0 0.0
  %3930 = vmatpush1.xpose.msra.mxu0 0.0
  %3931 = vmatprep.subr.mxu0 0.0
  %3932 = vmatpush1.xpose.msra.mxu0 0.0
  %3933 = vmatprep.subr.mxu0 0.0
  %3934 = vmatpush1.xpose.msra.mxu0 0.0
  %3935 = vmatprep.subr.mxu0 0.0
  %3936 = vmatpush1.xpose.msra.mxu0 0.0
  %3937 = vmatprep.subr.mxu0 0.0
  %3938 = vmatpush1.xpose.msra.mxu0 0.0
  %3939 = vmatprep.subr.mxu0 0.0
  %3940 = vmatpush1.xpose.msra.mxu0 0.0
  %3941 = vmatprep.subr.mxu0 0.0
  %3942 = vmatpush1.xpose.msra.mxu0 0.0
  %3943 = vmatprep.subr.mxu0 0.0
  %3944 = vmatpush1.xpose.msra.mxu0 0.0
  %3945 = vmatprep.subr.mxu0 0.0
  %3946 = vmatpush1.xpose.msra.mxu0 0.0
  %3947 = vmatprep.subr.mxu0 0.0
  %3948 = vmatpush1.xpose.msra.mxu0 0.0
  %3949 = vmatprep.subr.mxu0 0.0
  %3950 = vmatpush1.xpose.msra.mxu0 0.0
  %3951 = vmatprep.subr.mxu0 0.0
  %3952 = vmatpush1.xpose.msra.mxu0 0.0
  %3953 = vmatprep.subr.mxu0 0.0
  %3954 = vmatpush1.xpose.msra.mxu0 0.0
  %3955 = vmatprep.subr.mxu0 0.0
  %3956 = vmatpush1.xpose.msra.mxu0 0.0
  %3957 = vmatprep.subr.mxu0 0.0
  %3958 = vmatpush1.xpose.msra.mxu0 0.0
  %3959 = vmatprep.subr.mxu0 0.0
  %3960 = vmatpush1.xpose.msra.mxu0 0.0
  %3961 = vmatprep.subr.mxu0 0.0
  %3962 = vmatpush1.xpose.msra.mxu0 0.0
  %3963 = vmatprep.subr.mxu0 0.0
  %3964 = vmatpush1.xpose.msra.mxu0 0.0
  %3965 = vmatprep.subr.mxu0 0.0
  %3966 = vmatpush1.xpose.msra.mxu0 0.0
  %3967 = vmatprep.subr.mxu0 0.0
  %3968 = vmatpush1.xpose.msra.mxu0 0.0
  %3969 = vmatprep.subr.mxu0 0.0
  %3970 = vmatpush1.xpose.msra.mxu0 0.0
  %3971 = vmatprep.subr.mxu0 0.0
  %3972 = vmatpush1.xpose.msra.mxu0 0.0
  %3973 = vmatprep.subr.mxu0 0.0
  %3974 = vmatpush1.xpose.msra.mxu0 0.0
  %3975 = vmatprep.subr.mxu0 0.0
  %3976 = vmatpush1.xpose.msra.mxu0 0.0
  %3977 = vmatprep.mubr.f32.mxu0 0.0
  %3978 = vmatmul.mubr.f32.gmra.mrb[0].mxu0 %v3881
  %v3979 = vpop.f32.mrb[0].mxu0
  %v3980 = vadd.f32 0.0, %v3979
  %v3981 = vpop.f32.mrb[0].mxu0
  %3982 = vmatprep.mubr.f32.mxu0 0.0
  %3983 = vmatmul.mubr.f32.gmra.mrb[0].mxu0 %v3883
  %v3984 = vpop.f32.mrb[0].mxu0
  %v3985 = vadd.f32 0.0, %v3984
  %v3986 = vpop.f32.mrb[0].mxu0
  %3987 = vmatprep.mubr.f32.mxu0 0.0
  %3988 = vmatmul.mubr.f32.gmra.mrb[0].mxu0 %v3885
  %v3989 = vpop.f32.mrb[0].mxu0
  %v3990 = vadd.f32 0.0, %v3989
  %v3991 = vpop.f32.mrb[0].mxu0
  %3992 = vmatprep.mubr.f32.mxu0 0.0
  %3993 = vmatmul.mubr.f32.gmra.mrb[0].mxu0 %v3887
  %v3994 = vpop.f32.mrb[0].mxu0
  %v3995 = vadd.f32 0.0, %v3994
  %v3996 = vpop.f32.mrb[0].mxu0
  %3997 = vmatprep.mubr.f32.mxu0 0.0
  %3998 = vmatmul.mubr.f32.gmra.mrb[0].mxu0 %v3889
  %v3999 = vpop.f32.mrb[0].mxu0
  %v4000 = vadd.f32 0.0, %v3999
  %v4001 = vpop.f32.mrb[0].mxu0
  %4002 = vmatprep.mubr.f32.mxu0 0.0
  %4003 = vmatmul.mubr.f32.gmra.mrb[0].mxu0 %v3891
  %v4004 = vpop.f32.mrb[0].mxu0
  %v4005 = vadd.f32 0.0, %v4004
  %v4006 = vpop.f32.mrb[0].mxu0
  %4007 = vmatprep.mubr.f32.mxu0 0.0
  %4008 = vmatmul.mubr.f32.gmra.mrb[0].mxu0 %v3893
  %v4009 = vpop.f32.mrb[0].mxu0
  %v4010 = vadd.f32 0.0, %v4009
  %v4011 = vpop.f32.mrb[0].mxu0
  %4012 = vmatprep.mubr.f32.mxu0 0.0
  %4013 = vmatmul.mubr.f32.gmra.mrb[0].mxu0 %v3895
  %v4014 = vpop.f32.mrb[0].mxu0
  %v4015 = vadd.f32 0.0, %v4014
  %v4016 = vpop.f32.mrb[0].mxu0
  %4017 = vdwg.mxu0
  %v4018 = vsel %vm767, %v3980, -inf
  %4019 = vmax.xlane.f32.xlu0 %v4018
  %v4020 = vpop.xlane.xlu0 %4019
  %v4021 = vsel %vm767, %v3985, -inf
  %4022 = vmax.xlane.f32.xlu0 %v4021
  %v4023 = vpop.xlane.xlu0 %4022
  %v4024 = vsel %vm767, %v3990, -inf
  %4025 = vmax.xlane.f32.xlu0 %v4024
  %v4026 = vpop.xlane.xlu0 %4025
  %v4027 = vsel %vm767, %v3995, -inf
  %4028 = vmax.xlane.f32.xlu0 %v4027
  %v4029 = vpop.xlane.xlu0 %4028
  %v4030 = vsel %vm767, %v4000, -inf
  %4031 = vmax.xlane.f32.xlu0 %v4030
  %v4032 = vpop.xlane.xlu0 %4031
  %v4033 = vsel %vm767, %v4005, -inf
  %4034 = vmax.xlane.f32.xlu0 %v4033
  %v4035 = vpop.xlane.xlu0 %4034
  %v4036 = vsel %vm767, %v4010, -inf
  %4037 = vmax.xlane.f32.xlu0 %v4036
  %v4038 = vpop.xlane.xlu0 %4037
  %v4039 = vsel %vm767, %v4015, -inf
  %4040 = vmax.xlane.f32.xlu0 %v4039
  %v4041 = vpop.xlane.xlu0 %4040
  %v4042 = vsub.f32 %v3980, %v4020
  %v4043 = vsub.f32 %v3985, %v4023
  %v4044 = vsub.f32 %v3990, %v4026
  %v4045 = vsub.f32 %v3995, %v4029
  %v4046 = vsub.f32 %v4000, %v4032
  %v4047 = vsub.f32 %v4005, %v4035
  %v4048 = vsub.f32 %v4010, %v4038
  %v4049 = vsub.f32 %v4015, %v4041
  %v4050 = vmul.f32 %v4042, 1.442695
  %v4051 = vpow.pop %v4050
  %v4052 = vmul.f32 %v4043, 1.442695
  %v4053 = vpow.pop %v4052
  %v4054 = vmul.f32 %v4044, 1.442695
  %v4055 = vpow.pop %v4054
  %v4056 = vmul.f32 %v4045, 1.442695
  %v4057 = vpow.pop %v4056
  %v4058 = vmul.f32 %v4046, 1.442695
  %v4059 = vpow.pop %v4058
  %v4060 = vmul.f32 %v4047, 1.442695
  %v4061 = vpow.pop %v4060
  %v4062 = vmul.f32 %v4048, 1.442695
  %v4063 = vpow.pop %v4062
  %v4064 = vmul.f32 %v4049, 1.442695
  %v4065 = vpow.pop %v4064
  %v4066 = vsel %vm767, %v4051, 0.0
  %4067 = vadd.xlane.f32.xlu0 %v4066
  %v4068 = vpop.xlane.xlu0 %4067
  %v4069 = vsel %vm767, %v4053, 0.0
  %4070 = vadd.xlane.f32.xlu0 %v4069
  %v4071 = vpop.xlane.xlu0 %4070
  %v4072 = vsel %vm767, %v4055, 0.0
  %4073 = vadd.xlane.f32.xlu0 %v4072
  %v4074 = vpop.xlane.xlu0 %4073
  %v4075 = vsel %vm767, %v4057, 0.0
  %4076 = vadd.xlane.f32.xlu0 %v4075
  %v4077 = vpop.xlane.xlu0 %4076
  %v4078 = vsel %vm767, %v4059, 0.0
  %4079 = vadd.xlane.f32.xlu0 %v4078
  %v4080 = vpop.xlane.xlu0 %4079
  %v4081 = vsel %vm767, %v4061, 0.0
  %4082 = vadd.xlane.f32.xlu0 %v4081
  %v4083 = vpop.xlane.xlu0 %4082
  %v4084 = vsel %vm767, %v4063, 0.0
  %4085 = vadd.xlane.f32.xlu0 %v4084
  %v4086 = vpop.xlane.xlu0 %4085
  %v4087 = vsel %vm767, %v4065, 0.0
  %4088 = vadd.xlane.f32.xlu0 %v4087
  %v4089 = vpop.xlane.xlu0 %4088
  %v4090 = vrcp.pop %v4068
  %v4091 = vmul.f32 %v4051, %v4090
  %v4092 = vrcp.pop %v4071
  %v4093 = vmul.f32 %v4053, %v4092
  %v4094 = vrcp.pop %v4074
  %v4095 = vmul.f32 %v4055, %v4094
  %v4096 = vrcp.pop %v4077
  %v4097 = vmul.f32 %v4057, %v4096
  %v4098 = vrcp.pop %v4080
  %v4099 = vmul.f32 %v4059, %v4098
  %v4100 = vrcp.pop %v4083
  %v4101 = vmul.f32 %v4061, %v4100
  %v4102 = vrcp.pop %v4086
  %v4103 = vmul.f32 %v4063, %v4102
  %v4104 = vrcp.pop %v4089
  %v4105 = vmul.f32 %v4065, %v4104
  %4106 = vrot.lane.b32.xlu0 %v539, 48
  %v4107 = vpop.permute.xlu0 %4106
  %4108 = vrot.lane.b32.xlu0 %v544, 48
  %v4109 = vpop.permute.xlu0 %4108
  %4110 = vrot.lane.b32.xlu0 %v549, 48
  %v4111 = vpop.permute.xlu0 %4110
  %4112 = vrot.lane.b32.xlu0 %v554, 48
  %v4113 = vpop.permute.xlu0 %4112
  %4114 = vrot.lane.b32.xlu0 %v559, 48
  %v4115 = vpop.permute.xlu0 %4114
  %4116 = vrot.lane.b32.xlu0 %v564, 48
  %v4117 = vpop.permute.xlu0 %4116
  %4118 = vrot.lane.b32.xlu0 %v569, 48
  %v4119 = vpop.permute.xlu0 %4118
  %4120 = vrot.lane.b32.xlu0 %v574, 48
  %v4121 = vpop.permute.xlu0 %4120
  %v4131 = vsel %vm767, %v4091, 0
  %v4134 = vsel %vm767, %v4093, 0
  %v4137 = vsel %vm767, %v4095, 0
  %v4140 = vsel %vm767, %v4097, 0
  %v4143 = vsel %vm767, %v4099, 0
  %v4146 = vsel %vm767, %v4101, 0
  %v4149 = vsel %vm767, %v4103, 0
  %v4152 = vsel %vm767, %v4105, 0
  %4154 = vmatprep.subr.mxu0 0.0
  %4155 = vmatpush1.msra.mxu0 %v4107
  %4156 = vmatprep.subr.mxu0 0.0
  %4157 = vmatpush1.msra.mxu0 %v4109
  %4158 = vmatprep.subr.mxu0 0.0
  %4159 = vmatpush1.msra.mxu0 %v4111
  %4160 = vmatprep.subr.mxu0 0.0
  %4161 = vmatpush1.msra.mxu0 %v4113
  %4162 = vmatprep.subr.mxu0 0.0
  %4163 = vmatpush1.msra.mxu0 %v4115
  %4164 = vmatprep.subr.mxu0 0.0
  %4165 = vmatpush1.msra.mxu0 %v4117
  %4166 = vmatprep.subr.mxu0 0.0
  %4167 = vmatpush1.msra.mxu0 %v4119
  %4168 = vmatprep.subr.mxu0 0.0
  %4169 = vmatpush1.msra.mxu0 %v4121
  %4170 = vmatprep.subr.mxu0 0.0
  %4171 = vmatpush1.msra.mxu0 0.0
  %4172 = vmatprep.subr.mxu0 0.0
  %4173 = vmatpush1.msra.mxu0 0.0
  %4174 = vmatprep.subr.mxu0 0.0
  %4175 = vmatpush1.msra.mxu0 0.0
  %4176 = vmatprep.subr.mxu0 0.0
  %4177 = vmatpush1.msra.mxu0 0.0
  %4178 = vmatprep.subr.mxu0 0.0
  %4179 = vmatpush1.msra.mxu0 0.0
  %4180 = vmatprep.subr.mxu0 0.0
  %4181 = vmatpush1.msra.mxu0 0.0
  %4182 = vmatprep.subr.mxu0 0.0
  %4183 = vmatpush1.msra.mxu0 0.0
  %4184 = vmatprep.subr.mxu0 0.0
  %4185 = vmatpush1.msra.mxu0 0.0
  %4186 = vmatprep.subr.mxu0 0.0
  %4187 = vmatpush1.msra.mxu0 0.0
  %4188 = vmatprep.subr.mxu0 0.0
  %4189 = vmatpush1.msra.mxu0 0.0
  %4190 = vmatprep.subr.mxu0 0.0
  %4191 = vmatpush1.msra.mxu0 0.0
  %4192 = vmatprep.subr.mxu0 0.0
  %4193 = vmatpush1.msra.mxu0 0.0
  %4194 = vmatprep.subr.mxu0 0.0
  %4195 = vmatpush1.msra.mxu0 0.0
  %4196 = vmatprep.subr.mxu0 0.0
  %4197 = vmatpush1.msra.mxu0 0.0
  %4198 = vmatprep.subr.mxu0 0.0
  %4199 = vmatpush1.msra.mxu0 0.0
  %4200 = vmatprep.subr.mxu0 0.0
  %4201 = vmatpush1.msra.mxu0 0.0
  %4202 = vmatprep.subr.mxu0 0.0
  %4203 = vmatpush1.msra.mxu0 0.0
  %4204 = vmatprep.subr.mxu0 0.0
  %4205 = vmatpush1.msra.mxu0 0.0
  %4206 = vmatprep.subr.mxu0 0.0
  %4207 = vmatpush1.msra.mxu0 0.0
  %4208 = vmatprep.subr.mxu0 0.0
  %4209 = vmatpush1.msra.mxu0 0.0
  %4210 = vmatprep.subr.mxu0 0.0
  %4211 = vmatpush1.msra.mxu0 0.0
  %4212 = vmatprep.subr.mxu0 0.0
  %4213 = vmatpush1.msra.mxu0 0.0
  %4214 = vmatprep.subr.mxu0 0.0
  %4215 = vmatpush1.msra.mxu0 0.0
  %4216 = vmatprep.subr.mxu0 0.0
  %4217 = vmatpush1.msra.mxu0 0.0
  %4218 = vmatprep.mubr.f32.mxu0 0.0
  %4219 = vmatmul.mubr.f32.gmra.mrb[0].mxu0 %v4131
  %v4220 = vpop.f32.mrb[0].mxu0
  %v4221 = vadd.f32 0.0, %v4220
  %v4222 = vpop.f32.mrb[0].mxu0
  %4223 = vmatprep.mubr.f32.mxu0 0.0
  %4224 = vmatmul.mubr.f32.gmra.mrb[0].mxu0 %v4134
  %v4225 = vpop.f32.mrb[0].mxu0
  %v4226 = vadd.f32 0.0, %v4225
  %v4227 = vpop.f32.mrb[0].mxu0
  %4228 = vmatprep.mubr.f32.mxu0 0.0
  %4229 = vmatmul.mubr.f32.gmra.mrb[0].mxu0 %v4137
  %v4230 = vpop.f32.mrb[0].mxu0
  %v4231 = vadd.f32 0.0, %v4230
  %v4232 = vpop.f32.mrb[0].mxu0
  %4233 = vmatprep.mubr.f32.mxu0 0.0
  %4234 = vmatmul.mubr.f32.gmra.mrb[0].mxu0 %v4140
  %v4235 = vpop.f32.mrb[0].mxu0
  %v4236 = vadd.f32 0.0, %v4235
  %v4237 = vpop.f32.mrb[0].mxu0
  %4238 = vmatprep.mubr.f32.mxu0 0.0
  %4239 = vmatmul.mubr.f32.gmra.mrb[0].mxu0 %v4143
  %v4240 = vpop.f32.mrb[0].mxu0
  %v4241 = vadd.f32 0.0, %v4240
  %v4242 = vpop.f32.mrb[0].mxu0
  %4243 = vmatprep.mubr.f32.mxu0 0.0
  %4244 = vmatmul.mubr.f32.gmra.mrb[0].mxu0 %v4146
  %v4245 = vpop.f32.mrb[0].mxu0
  %v4246 = vadd.f32 0.0, %v4245
  %v4247 = vpop.f32.mrb[0].mxu0
  %4248 = vmatprep.mubr.f32.mxu0 0.0
  %4249 = vmatmul.mubr.f32.gmra.mrb[0].mxu0 %v4149
  %v4250 = vpop.f32.mrb[0].mxu0
  %v4251 = vadd.f32 0.0, %v4250
  %v4252 = vpop.f32.mrb[0].mxu0
  %4253 = vmatprep.mubr.f32.mxu0 0.0
  %4254 = vmatmul.mubr.f32.gmra.mrb[0].mxu0 %v4152
  %v4255 = vpop.f32.mrb[0].mxu0
  %v4256 = vadd.f32 0.0, %v4255
  %v4257 = vpop.f32.mrb[0].mxu0
  %4258 = vdwg.mxu0
  %v4260 = vsel %vm621, %v4221, 0
  %v4263 = vsel %vm621, %v4226, 0
  %v4266 = vsel %vm621, %v4231, 0
  %v4269 = vsel %vm621, %v4236, 0
  %v4272 = vsel %vm621, %v4241, 0
  %v4275 = vsel %vm621, %v4246, 0
  %v4278 = vsel %vm621, %v4251, 0
  %v4281 = vsel %vm621, %v4256, 0
  %4283 = vmatprep.subr.mxu0 0.0
  %4284 = vmatpush1.msra.mxu0 %v595
  %4285 = vmatprep.subr.mxu0 0.0
  %4286 = vmatpush1.msra.mxu0 0.0
  %4287 = vmatprep.subr.mxu0 0.0
  %4288 = vmatpush1.msra.mxu0 0.0
  %4289 = vmatprep.subr.mxu0 0.0
  %4290 = vmatpush1.msra.mxu0 0.0
  %4291 = vmatprep.subr.mxu0 0.0
  %4292 = vmatpush1.msra.mxu0 0.0
  %4293 = vmatprep.subr.mxu0 0.0
  %4294 = vmatpush1.msra.mxu0 0.0
  %4295 = vmatprep.subr.mxu0 0.0
  %4296 = vmatpush1.msra.mxu0 0.0
  %4297 = vmatprep.subr.mxu0 0.0
  %4298 = vmatpush1.msra.mxu0 0.0
  %4299 = vmatprep.subr.mxu0 0.0
  %4300 = vmatpush1.msra.mxu0 0.0
  %4301 = vmatprep.subr.mxu0 0.0
  %4302 = vmatpush1.msra.mxu0 0.0
  %4303 = vmatprep.subr.mxu0 0.0
  %4304 = vmatpush1.msra.mxu0 0.0
  %4305 = vmatprep.subr.mxu0 0.0
  %4306 = vmatpush1.msra.mxu0 0.0
  %4307 = vmatprep.subr.mxu0 0.0
  %4308 = vmatpush1.msra.mxu0 0.0
  %4309 = vmatprep.subr.mxu0 0.0
  %4310 = vmatpush1.msra.mxu0 0.0
  %4311 = vmatprep.subr.mxu0 0.0
  %4312 = vmatpush1.msra.mxu0 0.0
  %4313 = vmatprep.subr.mxu0 0.0
  %4314 = vmatpush1.msra.mxu0 0.0
  %4315 = vmatprep.subr.mxu0 0.0
  %4316 = vmatpush1.msra.mxu0 0.0
  %4317 = vmatprep.subr.mxu0 0.0
  %4318 = vmatpush1.msra.mxu0 0.0
  %4319 = vmatprep.subr.mxu0 0.0
  %4320 = vmatpush1.msra.mxu0 0.0
  %4321 = vmatprep.subr.mxu0 0.0
  %4322 = vmatpush1.msra.mxu0 0.0
  %4323 = vmatprep.subr.mxu0 0.0
  %4324 = vmatpush1.msra.mxu0 0.0
  %4325 = vmatprep.subr.mxu0 0.0
  %4326 = vmatpush1.msra.mxu0 0.0
  %4327 = vmatprep.subr.mxu0 0.0
  %4328 = vmatpush1.msra.mxu0 0.0
  %4329 = vmatprep.subr.mxu0 0.0
  %4330 = vmatpush1.msra.mxu0 0.0
  %4331 = vmatprep.subr.mxu0 0.0
  %4332 = vmatpush1.msra.mxu0 0.0
  %4333 = vmatprep.subr.mxu0 0.0
  %4334 = vmatpush1.msra.mxu0 0.0
  %4335 = vmatprep.subr.mxu0 0.0
  %4336 = vmatpush1.msra.mxu0 0.0
  %4337 = vmatprep.subr.mxu0 0.0
  %4338 = vmatpush1.msra.mxu0 0.0
  %4339 = vmatprep.subr.mxu0 0.0
  %4340 = vmatpush1.msra.mxu0 0.0
  %4341 = vmatprep.subr.mxu0 0.0
  %4342 = vmatpush1.msra.mxu0 0.0
  %4343 = vmatprep.subr.mxu0 0.0
  %4344 = vmatpush1.msra.mxu0 0.0
  %4345 = vmatprep.subr.mxu0 0.0
  %4346 = vmatpush1.msra.mxu0 0.0
  %4347 = vmatprep.mubr.f32.mxu0 0.0
  %4348 = vmatmul.mubr.f32.gmra.mrb[0].mxu0 %v4260
  %v4349 = vpop.f32.mrb[0].mxu0
  %v4350 = vadd.f32 0.0, %v4349
  %v4351 = vpop.f32.mrb[0].mxu0
  %4352 = vmatprep.mubr.f32.mxu0 0.0
  %4353 = vmatmul.mubr.f32.gmra.mrb[0].mxu0 %v4263
  %v4354 = vpop.f32.mrb[0].mxu0
  %v4355 = vadd.f32 0.0, %v4354
  %v4356 = vpop.f32.mrb[0].mxu0
  %4357 = vmatprep.mubr.f32.mxu0 0.0
  %4358 = vmatmul.mubr.f32.gmra.mrb[0].mxu0 %v4266
  %v4359 = vpop.f32.mrb[0].mxu0
  %v4360 = vadd.f32 0.0, %v4359
  %v4361 = vpop.f32.mrb[0].mxu0
  %4362 = vmatprep.mubr.f32.mxu0 0.0
  %4363 = vmatmul.mubr.f32.gmra.mrb[0].mxu0 %v4269
  %v4364 = vpop.f32.mrb[0].mxu0
  %v4365 = vadd.f32 0.0, %v4364
  %v4366 = vpop.f32.mrb[0].mxu0
  %4367 = vmatprep.mubr.f32.mxu0 0.0
  %4368 = vmatmul.mubr.f32.gmra.mrb[0].mxu0 %v4272
  %v4369 = vpop.f32.mrb[0].mxu0
  %v4370 = vadd.f32 0.0, %v4369
  %v4371 = vpop.f32.mrb[0].mxu0
  %4372 = vmatprep.mubr.f32.mxu0 0.0
  %4373 = vmatmul.mubr.f32.gmra.mrb[0].mxu0 %v4275
  %v4374 = vpop.f32.mrb[0].mxu0
  %v4375 = vadd.f32 0.0, %v4374
  %v4376 = vpop.f32.mrb[0].mxu0
  %4377 = vmatprep.mubr.f32.mxu0 0.0
  %4378 = vmatmul.mubr.f32.gmra.mrb[0].mxu0 %v4278
  %v4379 = vpop.f32.mrb[0].mxu0
  %v4380 = vadd.f32 0.0, %v4379
  %v4381 = vpop.f32.mrb[0].mxu0
  %4382 = vmatprep.mubr.f32.mxu0 0.0
  %4383 = vmatmul.mubr.f32.gmra.mrb[0].mxu0 %v4281
  %v4384 = vpop.f32.mrb[0].mxu0
  %v4385 = vadd.f32 0.0, %v4384
  %v4386 = vpop.f32.mrb[0].mxu0
  %4387 = vdwg.mxu0
  %v4388 = vadd.f32 %v3811, %v4350
  %v4389 = vadd.f32 %v3816, %v4355
  %v4390 = vadd.f32 %v3821, %v4360
  %v4391 = vadd.f32 %v3826, %v4365
  %v4392 = vadd.f32 %v3831, %v4370
  %v4393 = vadd.f32 %v3836, %v4375
  %v4394 = vadd.f32 %v3841, %v4380
  %v4395 = vadd.f32 %v3846, %v4385
  %4396 = vrot.lane.b32.xlu0 %v585, 104
  %v4397 = vpop.permute.xlu0 %4396
  %4398 = vrot.lane.b32.xlu0 %v586, 104
  %v4399 = vpop.permute.xlu0 %4398
  %4400 = vrot.lane.b32.xlu0 %v587, 104
  %v4401 = vpop.permute.xlu0 %4400
  %4402 = vrot.lane.b32.xlu0 %v588, 104
  %v4403 = vpop.permute.xlu0 %4402
  %4404 = vrot.lane.b32.xlu0 %v589, 104
  %v4405 = vpop.permute.xlu0 %4404
  %4406 = vrot.lane.b32.xlu0 %v590, 104
  %v4407 = vpop.permute.xlu0 %4406
  %4408 = vrot.lane.b32.xlu0 %v591, 104
  %v4409 = vpop.permute.xlu0 %4408
  %4410 = vrot.lane.b32.xlu0 %v592, 104
  %v4411 = vpop.permute.xlu0 %4410
  %4412 = vrot.lane.b32.xlu0 %v539, 72
  %v4413 = vpop.permute.xlu0 %4412
  %4414 = vrot.lane.b32.xlu0 %v544, 72
  %v4415 = vpop.permute.xlu0 %4414
  %4416 = vrot.lane.b32.xlu0 %v549, 72
  %v4417 = vpop.permute.xlu0 %4416
  %4418 = vrot.lane.b32.xlu0 %v554, 72
  %v4419 = vpop.permute.xlu0 %4418
  %4420 = vrot.lane.b32.xlu0 %v559, 72
  %v4421 = vpop.permute.xlu0 %4420
  %4422 = vrot.lane.b32.xlu0 %v564, 72
  %v4423 = vpop.permute.xlu0 %4422
  %4424 = vrot.lane.b32.xlu0 %v569, 72
  %v4425 = vpop.permute.xlu0 %4424
  %4426 = vrot.lane.b32.xlu0 %v574, 72
  %v4427 = vpop.permute.xlu0 %4426
  %v4428 = vsel %vm621, %v4397, 0
  %v4430 = vsel %vm621, %v4399, 0
  %v4432 = vsel %vm621, %v4401, 0
  %v4434 = vsel %vm621, %v4403, 0
  %v4436 = vsel %vm621, %v4405, 0
  %v4438 = vsel %vm621, %v4407, 0
  %v4440 = vsel %vm621, %v4409, 0
  %v4442 = vsel %vm621, %v4411, 0
  %v4444 = vsel %vm621, %v4413, 0
  %v4446 = vsel %vm621, %v4415, 0
  %v4448 = vsel %vm621, %v4417, 0
  %v4450 = vsel %vm621, %v4419, 0
  %v4452 = vsel %vm621, %v4421, 0
  %v4454 = vsel %vm621, %v4423, 0
  %v4456 = vsel %vm621, %v4425, 0
  %v4458 = vsel %vm621, %v4427, 0
  %4460 = vmatprep.subr.mxu0 0.0
  %4461 = vmatpush1.xpose.msra.mxu0 %v4444
  %4462 = vmatprep.subr.mxu0 0.0
  %4463 = vmatpush1.xpose.msra.mxu0 %v4446
  %4464 = vmatprep.subr.mxu0 0.0
  %4465 = vmatpush1.xpose.msra.mxu0 %v4448
  %4466 = vmatprep.subr.mxu0 0.0
  %4467 = vmatpush1.xpose.msra.mxu0 %v4450
  %4468 = vmatprep.subr.mxu0 0.0
  %4469 = vmatpush1.xpose.msra.mxu0 %v4452
  %4470 = vmatprep.subr.mxu0 0.0
  %4471 = vmatpush1.xpose.msra.mxu0 %v4454
  %4472 = vmatprep.subr.mxu0 0.0
  %4473 = vmatpush1.xpose.msra.mxu0 %v4456
  %4474 = vmatprep.subr.mxu0 0.0
  %4475 = vmatpush1.xpose.msra.mxu0 %v4458
  %4476 = vmatprep.subr.mxu0 0.0
  %4477 = vmatpush1.xpose.msra.mxu0 0.0
  %4478 = vmatprep.subr.mxu0 0.0
  %4479 = vmatpush1.xpose.msra.mxu0 0.0
  %4480 = vmatprep.subr.mxu0 0.0
  %4481 = vmatpush1.xpose.msra.mxu0 0.0
  %4482 = vmatprep.subr.mxu0 0.0
  %4483 = vmatpush1.xpose.msra.mxu0 0.0
  %4484 = vmatprep.subr.mxu0 0.0
  %4485 = vmatpush1.xpose.msra.mxu0 0.0
  %4486 = vmatprep.subr.mxu0 0.0
  %4487 = vmatpush1.xpose.msra.mxu0 0.0
  %4488 = vmatprep.subr.mxu0 0.0
  %4489 = vmatpush1.xpose.msra.mxu0 0.0
  %4490 = vmatprep.subr.mxu0 0.0
  %4491 = vmatpush1.xpose.msra.mxu0 0.0
  %4492 = vmatprep.subr.mxu0 0.0
  %4493 = vmatpush1.xpose.msra.mxu0 0.0
  %4494 = vmatprep.subr.mxu0 0.0
  %4495 = vmatpush1.xpose.msra.mxu0 0.0
  %4496 = vmatprep.subr.mxu0 0.0
  %4497 = vmatpush1.xpose.msra.mxu0 0.0
  %4498 = vmatprep.subr.mxu0 0.0
  %4499 = vmatpush1.xpose.msra.mxu0 0.0
  %4500 = vmatprep.subr.mxu0 0.0
  %4501 = vmatpush1.xpose.msra.mxu0 0.0
  %4502 = vmatprep.subr.mxu0 0.0
  %4503 = vmatpush1.xpose.msra.mxu0 0.0
  %4504 = vmatprep.subr.mxu0 0.0
  %4505 = vmatpush1.xpose.msra.mxu0 0.0
  %4506 = vmatprep.subr.mxu0 0.0
  %4507 = vmatpush1.xpose.msra.mxu0 0.0
  %4508 = vmatprep.subr.mxu0 0.0
  %4509 = vmatpush1.xpose.msra.mxu0 0.0
  %4510 = vmatprep.subr.mxu0 0.0
  %4511 = vmatpush1.xpose.msra.mxu0 0.0
  %4512 = vmatprep.subr.mxu0 0.0
  %4513 = vmatpush1.xpose.msra.mxu0 0.0
  %4514 = vmatprep.subr.mxu0 0.0
  %4515 = vmatpush1.xpose.msra.mxu0 0.0
  %4516 = vmatprep.subr.mxu0 0.0
  %4517 = vmatpush1.xpose.msra.mxu0 0.0
  %4518 = vmatprep.subr.mxu0 0.0
  %4519 = vmatpush1.xpose.msra.mxu0 0.0
  %4520 = vmatprep.subr.mxu0 0.0
  %4521 = vmatpush1.xpose.msra.mxu0 0.0
  %4522 = vmatprep.subr.mxu0 0.0
  %4523 = vmatpush1.xpose.msra.mxu0 0.0
  %4524 = vmatprep.mubr.f32.mxu0 0.0
  %4525 = vmatmul.mubr.f32.gmra.mrb[0].mxu0 %v4428
  %v4526 = vpop.f32.mrb[0].mxu0
  %v4527 = vadd.f32 0.0, %v4526
  %v4528 = vpop.f32.mrb[0].mxu0
  %4529 = vmatprep.mubr.f32.mxu0 0.0
  %4530 = vmatmul.mubr.f32.gmra.mrb[0].mxu0 %v4430
  %v4531 = vpop.f32.mrb[0].mxu0
  %v4532 = vadd.f32 0.0, %v4531
  %v4533 = vpop.f32.mrb[0].mxu0
  %4534 = vmatprep.mubr.f32.mxu0 0.0
  %4535 = vmatmul.mubr.f32.gmra.mrb[0].mxu0 %v4432
  %v4536 = vpop.f32.mrb[0].mxu0
  %v4537 = vadd.f32 0.0, %v4536
  %v4538 = vpop.f32.mrb[0].mxu0
  %4539 = vmatprep.mubr.f32.mxu0 0.0
  %4540 = vmatmul.mubr.f32.gmra.mrb[0].mxu0 %v4434
  %v4541 = vpop.f32.mrb[0].mxu0
  %v4542 = vadd.f32 0.0, %v4541
  %v4543 = vpop.f32.mrb[0].mxu0
  %4544 = vmatprep.mubr.f32.mxu0 0.0
  %4545 = vmatmul.mubr.f32.gmra.mrb[0].mxu0 %v4436
  %v4546 = vpop.f32.mrb[0].mxu0
  %v4547 = vadd.f32 0.0, %v4546
  %v4548 = vpop.f32.mrb[0].mxu0
  %4549 = vmatprep.mubr.f32.mxu0 0.0
  %4550 = vmatmul.mubr.f32.gmra.mrb[0].mxu0 %v4438
  %v4551 = vpop.f32.mrb[0].mxu0
  %v4552 = vadd.f32 0.0, %v4551
  %v4553 = vpop.f32.mrb[0].mxu0
  %4554 = vmatprep.mubr.f32.mxu0 0.0
  %4555 = vmatmul.mubr.f32.gmra.mrb[0].mxu0 %v4440
  %v4556 = vpop.f32.mrb[0].mxu0
  %v4557 = vadd.f32 0.0, %v4556
  %v4558 = vpop.f32.mrb[0].mxu0
  %4559 = vmatprep.mubr.f32.mxu0 0.0
  %4560 = vmatmul.mubr.f32.gmra.mrb[0].mxu0 %v4442
  %v4561 = vpop.f32.mrb[0].mxu0
  %v4562 = vadd.f32 0.0, %v4561
  %v4563 = vpop.f32.mrb[0].mxu0
  %4564 = vdwg.mxu0
  %v4565 = vsel %vm767, %v4527, -inf
  %4566 = vmax.xlane.f32.xlu0 %v4565
  %v4567 = vpop.xlane.xlu0 %4566
  %v4568 = vsel %vm767, %v4532, -inf
  %4569 = vmax.xlane.f32.xlu0 %v4568
  %v4570 = vpop.xlane.xlu0 %4569
  %v4571 = vsel %vm767, %v4537, -inf
  %4572 = vmax.xlane.f32.xlu0 %v4571
  %v4573 = vpop.xlane.xlu0 %4572
  %v4574 = vsel %vm767, %v4542, -inf
  %4575 = vmax.xlane.f32.xlu0 %v4574
  %v4576 = vpop.xlane.xlu0 %4575
  %v4577 = vsel %vm767, %v4547, -inf
  %4578 = vmax.xlane.f32.xlu0 %v4577
  %v4579 = vpop.xlane.xlu0 %4578
  %v4580 = vsel %vm767, %v4552, -inf
  %4581 = vmax.xlane.f32.xlu0 %v4580
  %v4582 = vpop.xlane.xlu0 %4581
  %v4583 = vsel %vm767, %v4557, -inf
  %4584 = vmax.xlane.f32.xlu0 %v4583
  %v4585 = vpop.xlane.xlu0 %4584
  %v4586 = vsel %vm767, %v4562, -inf
  %4587 = vmax.xlane.f32.xlu0 %v4586
  %v4588 = vpop.xlane.xlu0 %4587
  %v4589 = vsub.f32 %v4527, %v4567
  %v4590 = vsub.f32 %v4532, %v4570
  %v4591 = vsub.f32 %v4537, %v4573
  %v4592 = vsub.f32 %v4542, %v4576
  %v4593 = vsub.f32 %v4547, %v4579
  %v4594 = vsub.f32 %v4552, %v4582
  %v4595 = vsub.f32 %v4557, %v4585
  %v4596 = vsub.f32 %v4562, %v4588
  %v4597 = vmul.f32 %v4589, 1.442695
  %v4598 = vpow.pop %v4597
  %v4599 = vmul.f32 %v4590, 1.442695
  %v4600 = vpow.pop %v4599
  %v4601 = vmul.f32 %v4591, 1.442695
  %v4602 = vpow.pop %v4601
  %v4603 = vmul.f32 %v4592, 1.442695
  %v4604 = vpow.pop %v4603
  %v4605 = vmul.f32 %v4593, 1.442695
  %v4606 = vpow.pop %v4605
  %v4607 = vmul.f32 %v4594, 1.442695
  %v4608 = vpow.pop %v4607
  %v4609 = vmul.f32 %v4595, 1.442695
  %v4610 = vpow.pop %v4609
  %v4611 = vmul.f32 %v4596, 1.442695
  %v4612 = vpow.pop %v4611
  %v4613 = vsel %vm767, %v4598, 0.0
  %4614 = vadd.xlane.f32.xlu0 %v4613
  %v4615 = vpop.xlane.xlu0 %4614
  %v4616 = vsel %vm767, %v4600, 0.0
  %4617 = vadd.xlane.f32.xlu0 %v4616
  %v4618 = vpop.xlane.xlu0 %4617
  %v4619 = vsel %vm767, %v4602, 0.0
  %4620 = vadd.xlane.f32.xlu0 %v4619
  %v4621 = vpop.xlane.xlu0 %4620
  %v4622 = vsel %vm767, %v4604, 0.0
  %4623 = vadd.xlane.f32.xlu0 %v4622
  %v4624 = vpop.xlane.xlu0 %4623
  %v4625 = vsel %vm767, %v4606, 0.0
  %4626 = vadd.xlane.f32.xlu0 %v4625
  %v4627 = vpop.xlane.xlu0 %4626
  %v4628 = vsel %vm767, %v4608, 0.0
  %4629 = vadd.xlane.f32.xlu0 %v4628
  %v4630 = vpop.xlane.xlu0 %4629
  %v4631 = vsel %vm767, %v4610, 0.0
  %4632 = vadd.xlane.f32.xlu0 %v4631
  %v4633 = vpop.xlane.xlu0 %4632
  %v4634 = vsel %vm767, %v4612, 0.0
  %4635 = vadd.xlane.f32.xlu0 %v4634
  %v4636 = vpop.xlane.xlu0 %4635
  %v4637 = vrcp.pop %v4615
  %v4638 = vmul.f32 %v4598, %v4637
  %v4639 = vrcp.pop %v4618
  %v4640 = vmul.f32 %v4600, %v4639
  %v4641 = vrcp.pop %v4621
  %v4642 = vmul.f32 %v4602, %v4641
  %v4643 = vrcp.pop %v4624
  %v4644 = vmul.f32 %v4604, %v4643
  %v4645 = vrcp.pop %v4627
  %v4646 = vmul.f32 %v4606, %v4645
  %v4647 = vrcp.pop %v4630
  %v4648 = vmul.f32 %v4608, %v4647
  %v4649 = vrcp.pop %v4633
  %v4650 = vmul.f32 %v4610, %v4649
  %v4651 = vrcp.pop %v4636
  %v4652 = vmul.f32 %v4612, %v4651
  %4653 = vrot.lane.b32.xlu0 %v539, 40
  %v4654 = vpop.permute.xlu0 %4653
  %4655 = vrot.lane.b32.xlu0 %v544, 40
  %v4656 = vpop.permute.xlu0 %4655
  %4657 = vrot.lane.b32.xlu0 %v549, 40
  %v4658 = vpop.permute.xlu0 %4657
  %4659 = vrot.lane.b32.xlu0 %v554, 40
  %v4660 = vpop.permute.xlu0 %4659
  %4661 = vrot.lane.b32.xlu0 %v559, 40
  %v4662 = vpop.permute.xlu0 %4661
  %4663 = vrot.lane.b32.xlu0 %v564, 40
  %v4664 = vpop.permute.xlu0 %4663
  %4665 = vrot.lane.b32.xlu0 %v569, 40
  %v4666 = vpop.permute.xlu0 %4665
  %4667 = vrot.lane.b32.xlu0 %v574, 40
  %v4668 = vpop.permute.xlu0 %4667
  %v4678 = vsel %vm767, %v4638, 0
  %v4681 = vsel %vm767, %v4640, 0
  %v4684 = vsel %vm767, %v4642, 0
  %v4687 = vsel %vm767, %v4644, 0
  %v4690 = vsel %vm767, %v4646, 0
  %v4693 = vsel %vm767, %v4648, 0
  %v4696 = vsel %vm767, %v4650, 0
  %v4699 = vsel %vm767, %v4652, 0
  %4701 = vmatprep.subr.mxu0 0.0
  %4702 = vmatpush1.msra.mxu0 %v4654
  %4703 = vmatprep.subr.mxu0 0.0
  %4704 = vmatpush1.msra.mxu0 %v4656
  %4705 = vmatprep.subr.mxu0 0.0
  %4706 = vmatpush1.msra.mxu0 %v4658
  %4707 = vmatprep.subr.mxu0 0.0
  %4708 = vmatpush1.msra.mxu0 %v4660
  %4709 = vmatprep.subr.mxu0 0.0
  %4710 = vmatpush1.msra.mxu0 %v4662
  %4711 = vmatprep.subr.mxu0 0.0
  %4712 = vmatpush1.msra.mxu0 %v4664
  %4713 = vmatprep.subr.mxu0 0.0
  %4714 = vmatpush1.msra.mxu0 %v4666
  %4715 = vmatprep.subr.mxu0 0.0
  %4716 = vmatpush1.msra.mxu0 %v4668
  %4717 = vmatprep.subr.mxu0 0.0
  %4718 = vmatpush1.msra.mxu0 0.0
  %4719 = vmatprep.subr.mxu0 0.0
  %4720 = vmatpush1.msra.mxu0 0.0
  %4721 = vmatprep.subr.mxu0 0.0
  %4722 = vmatpush1.msra.mxu0 0.0
  %4723 = vmatprep.subr.mxu0 0.0
  %4724 = vmatpush1.msra.mxu0 0.0
  %4725 = vmatprep.subr.mxu0 0.0
  %4726 = vmatpush1.msra.mxu0 0.0
  %4727 = vmatprep.subr.mxu0 0.0
  %4728 = vmatpush1.msra.mxu0 0.0
  %4729 = vmatprep.subr.mxu0 0.0
  %4730 = vmatpush1.msra.mxu0 0.0
  %4731 = vmatprep.subr.mxu0 0.0
  %4732 = vmatpush1.msra.mxu0 0.0
  %4733 = vmatprep.subr.mxu0 0.0
  %4734 = vmatpush1.msra.mxu0 0.0
  %4735 = vmatprep.subr.mxu0 0.0
  %4736 = vmatpush1.msra.mxu0 0.0
  %4737 = vmatprep.subr.mxu0 0.0
  %4738 = vmatpush1.msra.mxu0 0.0
  %4739 = vmatprep.subr.mxu0 0.0
  %4740 = vmatpush1.msra.mxu0 0.0
  %4741 = vmatprep.subr.mxu0 0.0
  %4742 = vmatpush1.msra.mxu0 0.0
  %4743 = vmatprep.subr.mxu0 0.0
  %4744 = vmatpush1.msra.mxu0 0.0
  %4745 = vmatprep.subr.mxu0 0.0
  %4746 = vmatpush1.msra.mxu0 0.0
  %4747 = vmatprep.subr.mxu0 0.0
  %4748 = vmatpush1.msra.mxu0 0.0
  %4749 = vmatprep.subr.mxu0 0.0
  %4750 = vmatpush1.msra.mxu0 0.0
  %4751 = vmatprep.subr.mxu0 0.0
  %4752 = vmatpush1.msra.mxu0 0.0
  %4753 = vmatprep.subr.mxu0 0.0
  %4754 = vmatpush1.msra.mxu0 0.0
  %4755 = vmatprep.subr.mxu0 0.0
  %4756 = vmatpush1.msra.mxu0 0.0
  %4757 = vmatprep.subr.mxu0 0.0
  %4758 = vmatpush1.msra.mxu0 0.0
  %4759 = vmatprep.subr.mxu0 0.0
  %4760 = vmatpush1.msra.mxu0 0.0
  %4761 = vmatprep.subr.mxu0 0.0
  %4762 = vmatpush1.msra.mxu0 0.0
  %4763 = vmatprep.subr.mxu0 0.0
  %4764 = vmatpush1.msra.mxu0 0.0
  %4765 = vmatprep.mubr.f32.mxu0 0.0
  %4766 = vmatmul.mubr.f32.gmra.mrb[0].mxu0 %v4678
  %v4767 = vpop.f32.mrb[0].mxu0
  %v4768 = vadd.f32 0.0, %v4767
  %v4769 = vpop.f32.mrb[0].mxu0
  %4770 = vmatprep.mubr.f32.mxu0 0.0
  %4771 = vmatmul.mubr.f32.gmra.mrb[0].mxu0 %v4681
  %v4772 = vpop.f32.mrb[0].mxu0
  %v4773 = vadd.f32 0.0, %v4772
  %v4774 = vpop.f32.mrb[0].mxu0
  %4775 = vmatprep.mubr.f32.mxu0 0.0
  %4776 = vmatmul.mubr.f32.gmra.mrb[0].mxu0 %v4684
  %v4777 = vpop.f32.mrb[0].mxu0
  %v4778 = vadd.f32 0.0, %v4777
  %v4779 = vpop.f32.mrb[0].mxu0
  %4780 = vmatprep.mubr.f32.mxu0 0.0
  %4781 = vmatmul.mubr.f32.gmra.mrb[0].mxu0 %v4687
  %v4782 = vpop.f32.mrb[0].mxu0
  %v4783 = vadd.f32 0.0, %v4782
  %v4784 = vpop.f32.mrb[0].mxu0
  %4785 = vmatprep.mubr.f32.mxu0 0.0
  %4786 = vmatmul.mubr.f32.gmra.mrb[0].mxu0 %v4690
  %v4787 = vpop.f32.mrb[0].mxu0
  %v4788 = vadd.f32 0.0, %v4787
  %v4789 = vpop.f32.mrb[0].mxu0
  %4790 = vmatprep.mubr.f32.mxu0 0.0
  %4791 = vmatmul.mubr.f32.gmra.mrb[0].mxu0 %v4693
  %v4792 = vpop.f32.mrb[0].mxu0
  %v4793 = vadd.f32 0.0, %v4792
  %v4794 = vpop.f32.mrb[0].mxu0
  %4795 = vmatprep.mubr.f32.mxu0 0.0
  %4796 = vmatmul.mubr.f32.gmra.mrb[0].mxu0 %v4696
  %v4797 = vpop.f32.mrb[0].mxu0
  %v4798 = vadd.f32 0.0, %v4797
  %v4799 = vpop.f32.mrb[0].mxu0
  %4800 = vmatprep.mubr.f32.mxu0 0.0
  %4801 = vmatmul.mubr.f32.gmra.mrb[0].mxu0 %v4699
  %v4802 = vpop.f32.mrb[0].mxu0
  %v4803 = vadd.f32 0.0, %v4802
  %v4804 = vpop.f32.mrb[0].mxu0
  %4805 = vdwg.mxu0
  %v4807 = vsel %vm621, %v4768, 0
  %v4810 = vsel %vm621, %v4773, 0
  %v4813 = vsel %vm621, %v4778, 0
  %v4816 = vsel %vm621, %v4783, 0
  %v4819 = vsel %vm621, %v4788, 0
  %v4822 = vsel %vm621, %v4793, 0
  %v4825 = vsel %vm621, %v4798, 0
  %v4828 = vsel %vm621, %v4803, 0
  %4830 = vmatprep.subr.mxu0 0.0
  %4831 = vmatpush1.msra.mxu0 %v596
  %4832 = vmatprep.subr.mxu0 0.0
  %4833 = vmatpush1.msra.mxu0 0.0
  %4834 = vmatprep.subr.mxu0 0.0
  %4835 = vmatpush1.msra.mxu0 0.0
  %4836 = vmatprep.subr.mxu0 0.0
  %4837 = vmatpush1.msra.mxu0 0.0
  %4838 = vmatprep.subr.mxu0 0.0
  %4839 = vmatpush1.msra.mxu0 0.0
  %4840 = vmatprep.subr.mxu0 0.0
  %4841 = vmatpush1.msra.mxu0 0.0
  %4842 = vmatprep.subr.mxu0 0.0
  %4843 = vmatpush1.msra.mxu0 0.0
  %4844 = vmatprep.subr.mxu0 0.0
  %4845 = vmatpush1.msra.mxu0 0.0
  %4846 = vmatprep.subr.mxu0 0.0
  %4847 = vmatpush1.msra.mxu0 0.0
  %4848 = vmatprep.subr.mxu0 0.0
  %4849 = vmatpush1.msra.mxu0 0.0
  %4850 = vmatprep.subr.mxu0 0.0
  %4851 = vmatpush1.msra.mxu0 0.0
  %4852 = vmatprep.subr.mxu0 0.0
  %4853 = vmatpush1.msra.mxu0 0.0
  %4854 = vmatprep.subr.mxu0 0.0
  %4855 = vmatpush1.msra.mxu0 0.0
  %4856 = vmatprep.subr.mxu0 0.0
  %4857 = vmatpush1.msra.mxu0 0.0
  %4858 = vmatprep.subr.mxu0 0.0
  %4859 = vmatpush1.msra.mxu0 0.0
  %4860 = vmatprep.subr.mxu0 0.0
  %4861 = vmatpush1.msra.mxu0 0.0
  %4862 = vmatprep.subr.mxu0 0.0
  %4863 = vmatpush1.msra.mxu0 0.0
  %4864 = vmatprep.subr.mxu0 0.0
  %4865 = vmatpush1.msra.mxu0 0.0
  %4866 = vmatprep.subr.mxu0 0.0
  %4867 = vmatpush1.msra.mxu0 0.0
  %4868 = vmatprep.subr.mxu0 0.0
  %4869 = vmatpush1.msra.mxu0 0.0
  %4870 = vmatprep.subr.mxu0 0.0
  %4871 = vmatpush1.msra.mxu0 0.0
  %4872 = vmatprep.subr.mxu0 0.0
  %4873 = vmatpush1.msra.mxu0 0.0
  %4874 = vmatprep.subr.mxu0 0.0
  %4875 = vmatpush1.msra.mxu0 0.0
  %4876 = vmatprep.subr.mxu0 0.0
  %4877 = vmatpush1.msra.mxu0 0.0
  %4878 = vmatprep.subr.mxu0 0.0
  %4879 = vmatpush1.msra.mxu0 0.0
  %4880 = vmatprep.subr.mxu0 0.0
  %4881 = vmatpush1.msra.mxu0 0.0
  %4882 = vmatprep.subr.mxu0 0.0
  %4883 = vmatpush1.msra.mxu0 0.0
  %4884 = vmatprep.subr.mxu0 0.0
  %4885 = vmatpush1.msra.mxu0 0.0
  %4886 = vmatprep.subr.mxu0 0.0
  %4887 = vmatpush1.msra.mxu0 0.0
  %4888 = vmatprep.subr.mxu0 0.0
  %4889 = vmatpush1.msra.mxu0 0.0
  %4890 = vmatprep.subr.mxu0 0.0
  %4891 = vmatpush1.msra.mxu0 0.0
  %4892 = vmatprep.subr.mxu0 0.0
  %4893 = vmatpush1.msra.mxu0 0.0
  %4894 = vmatprep.mubr.f32.mxu0 0.0
  %4895 = vmatmul.mubr.f32.gmra.mrb[0].mxu0 %v4807
  %v4896 = vpop.f32.mrb[0].mxu0
  %v4897 = vadd.f32 0.0, %v4896
  %v4898 = vpop.f32.mrb[0].mxu0
  %4899 = vmatprep.mubr.f32.mxu0 0.0
  %4900 = vmatmul.mubr.f32.gmra.mrb[0].mxu0 %v4810
  %v4901 = vpop.f32.mrb[0].mxu0
  %v4902 = vadd.f32 0.0, %v4901
  %v4903 = vpop.f32.mrb[0].mxu0
  %4904 = vmatprep.mubr.f32.mxu0 0.0
  %4905 = vmatmul.mubr.f32.gmra.mrb[0].mxu0 %v4813
  %v4906 = vpop.f32.mrb[0].mxu0
  %v4907 = vadd.f32 0.0, %v4906
  %v4908 = vpop.f32.mrb[0].mxu0
  %4909 = vmatprep.mubr.f32.mxu0 0.0
  %4910 = vmatmul.mubr.f32.gmra.mrb[0].mxu0 %v4816
  %v4911 = vpop.f32.mrb[0].mxu0
  %v4912 = vadd.f32 0.0, %v4911
  %v4913 = vpop.f32.mrb[0].mxu0
  %4914 = vmatprep.mubr.f32.mxu0 0.0
  %4915 = vmatmul.mubr.f32.gmra.mrb[0].mxu0 %v4819
  %v4916 = vpop.f32.mrb[0].mxu0
  %v4917 = vadd.f32 0.0, %v4916
  %v4918 = vpop.f32.mrb[0].mxu0
  %4919 = vmatprep.mubr.f32.mxu0 0.0
  %4920 = vmatmul.mubr.f32.gmra.mrb[0].mxu0 %v4822
  %v4921 = vpop.f32.mrb[0].mxu0
  %v4922 = vadd.f32 0.0, %v4921
  %v4923 = vpop.f32.mrb[0].mxu0
  %4924 = vmatprep.mubr.f32.mxu0 0.0
  %4925 = vmatmul.mubr.f32.gmra.mrb[0].mxu0 %v4825
  %v4926 = vpop.f32.mrb[0].mxu0
  %v4927 = vadd.f32 0.0, %v4926
  %v4928 = vpop.f32.mrb[0].mxu0
  %4929 = vmatprep.mubr.f32.mxu0 0.0
  %4930 = vmatmul.mubr.f32.gmra.mrb[0].mxu0 %v4828
  %v4931 = vpop.f32.mrb[0].mxu0
  %v4932 = vadd.f32 0.0, %v4931
  %v4933 = vpop.f32.mrb[0].mxu0
  %4934 = vdwg.mxu0
  %v4935 = vadd.f32 %v4388, %v4897
  %v4936 = vadd.f32 %v4389, %v4902
  %v4937 = vadd.f32 %v4390, %v4907
  %v4938 = vadd.f32 %v4391, %v4912
  %v4939 = vadd.f32 %v4392, %v4917
  %v4940 = vadd.f32 %v4393, %v4922
  %v4941 = vadd.f32 %v4394, %v4927
  %v4942 = vadd.f32 %v4395, %v4932
  %v4943 = vld [vmem:[%s6] sm:$0x1]
  %v4945 = vlaneseq
  %v4946 = vshrl.u32 %v4945, 7
  %v4947 = vsub.s32 0, %v4946
  %v4948 = vrot.slane %v4943, %v4947
  %v4950 = vadd.f32 %v2763, %v4948
  %v4951 = vadd.f32 %v2764, %v4948
  %v4952 = vadd.f32 %v2765, %v4948
  %v4953 = vadd.f32 %v2766, %v4948
  %v4954 = vadd.f32 %v2767, %v4948
  %v4955 = vadd.f32 %v2768, %v4948
  %v4956 = vadd.f32 %v2769, %v4948
  %v4957 = vadd.f32 %v2770, %v4948
  %v4958 = vadd.f32 %v4935, %v4948
  %v4959 = vadd.f32 %v4936, %v4948
  %v4960 = vadd.f32 %v4937, %v4948
  %v4961 = vadd.f32 %v4938, %v4948
  %v4962 = vadd.f32 %v4939, %v4948
  %v4963 = vadd.f32 %v4940, %v4948
  %v4964 = vadd.f32 %v4941, %v4948
  %v4965 = vadd.f32 %v4942, %v4948
  %v4966 = vadd.f32 %v4950, %v64
  %v4967 = vadd.f32 %v4951, %v65
  %v4968 = vadd.f32 %v4952, %v66
  %v4969 = vadd.f32 %v4953, %v67
  %v4970 = vadd.f32 %v4954, %v68
  %v4971 = vadd.f32 %v4955, %v69
  %v4972 = vadd.f32 %v4956, %v70
  %v4973 = vadd.f32 %v4957, %v71
  %v4974 = vadd.f32 %v4958, %v101
  %v4975 = vadd.f32 %v4959, %v102
  %v4976 = vadd.f32 %v4960, %v103
  %v4977 = vadd.f32 %v4961, %v104
  %v4978 = vadd.f32 %v4962, %v105
  %v4979 = vadd.f32 %v4963, %v106
  %v4980 = vadd.f32 %v4964, %v107
  %v4981 = vadd.f32 %v4965, %v108
  %v4982 = vld [vmem:[%s7] sm:$0x1]
  %v4983 = vld [vmem:[%s8] sm:$0x1]
  %v4984 = vsel %vm119, %v4966, 0.0
  %4985 = vadd.xlane.f32.xlu0 %v4984
  %v4986 = vpop.xlane.xlu0 %4985
  %v4987 = vsel %vm119, %v4967, 0.0
  %4988 = vadd.xlane.f32.xlu0 %v4987
  %v4989 = vpop.xlane.xlu0 %4988
  %v4990 = vsel %vm119, %v4968, 0.0
  %4991 = vadd.xlane.f32.xlu0 %v4990
  %v4992 = vpop.xlane.xlu0 %4991
  %v4993 = vsel %vm119, %v4969, 0.0
  %4994 = vadd.xlane.f32.xlu0 %v4993
  %v4995 = vpop.xlane.xlu0 %4994
  %v4996 = vsel %vm119, %v4970, 0.0
  %4997 = vadd.xlane.f32.xlu0 %v4996
  %v4998 = vpop.xlane.xlu0 %4997
  %v4999 = vsel %vm119, %v4971, 0.0
  %5000 = vadd.xlane.f32.xlu0 %v4999
  %v5001 = vpop.xlane.xlu0 %5000
  %v5002 = vsel %vm119, %v4972, 0.0
  %5003 = vadd.xlane.f32.xlu0 %v5002
  %v5004 = vpop.xlane.xlu0 %5003
  %v5005 = vsel %vm119, %v4973, 0.0
  %5006 = vadd.xlane.f32.xlu0 %v5005
  %v5007 = vpop.xlane.xlu0 %5006
  %v5008 = vsel %vm119, %v4974, 0.0
  %5009 = vadd.xlane.f32.xlu0 %v5008
  %v5010 = vpop.xlane.xlu0 %5009
  %v5011 = vsel %vm119, %v4975, 0.0
  %5012 = vadd.xlane.f32.xlu0 %v5011
  %v5013 = vpop.xlane.xlu0 %5012
  %v5014 = vsel %vm119, %v4976, 0.0
  %5015 = vadd.xlane.f32.xlu0 %v5014
  %v5016 = vpop.xlane.xlu0 %5015
  %v5017 = vsel %vm119, %v4977, 0.0
  %5018 = vadd.xlane.f32.xlu0 %v5017
  %v5019 = vpop.xlane.xlu0 %5018
  %v5020 = vsel %vm119, %v4978, 0.0
  %5021 = vadd.xlane.f32.xlu0 %v5020
  %v5022 = vpop.xlane.xlu0 %5021
  %v5023 = vsel %vm119, %v4979, 0.0
  %5024 = vadd.xlane.f32.xlu0 %v5023
  %v5025 = vpop.xlane.xlu0 %5024
  %v5026 = vsel %vm119, %v4980, 0.0
  %5027 = vadd.xlane.f32.xlu0 %v5026
  %v5028 = vpop.xlane.xlu0 %5027
  %v5029 = vsel %vm119, %v4981, 0.0
  %5030 = vadd.xlane.f32.xlu0 %v5029
  %v5031 = vpop.xlane.xlu0 %5030
  %v5032 = vmul.f32 %v4986, %v168
  %v5033 = vmul.f32 %v4989, %v168
  %v5034 = vmul.f32 %v4992, %v168
  %v5035 = vmul.f32 %v4995, %v168
  %v5036 = vmul.f32 %v4998, %v168
  %v5037 = vmul.f32 %v5001, %v168
  %v5038 = vmul.f32 %v5004, %v168
  %v5039 = vmul.f32 %v5007, %v168
  %v5040 = vmul.f32 %v5010, %v168
  %v5041 = vmul.f32 %v5013, %v168
  %v5042 = vmul.f32 %v5016, %v168
  %v5043 = vmul.f32 %v5019, %v168
  %v5044 = vmul.f32 %v5022, %v168
  %v5045 = vmul.f32 %v5025, %v168
  %v5046 = vmul.f32 %v5028, %v168
  %v5047 = vmul.f32 %v5031, %v168
  %v5048 = vsub.f32 %v4966, %v5032
  %v5049 = vsub.f32 %v4967, %v5033
  %v5050 = vsub.f32 %v4968, %v5034
  %v5051 = vsub.f32 %v4969, %v5035
  %v5052 = vsub.f32 %v4970, %v5036
  %v5053 = vsub.f32 %v4971, %v5037
  %v5054 = vsub.f32 %v4972, %v5038
  %v5055 = vsub.f32 %v4973, %v5039
  %v5056 = vsub.f32 %v4974, %v5040
  %v5057 = vsub.f32 %v4975, %v5041
  %v5058 = vsub.f32 %v4976, %v5042
  %v5059 = vsub.f32 %v4977, %v5043
  %v5060 = vsub.f32 %v4978, %v5044
  %v5061 = vsub.f32 %v4979, %v5045
  %v5062 = vsub.f32 %v4980, %v5046
  %v5063 = vsub.f32 %v4981, %v5047
  %v5064 = vmul.f32 %v5048, %v5048
  %v5065 = vmul.f32 %v5049, %v5049
  %v5066 = vmul.f32 %v5050, %v5050
  %v5067 = vmul.f32 %v5051, %v5051
  %v5068 = vmul.f32 %v5052, %v5052
  %v5069 = vmul.f32 %v5053, %v5053
  %v5070 = vmul.f32 %v5054, %v5054
  %v5071 = vmul.f32 %v5055, %v5055
  %v5072 = vmul.f32 %v5056, %v5056
  %v5073 = vmul.f32 %v5057, %v5057
  %v5074 = vmul.f32 %v5058, %v5058
  %v5075 = vmul.f32 %v5059, %v5059
  %v5076 = vmul.f32 %v5060, %v5060
  %v5077 = vmul.f32 %v5061, %v5061
  %v5078 = vmul.f32 %v5062, %v5062
  %v5079 = vmul.f32 %v5063, %v5063
  %v5080 = vsel %vm119, %v5064, 0.0
  %5081 = vadd.xlane.f32.xlu0 %v5080
  %v5082 = vpop.xlane.xlu0 %5081
  %v5083 = vsel %vm119, %v5065, 0.0
  %5084 = vadd.xlane.f32.xlu0 %v5083
  %v5085 = vpop.xlane.xlu0 %5084
  %v5086 = vsel %vm119, %v5066, 0.0
  %5087 = vadd.xlane.f32.xlu0 %v5086
  %v5088 = vpop.xlane.xlu0 %5087
  %v5089 = vsel %vm119, %v5067, 0.0
  %5090 = vadd.xlane.f32.xlu0 %v5089
  %v5091 = vpop.xlane.xlu0 %5090
  %v5092 = vsel %vm119, %v5068, 0.0
  %5093 = vadd.xlane.f32.xlu0 %v5092
  %v5094 = vpop.xlane.xlu0 %5093
  %v5095 = vsel %vm119, %v5069, 0.0
  %5096 = vadd.xlane.f32.xlu0 %v5095
  %v5097 = vpop.xlane.xlu0 %5096
  %v5098 = vsel %vm119, %v5070, 0.0
  %5099 = vadd.xlane.f32.xlu0 %v5098
  %v5100 = vpop.xlane.xlu0 %5099
  %v5101 = vsel %vm119, %v5071, 0.0
  %5102 = vadd.xlane.f32.xlu0 %v5101
  %v5103 = vpop.xlane.xlu0 %5102
  %v5104 = vsel %vm119, %v5072, 0.0
  %5105 = vadd.xlane.f32.xlu0 %v5104
  %v5106 = vpop.xlane.xlu0 %5105
  %v5107 = vsel %vm119, %v5073, 0.0
  %5108 = vadd.xlane.f32.xlu0 %v5107
  %v5109 = vpop.xlane.xlu0 %5108
  %v5110 = vsel %vm119, %v5074, 0.0
  %5111 = vadd.xlane.f32.xlu0 %v5110
  %v5112 = vpop.xlane.xlu0 %5111
  %v5113 = vsel %vm119, %v5075, 0.0
  %5114 = vadd.xlane.f32.xlu0 %v5113
  %v5115 = vpop.xlane.xlu0 %5114
  %v5116 = vsel %vm119, %v5076, 0.0
  %5117 = vadd.xlane.f32.xlu0 %v5116
  %v5118 = vpop.xlane.xlu0 %5117
  %v5119 = vsel %vm119, %v5077, 0.0
  %5120 = vadd.xlane.f32.xlu0 %v5119
  %v5121 = vpop.xlane.xlu0 %5120
  %v5122 = vsel %vm119, %v5078, 0.0
  %5123 = vadd.xlane.f32.xlu0 %v5122
  %v5124 = vpop.xlane.xlu0 %5123
  %v5125 = vsel %vm119, %v5079, 0.0
  %5126 = vadd.xlane.f32.xlu0 %v5125
  %v5127 = vpop.xlane.xlu0 %5126
  %v5128 = vmul.f32 %v5082, %v168
  %v5129 = vmul.f32 %v5085, %v168
  %v5130 = vmul.f32 %v5088, %v168
  %v5131 = vmul.f32 %v5091, %v168
  %v5132 = vmul.f32 %v5094, %v168
  %v5133 = vmul.f32 %v5097, %v168
  %v5134 = vmul.f32 %v5100, %v168
  %v5135 = vmul.f32 %v5103, %v168
  %v5136 = vmul.f32 %v5106, %v168
  %v5137 = vmul.f32 %v5109, %v168
  %v5138 = vmul.f32 %v5112, %v168
  %v5139 = vmul.f32 %v5115, %v168
  %v5140 = vmul.f32 %v5118, %v168
  %v5141 = vmul.f32 %v5121, %v168
  %v5142 = vmul.f32 %v5124, %v168
  %v5143 = vmul.f32 %v5127, %v168
  %v5144 = vadd.f32 %v5128, 1e-05
  %v5145 = vadd.f32 %v5129, 1e-05
  %v5146 = vadd.f32 %v5130, 1e-05
  %v5147 = vadd.f32 %v5131, 1e-05
  %v5148 = vadd.f32 %v5132, 1e-05
  %v5149 = vadd.f32 %v5133, 1e-05
  %v5150 = vadd.f32 %v5134, 1e-05
  %v5151 = vadd.f32 %v5135, 1e-05
  %v5152 = vadd.f32 %v5136, 1e-05
  %v5153 = vadd.f32 %v5137, 1e-05
  %v5154 = vadd.f32 %v5138, 1e-05
  %v5155 = vadd.f32 %v5139, 1e-05
  %v5156 = vadd.f32 %v5140, 1e-05
  %v5157 = vadd.f32 %v5141, 1e-05
  %v5158 = vadd.f32 %v5142, 1e-05
  %v5159 = vadd.f32 %v5143, 1e-05
  %v5160 = vrsqrt.pop %v5144
  %v5161 = vrsqrt.pop %v5145
  %v5162 = vrsqrt.pop %v5146
  %v5163 = vrsqrt.pop %v5147
  %v5164 = vrsqrt.pop %v5148
  %v5165 = vrsqrt.pop %v5149
  %v5166 = vrsqrt.pop %v5150
  %v5167 = vrsqrt.pop %v5151
  %v5168 = vrsqrt.pop %v5152
  %v5169 = vrsqrt.pop %v5153
  %v5170 = vrsqrt.pop %v5154
  %v5171 = vrsqrt.pop %v5155
  %v5172 = vrsqrt.pop %v5156
  %v5173 = vrsqrt.pop %v5157
  %v5174 = vrsqrt.pop %v5158
  %v5175 = vrsqrt.pop %v5159
  %v5176 = vmul.f32 %v5048, %v5160
  %v5177 = vmul.f32 %v5049, %v5161
  %v5178 = vmul.f32 %v5050, %v5162
  %v5179 = vmul.f32 %v5051, %v5163
  %v5180 = vmul.f32 %v5052, %v5164
  %v5181 = vmul.f32 %v5053, %v5165
  %v5182 = vmul.f32 %v5054, %v5166
  %v5183 = vmul.f32 %v5055, %v5167
  %v5184 = vmul.f32 %v5056, %v5168
  %v5185 = vmul.f32 %v5057, %v5169
  %v5186 = vmul.f32 %v5058, %v5170
  %v5187 = vmul.f32 %v5059, %v5171
  %v5188 = vmul.f32 %v5060, %v5172
  %v5189 = vmul.f32 %v5061, %v5173
  %v5190 = vmul.f32 %v5062, %v5174
  %v5191 = vmul.f32 %v5063, %v5175
  %v5193 = vlaneseq
  %v5194 = vshrl.u32 %v5193, 7
  %v5195 = vsub.s32 0, %v5194
  %v5196 = vrot.slane %v4982, %v5195
  %v5198 = vmul.f32 %v5176, %v5196
  %v5199 = vmul.f32 %v5177, %v5196
  %v5200 = vmul.f32 %v5178, %v5196
  %v5201 = vmul.f32 %v5179, %v5196
  %v5202 = vmul.f32 %v5180, %v5196
  %v5203 = vmul.f32 %v5181, %v5196
  %v5204 = vmul.f32 %v5182, %v5196
  %v5205 = vmul.f32 %v5183, %v5196
  %v5206 = vmul.f32 %v5184, %v5196
  %v5207 = vmul.f32 %v5185, %v5196
  %v5208 = vmul.f32 %v5186, %v5196
  %v5209 = vmul.f32 %v5187, %v5196
  %v5210 = vmul.f32 %v5188, %v5196
  %v5211 = vmul.f32 %v5189, %v5196
  %v5212 = vmul.f32 %v5190, %v5196
  %v5213 = vmul.f32 %v5191, %v5196
  %v5215 = vlaneseq
  %v5216 = vshrl.u32 %v5215, 7
  %v5217 = vsub.s32 0, %v5216
  %v5218 = vrot.slane %v4983, %v5217
  %v5220 = vadd.f32 %v5198, %v5218
  %v5221 = vadd.f32 %v5199, %v5218
  %v5222 = vadd.f32 %v5200, %v5218
  %v5223 = vadd.f32 %v5201, %v5218
  %v5224 = vadd.f32 %v5202, %v5218
  %v5225 = vadd.f32 %v5203, %v5218
  %v5226 = vadd.f32 %v5204, %v5218
  %v5227 = vadd.f32 %v5205, %v5218
  %v5228 = vadd.f32 %v5206, %v5218
  %v5229 = vadd.f32 %v5207, %v5218
  %v5230 = vadd.f32 %v5208, %v5218
  %v5231 = vadd.f32 %v5209, %v5218
  %v5232 = vadd.f32 %v5210, %v5218
  %v5233 = vadd.f32 %v5211, %v5218
  %v5234 = vadd.f32 %v5212, %v5218
  %v5235 = vadd.f32 %v5213, %v5218
  %v5236 = vld [vmem:[%s9] sm:$0xff]
  %v5237 = vld [vmem:[%s9 + $0x8] sm:$0xff]
  %v5238 = vld [vmem:[%s9 + $0x10] sm:$0xff]
  %v5239 = vld [vmem:[%s9 + $0x18] sm:$0xff]
  %v5240 = vld [vmem:[%s10] sm:$0x1]
  %v5242 = vlaneseq
  %v5243 = vshrl.u32 %v5242, 7
  %v5244 = vsub.s32 0, %v5243
  %v5245 = vrot.slane %v5240, %v5244
  %v5248 = vsel %vm119, %v5220, 0
  %v5251 = vsel %vm119, %v5221, 0
  %v5254 = vsel %vm119, %v5222, 0
  %v5257 = vsel %vm119, %v5223, 0
  %v5260 = vsel %vm119, %v5224, 0
  %v5263 = vsel %vm119, %v5225, 0
  %v5266 = vsel %vm119, %v5226, 0
  %v5269 = vsel %vm119, %v5227, 0
  %v5272 = vsel %vm119, %v5228, 0
  %v5275 = vsel %vm119, %v5229, 0
  %v5278 = vsel %vm119, %v5230, 0
  %v5281 = vsel %vm119, %v5231, 0
  %v5284 = vsel %vm119, %v5232, 0
  %v5287 = vsel %vm119, %v5233, 0
  %v5290 = vsel %vm119, %v5234, 0
  %v5293 = vsel %vm119, %v5235, 0
  %5295 = vmatprep.subr.mxu0 0.0
  %5296 = vmatpush1.msra.mxu0 %v5236
  %5297 = vmatprep.subr.mxu0 0.0
  %5298 = vmatpush1.msra.mxu0 %v5237
  %5299 = vmatprep.subr.mxu0 0.0
  %5300 = vmatpush1.msra.mxu0 %v5238
  %5301 = vmatprep.subr.mxu0 0.0
  %5302 = vmatpush1.msra.mxu0 %v5239
  %5303 = vmatprep.subr.mxu0 0.0
  %5304 = vmatpush1.msra.mxu0 0.0
  %5305 = vmatprep.subr.mxu0 0.0
  %5306 = vmatpush1.msra.mxu0 0.0
  %5307 = vmatprep.subr.mxu0 0.0
  %5308 = vmatpush1.msra.mxu0 0.0
  %5309 = vmatprep.subr.mxu0 0.0
  %5310 = vmatpush1.msra.mxu0 0.0
  %5311 = vmatprep.subr.mxu0 0.0
  %5312 = vmatpush1.msra.mxu0 0.0
  %5313 = vmatprep.subr.mxu0 0.0
  %5314 = vmatpush1.msra.mxu0 0.0
  %5315 = vmatprep.subr.mxu0 0.0
  %5316 = vmatpush1.msra.mxu0 0.0
  %5317 = vmatprep.subr.mxu0 0.0
  %5318 = vmatpush1.msra.mxu0 0.0
  %5319 = vmatprep.subr.mxu0 0.0
  %5320 = vmatpush1.msra.mxu0 0.0
  %5321 = vmatprep.subr.mxu0 0.0
  %5322 = vmatpush1.msra.mxu0 0.0
  %5323 = vmatprep.subr.mxu0 0.0
  %5324 = vmatpush1.msra.mxu0 0.0
  %5325 = vmatprep.subr.mxu0 0.0
  %5326 = vmatpush1.msra.mxu0 0.0
  %5327 = vmatprep.subr.mxu0 0.0
  %5328 = vmatpush1.msra.mxu0 0.0
  %5329 = vmatprep.subr.mxu0 0.0
  %5330 = vmatpush1.msra.mxu0 0.0
  %5331 = vmatprep.subr.mxu0 0.0
  %5332 = vmatpush1.msra.mxu0 0.0
  %5333 = vmatprep.subr.mxu0 0.0
  %5334 = vmatpush1.msra.mxu0 0.0
  %5335 = vmatprep.subr.mxu0 0.0
  %5336 = vmatpush1.msra.mxu0 0.0
  %5337 = vmatprep.subr.mxu0 0.0
  %5338 = vmatpush1.msra.mxu0 0.0
  %5339 = vmatprep.subr.mxu0 0.0
  %5340 = vmatpush1.msra.mxu0 0.0
  %5341 = vmatprep.subr.mxu0 0.0
  %5342 = vmatpush1.msra.mxu0 0.0
  %5343 = vmatprep.subr.mxu0 0.0
  %5344 = vmatpush1.msra.mxu0 0.0
  %5345 = vmatprep.subr.mxu0 0.0
  %5346 = vmatpush1.msra.mxu0 0.0
  %5347 = vmatprep.subr.mxu0 0.0
  %5348 = vmatpush1.msra.mxu0 0.0
  %5349 = vmatprep.subr.mxu0 0.0
  %5350 = vmatpush1.msra.mxu0 0.0
  %5351 = vmatprep.subr.mxu0 0.0
  %5352 = vmatpush1.msra.mxu0 0.0
  %5353 = vmatprep.subr.mxu0 0.0
  %5354 = vmatpush1.msra.mxu0 0.0
  %5355 = vmatprep.subr.mxu0 0.0
  %5356 = vmatpush1.msra.mxu0 0.0
  %5357 = vmatprep.subr.mxu0 0.0
  %5358 = vmatpush1.msra.mxu0 0.0
  %5359 = vmatprep.mubr.f32.mxu0 0.0
  %5360 = vmatmul.mubr.f32.gmra.mrb[0].mxu0 %v5248
  %v5361 = vpop.f32.mrb[0].mxu0
  %v5362 = vadd.f32 %v5245, %v5361
  %v5363 = vpop.f32.mrb[0].mxu0
  %5364 = vmatprep.mubr.f32.mxu0 0.0
  %5365 = vmatmul.mubr.f32.gmra.mrb[0].mxu0 %v5251
  %v5366 = vpop.f32.mrb[0].mxu0
  %v5367 = vadd.f32 %v5245, %v5366
  %v5368 = vpop.f32.mrb[0].mxu0
  %5369 = vmatprep.mubr.f32.mxu0 0.0
  %5370 = vmatmul.mubr.f32.gmra.mrb[0].mxu0 %v5254
  %v5371 = vpop.f32.mrb[0].mxu0
  %v5372 = vadd.f32 %v5245, %v5371
  %v5373 = vpop.f32.mrb[0].mxu0
  %5374 = vmatprep.mubr.f32.mxu0 0.0
  %5375 = vmatmul.mubr.f32.gmra.mrb[0].mxu0 %v5257
  %v5376 = vpop.f32.mrb[0].mxu0
  %v5377 = vadd.f32 %v5245, %v5376
  %v5378 = vpop.f32.mrb[0].mxu0
  %5379 = vmatprep.mubr.f32.mxu0 0.0
  %5380 = vmatmul.mubr.f32.gmra.mrb[0].mxu0 %v5260
  %v5381 = vpop.f32.mrb[0].mxu0
  %v5382 = vadd.f32 %v5245, %v5381
  %v5383 = vpop.f32.mrb[0].mxu0
  %5384 = vmatprep.mubr.f32.mxu0 0.0
  %5385 = vmatmul.mubr.f32.gmra.mrb[0].mxu0 %v5263
  %v5386 = vpop.f32.mrb[0].mxu0
  %v5387 = vadd.f32 %v5245, %v5386
  %v5388 = vpop.f32.mrb[0].mxu0
  %5389 = vmatprep.mubr.f32.mxu0 0.0
  %5390 = vmatmul.mubr.f32.gmra.mrb[0].mxu0 %v5266
  %v5391 = vpop.f32.mrb[0].mxu0
  %v5392 = vadd.f32 %v5245, %v5391
  %v5393 = vpop.f32.mrb[0].mxu0
  %5394 = vmatprep.mubr.f32.mxu0 0.0
  %5395 = vmatmul.mubr.f32.gmra.mrb[0].mxu0 %v5269
  %v5396 = vpop.f32.mrb[0].mxu0
  %v5397 = vadd.f32 %v5245, %v5396
  %v5398 = vpop.f32.mrb[0].mxu0
  %5399 = vmatprep.mubr.f32.mxu0 0.0
  %5400 = vmatmul.mubr.f32.gmra.mrb[0].mxu0 %v5272
  %v5401 = vpop.f32.mrb[0].mxu0
  %v5402 = vadd.f32 %v5245, %v5401
  %v5403 = vpop.f32.mrb[0].mxu0
  %5404 = vmatprep.mubr.f32.mxu0 0.0
  %5405 = vmatmul.mubr.f32.gmra.mrb[0].mxu0 %v5275
  %v5406 = vpop.f32.mrb[0].mxu0
  %v5407 = vadd.f32 %v5245, %v5406
  %v5408 = vpop.f32.mrb[0].mxu0
  %5409 = vmatprep.mubr.f32.mxu0 0.0
  %5410 = vmatmul.mubr.f32.gmra.mrb[0].mxu0 %v5278
  %v5411 = vpop.f32.mrb[0].mxu0
  %v5412 = vadd.f32 %v5245, %v5411
  %v5413 = vpop.f32.mrb[0].mxu0
  %5414 = vmatprep.mubr.f32.mxu0 0.0
  %5415 = vmatmul.mubr.f32.gmra.mrb[0].mxu0 %v5281
  %v5416 = vpop.f32.mrb[0].mxu0
  %v5417 = vadd.f32 %v5245, %v5416
  %v5418 = vpop.f32.mrb[0].mxu0
  %5419 = vmatprep.mubr.f32.mxu0 0.0
  %5420 = vmatmul.mubr.f32.gmra.mrb[0].mxu0 %v5284
  %v5421 = vpop.f32.mrb[0].mxu0
  %v5422 = vadd.f32 %v5245, %v5421
  %v5423 = vpop.f32.mrb[0].mxu0
  %5424 = vmatprep.mubr.f32.mxu0 0.0
  %5425 = vmatmul.mubr.f32.gmra.mrb[0].mxu0 %v5287
  %v5426 = vpop.f32.mrb[0].mxu0
  %v5427 = vadd.f32 %v5245, %v5426
  %v5428 = vpop.f32.mrb[0].mxu0
  %5429 = vmatprep.mubr.f32.mxu0 0.0
  %5430 = vmatmul.mubr.f32.gmra.mrb[0].mxu0 %v5290
  %v5431 = vpop.f32.mrb[0].mxu0
  %v5432 = vadd.f32 %v5245, %v5431
  %v5433 = vpop.f32.mrb[0].mxu0
  %5434 = vmatprep.mubr.f32.mxu0 0.0
  %5435 = vmatmul.mubr.f32.gmra.mrb[0].mxu0 %v5293
  %v5436 = vpop.f32.mrb[0].mxu0
  %v5437 = vadd.f32 %v5245, %v5436
  %v5438 = vpop.f32.mrb[0].mxu0
  %5439 = vdwg.mxu0
  %v5440 = vmul.f32 %v5362, 0.5
  %v5441 = vmul.f32 %v5367, 0.5
  %v5442 = vmul.f32 %v5372, 0.5
  %v5443 = vmul.f32 %v5377, 0.5
  %v5444 = vmul.f32 %v5382, 0.5
  %v5445 = vmul.f32 %v5387, 0.5
  %v5446 = vmul.f32 %v5392, 0.5
  %v5447 = vmul.f32 %v5397, 0.5
  %v5448 = vmul.f32 %v5402, 0.5
  %v5449 = vmul.f32 %v5407, 0.5
  %v5450 = vmul.f32 %v5412, 0.5
  %v5451 = vmul.f32 %v5417, 0.5
  %v5452 = vmul.f32 %v5422, 0.5
  %v5453 = vmul.f32 %v5427, 0.5
  %v5454 = vmul.f32 %v5432, 0.5
  %v5455 = vmul.f32 %v5437, 0.5
  %v5456 = vmul.f32 %v5362, 0.70710677
  %v5457 = vmul.f32 %v5367, 0.70710677
  %v5458 = vmul.f32 %v5372, 0.70710677
  %v5459 = vmul.f32 %v5377, 0.70710677
  %v5460 = vmul.f32 %v5382, 0.70710677
  %v5461 = vmul.f32 %v5387, 0.70710677
  %v5462 = vmul.f32 %v5392, 0.70710677
  %v5463 = vmul.f32 %v5397, 0.70710677
  %v5464 = vmul.f32 %v5402, 0.70710677
  %v5465 = vmul.f32 %v5407, 0.70710677
  %v5466 = vmul.f32 %v5412, 0.70710677
  %v5467 = vmul.f32 %v5417, 0.70710677
  %v5468 = vmul.f32 %v5422, 0.70710677
  %v5469 = vmul.f32 %v5427, 0.70710677
  %v5470 = vmul.f32 %v5432, 0.70710677
  %v5471 = vmul.f32 %v5437, 0.70710677
  %v5472 = verf.f32.pop %v5456
  %v5473 = verf.f32.pop %v5457
  %v5474 = verf.f32.pop %v5458
  %v5475 = verf.f32.pop %v5459
  %v5476 = verf.f32.pop %v5460
  %v5477 = verf.f32.pop %v5461
  %v5478 = verf.f32.pop %v5462
  %v5479 = verf.f32.pop %v5463
  %v5480 = verf.f32.pop %v5464
  %v5481 = verf.f32.pop %v5465
  %v5482 = verf.f32.pop %v5466
  %v5483 = verf.f32.pop %v5467
  %v5484 = verf.f32.pop %v5468
  %v5485 = verf.f32.pop %v5469
  %v5486 = verf.f32.pop %v5470
  %v5487 = verf.f32.pop %v5471
  %v5488 = vadd.f32 %v5472, 1.0
  %v5489 = vadd.f32 %v5473, 1.0
  %v5490 = vadd.f32 %v5474, 1.0
  %v5491 = vadd.f32 %v5475, 1.0
  %v5492 = vadd.f32 %v5476, 1.0
  %v5493 = vadd.f32 %v5477, 1.0
  %v5494 = vadd.f32 %v5478, 1.0
  %v5495 = vadd.f32 %v5479, 1.0
  %v5496 = vadd.f32 %v5480, 1.0
  %v5497 = vadd.f32 %v5481, 1.0
  %v5498 = vadd.f32 %v5482, 1.0
  %v5499 = vadd.f32 %v5483, 1.0
  %v5500 = vadd.f32 %v5484, 1.0
  %v5501 = vadd.f32 %v5485, 1.0
  %v5502 = vadd.f32 %v5486, 1.0
  %v5503 = vadd.f32 %v5487, 1.0
  %v5504 = vmul.f32 %v5440, %v5488
  %v5505 = vmul.f32 %v5441, %v5489
  %v5506 = vmul.f32 %v5442, %v5490
  %v5507 = vmul.f32 %v5443, %v5491
  %v5508 = vmul.f32 %v5444, %v5492
  %v5509 = vmul.f32 %v5445, %v5493
  %v5510 = vmul.f32 %v5446, %v5494
  %v5511 = vmul.f32 %v5447, %v5495
  %v5512 = vmul.f32 %v5448, %v5496
  %v5513 = vmul.f32 %v5449, %v5497
  %v5514 = vmul.f32 %v5450, %v5498
  %v5515 = vmul.f32 %v5451, %v5499
  %v5516 = vmul.f32 %v5452, %v5500
  %v5517 = vmul.f32 %v5453, %v5501
  %v5518 = vmul.f32 %v5454, %v5502
  %v5519 = vmul.f32 %v5455, %v5503
  %v5520 = vld [vmem:[%s11] sm:$0xff]
  %v5521 = vld [vmem:[%s11 + $0x8] sm:$0xff]
  %v5522 = vld [vmem:[%s11 + $0x10] sm:$0xff]
  %v5523 = vld [vmem:[%s11 + $0x18] sm:$0xff]
  %v5524 = vld [vmem:[%s12] sm:$0x1]
  %v5526 = vlaneseq
  %v5527 = vshrl.u32 %v5526, 7
  %v5528 = vsub.s32 0, %v5527
  %v5529 = vrot.slane %v5524, %v5528
  %v5532 = vsel %vm119, %v5504, 0
  %v5535 = vsel %vm119, %v5505, 0
  %v5538 = vsel %vm119, %v5506, 0
  %v5541 = vsel %vm119, %v5507, 0
  %v5544 = vsel %vm119, %v5508, 0
  %v5547 = vsel %vm119, %v5509, 0
  %v5550 = vsel %vm119, %v5510, 0
  %v5553 = vsel %vm119, %v5511, 0
  %v5556 = vsel %vm119, %v5512, 0
  %v5559 = vsel %vm119, %v5513, 0
  %v5562 = vsel %vm119, %v5514, 0
  %v5565 = vsel %vm119, %v5515, 0
  %v5568 = vsel %vm119, %v5516, 0
  %v5571 = vsel %vm119, %v5517, 0
  %v5574 = vsel %vm119, %v5518, 0
  %v5577 = vsel %vm119, %v5519, 0
  %5579 = vmatprep.subr.mxu0 0.0
  %5580 = vmatpush1.msra.mxu0 %v5520
  %5581 = vmatprep.subr.mxu0 0.0
  %5582 = vmatpush1.msra.mxu0 %v5521
  %5583 = vmatprep.subr.mxu0 0.0
  %5584 = vmatpush1.msra.mxu0 %v5522
  %5585 = vmatprep.subr.mxu0 0.0
  %5586 = vmatpush1.msra.mxu0 %v5523
  %5587 = vmatprep.subr.mxu0 0.0
  %5588 = vmatpush1.msra.mxu0 0.0
  %5589 = vmatprep.subr.mxu0 0.0
  %5590 = vmatpush1.msra.mxu0 0.0
  %5591 = vmatprep.subr.mxu0 0.0
  %5592 = vmatpush1.msra.mxu0 0.0
  %5593 = vmatprep.subr.mxu0 0.0
  %5594 = vmatpush1.msra.mxu0 0.0
  %5595 = vmatprep.subr.mxu0 0.0
  %5596 = vmatpush1.msra.mxu0 0.0
  %5597 = vmatprep.subr.mxu0 0.0
  %5598 = vmatpush1.msra.mxu0 0.0
  %5599 = vmatprep.subr.mxu0 0.0
  %5600 = vmatpush1.msra.mxu0 0.0
  %5601 = vmatprep.subr.mxu0 0.0
  %5602 = vmatpush1.msra.mxu0 0.0
  %5603 = vmatprep.subr.mxu0 0.0
  %5604 = vmatpush1.msra.mxu0 0.0
  %5605 = vmatprep.subr.mxu0 0.0
  %5606 = vmatpush1.msra.mxu0 0.0
  %5607 = vmatprep.subr.mxu0 0.0
  %5608 = vmatpush1.msra.mxu0 0.0
  %5609 = vmatprep.subr.mxu0 0.0
  %5610 = vmatpush1.msra.mxu0 0.0
  %5611 = vmatprep.subr.mxu0 0.0
  %5612 = vmatpush1.msra.mxu0 0.0
  %5613 = vmatprep.subr.mxu0 0.0
  %5614 = vmatpush1.msra.mxu0 0.0
  %5615 = vmatprep.subr.mxu0 0.0
  %5616 = vmatpush1.msra.mxu0 0.0
  %5617 = vmatprep.subr.mxu0 0.0
  %5618 = vmatpush1.msra.mxu0 0.0
  %5619 = vmatprep.subr.mxu0 0.0
  %5620 = vmatpush1.msra.mxu0 0.0
  %5621 = vmatprep.subr.mxu0 0.0
  %5622 = vmatpush1.msra.mxu0 0.0
  %5623 = vmatprep.subr.mxu0 0.0
  %5624 = vmatpush1.msra.mxu0 0.0
  %5625 = vmatprep.subr.mxu0 0.0
  %5626 = vmatpush1.msra.mxu0 0.0
  %5627 = vmatprep.subr.mxu0 0.0
  %5628 = vmatpush1.msra.mxu0 0.0
  %5629 = vmatprep.subr.mxu0 0.0
  %5630 = vmatpush1.msra.mxu0 0.0
  %5631 = vmatprep.subr.mxu0 0.0
  %5632 = vmatpush1.msra.mxu0 0.0
  %5633 = vmatprep.subr.mxu0 0.0
  %5634 = vmatpush1.msra.mxu0 0.0
  %5635 = vmatprep.subr.mxu0 0.0
  %5636 = vmatpush1.msra.mxu0 0.0
  %5637 = vmatprep.subr.mxu0 0.0
  %5638 = vmatpush1.msra.mxu0 0.0
  %5639 = vmatprep.subr.mxu0 0.0
  %5640 = vmatpush1.msra.mxu0 0.0
  %5641 = vmatprep.subr.mxu0 0.0
  %5642 = vmatpush1.msra.mxu0 0.0
  %5643 = vmatprep.mubr.f32.mxu0 0.0
  %5644 = vmatmul.mubr.f32.gmra.mrb[0].mxu0 %v5532
  %v5645 = vpop.f32.mrb[0].mxu0
  %v5646 = vadd.f32 %v5529, %v5645
  %v5647 = vpop.f32.mrb[0].mxu0
  %5648 = vmatprep.mubr.f32.mxu0 0.0
  %5649 = vmatmul.mubr.f32.gmra.mrb[0].mxu0 %v5535
  %v5650 = vpop.f32.mrb[0].mxu0
  %v5651 = vadd.f32 %v5529, %v5650
  %v5652 = vpop.f32.mrb[0].mxu0
  %5653 = vmatprep.mubr.f32.mxu0 0.0
  %5654 = vmatmul.mubr.f32.gmra.mrb[0].mxu0 %v5538
  %v5655 = vpop.f32.mrb[0].mxu0
  %v5656 = vadd.f32 %v5529, %v5655
  %v5657 = vpop.f32.mrb[0].mxu0
  %5658 = vmatprep.mubr.f32.mxu0 0.0
  %5659 = vmatmul.mubr.f32.gmra.mrb[0].mxu0 %v5541
  %v5660 = vpop.f32.mrb[0].mxu0
  %v5661 = vadd.f32 %v5529, %v5660
  %v5662 = vpop.f32.mrb[0].mxu0
  %5663 = vmatprep.mubr.f32.mxu0 0.0
  %5664 = vmatmul.mubr.f32.gmra.mrb[0].mxu0 %v5544
  %v5665 = vpop.f32.mrb[0].mxu0
  %v5666 = vadd.f32 %v5529, %v5665
  %v5667 = vpop.f32.mrb[0].mxu0
  %5668 = vmatprep.mubr.f32.mxu0 0.0
  %5669 = vmatmul.mubr.f32.gmra.mrb[0].mxu0 %v5547
  %v5670 = vpop.f32.mrb[0].mxu0
  %v5671 = vadd.f32 %v5529, %v5670
  %v5672 = vpop.f32.mrb[0].mxu0
  %5673 = vmatprep.mubr.f32.mxu0 0.0
  %5674 = vmatmul.mubr.f32.gmra.mrb[0].mxu0 %v5550
  %v5675 = vpop.f32.mrb[0].mxu0
  %v5676 = vadd.f32 %v5529, %v5675
  %v5677 = vpop.f32.mrb[0].mxu0
  %5678 = vmatprep.mubr.f32.mxu0 0.0
  %5679 = vmatmul.mubr.f32.gmra.mrb[0].mxu0 %v5553
  %v5680 = vpop.f32.mrb[0].mxu0
  %v5681 = vadd.f32 %v5529, %v5680
  %v5682 = vpop.f32.mrb[0].mxu0
  %5683 = vmatprep.mubr.f32.mxu0 0.0
  %5684 = vmatmul.mubr.f32.gmra.mrb[0].mxu0 %v5556
  %v5685 = vpop.f32.mrb[0].mxu0
  %v5686 = vadd.f32 %v5529, %v5685
  %v5687 = vpop.f32.mrb[0].mxu0
  %5688 = vmatprep.mubr.f32.mxu0 0.0
  %5689 = vmatmul.mubr.f32.gmra.mrb[0].mxu0 %v5559
  %v5690 = vpop.f32.mrb[0].mxu0
  %v5691 = vadd.f32 %v5529, %v5690
  %v5692 = vpop.f32.mrb[0].mxu0
  %5693 = vmatprep.mubr.f32.mxu0 0.0
  %5694 = vmatmul.mubr.f32.gmra.mrb[0].mxu0 %v5562
  %v5695 = vpop.f32.mrb[0].mxu0
  %v5696 = vadd.f32 %v5529, %v5695
  %v5697 = vpop.f32.mrb[0].mxu0
  %5698 = vmatprep.mubr.f32.mxu0 0.0
  %5699 = vmatmul.mubr.f32.gmra.mrb[0].mxu0 %v5565
  %v5700 = vpop.f32.mrb[0].mxu0
  %v5701 = vadd.f32 %v5529, %v5700
  %v5702 = vpop.f32.mrb[0].mxu0
  %5703 = vmatprep.mubr.f32.mxu0 0.0
  %5704 = vmatmul.mubr.f32.gmra.mrb[0].mxu0 %v5568
  %v5705 = vpop.f32.mrb[0].mxu0
  %v5706 = vadd.f32 %v5529, %v5705
  %v5707 = vpop.f32.mrb[0].mxu0
  %5708 = vmatprep.mubr.f32.mxu0 0.0
  %5709 = vmatmul.mubr.f32.gmra.mrb[0].mxu0 %v5571
  %v5710 = vpop.f32.mrb[0].mxu0
  %v5711 = vadd.f32 %v5529, %v5710
  %v5712 = vpop.f32.mrb[0].mxu0
  %5713 = vmatprep.mubr.f32.mxu0 0.0
  %5714 = vmatmul.mubr.f32.gmra.mrb[0].mxu0 %v5574
  %v5715 = vpop.f32.mrb[0].mxu0
  %v5716 = vadd.f32 %v5529, %v5715
  %v5717 = vpop.f32.mrb[0].mxu0
  %5718 = vmatprep.mubr.f32.mxu0 0.0
  %5719 = vmatmul.mubr.f32.gmra.mrb[0].mxu0 %v5577
  %v5720 = vpop.f32.mrb[0].mxu0
  %v5721 = vadd.f32 %v5529, %v5720
  %v5722 = vpop.f32.mrb[0].mxu0
  %5723 = vdwg.mxu0
  %v5724 = vadd.f32 %v5646, %v4966
  %v5725 = vadd.f32 %v5651, %v4967
  %v5726 = vadd.f32 %v5656, %v4968
  %v5727 = vadd.f32 %v5661, %v4969
  %v5728 = vadd.f32 %v5666, %v4970
  %v5729 = vadd.f32 %v5671, %v4971
  %v5730 = vadd.f32 %v5676, %v4972
  %v5731 = vadd.f32 %v5681, %v4973
  %v5732 = vadd.f32 %v5686, %v4974
  %v5733 = vadd.f32 %v5691, %v4975
  %v5734 = vadd.f32 %v5696, %v4976
  %v5735 = vadd.f32 %v5701, %v4977
  %v5736 = vadd.f32 %v5706, %v4978
  %v5737 = vadd.f32 %v5711, %v4979
  %v5738 = vadd.f32 %v5716, %v4980
  %v5739 = vadd.f32 %v5721, %v4981
  %5740 = vxpose.xlu0.b32.start [1/16] %v5724, 128
  %5741 = vxpose.xlu0.b32.cont [2/16] %v5725, 128
  %5742 = vxpose.xlu0.b32.cont [3/16] %v5726, 128
  %5743 = vxpose.xlu0.b32.cont [4/16] %v5727, 128
  %5744 = vxpose.xlu0.b32.cont [5/16] %v5728, 128
  %5745 = vxpose.xlu0.b32.cont [6/16] %v5729, 128
  %5746 = vxpose.xlu0.b32.cont [7/16] %v5730, 128
  %5747 = vxpose.xlu0.b32.cont [8/16] %v5731, 128
  %5748 = vxpose.xlu0.b32.cont [9/16] 0.0, 128
  %5749 = vxpose.xlu0.b32.cont [10/16] 0.0, 128
  %5750 = vxpose.xlu0.b32.cont [11/16] 0.0, 128
  %5751 = vxpose.xlu0.b32.cont [12/16] 0.0, 128
  %5752 = vxpose.xlu0.b32.cont [13/16] 0.0, 128
  %5753 = vxpose.xlu0.b32.cont [14/16] 0.0, 128
  %5754 = vxpose.xlu0.b32.cont [15/16] 0.0, 128
  %5755 = vxpose.xlu0.b32.end [16/16] 0.0, 128
  %v5756 = vpop.trf.xlu0
  %v5757 = vpop.trf.xlu0
  %v5758 = vpop.trf.xlu0
  %v5759 = vpop.trf.xlu0
  %v5760 = vpop.trf.xlu0
  %v5761 = vpop.trf.xlu0
  %v5762 = vpop.trf.xlu0
  %v5763 = vpop.trf.xlu0
  %v5764 = vpop.trf.xlu0
  %v5765 = vpop.trf.xlu0
  %v5766 = vpop.trf.xlu0
  %v5767 = vpop.trf.xlu0
  %v5768 = vpop.trf.xlu0
  %v5769 = vpop.trf.xlu0
  %v5770 = vpop.trf.xlu0
  %v5771 = vpop.trf.xlu0
  %5772 = vst.msk [vmem:[%s13] sm:$0xff] %vm767, %v5756
  %5773 = vst.msk [vmem:[%s13 + $0x8] sm:$0xff] %vm767, %v5757
  %5774 = vst.msk [vmem:[%s13 + $0x10] sm:$0xff] %vm767, %v5758
  %5775 = vst.msk [vmem:[%s13 + $0x18] sm:$0xff] %vm767, %v5759
  %5776 = vxpose.xlu0.b32.start [1/16] %v5732, 128
  %5777 = vxpose.xlu0.b32.cont [2/16] %v5733, 128
  %5778 = vxpose.xlu0.b32.cont [3/16] %v5734, 128
  %5779 = vxpose.xlu0.b32.cont [4/16] %v5735, 128
  %5780 = vxpose.xlu0.b32.cont [5/16] %v5736, 128
  %5781 = vxpose.xlu0.b32.cont [6/16] %v5737, 128
  %5782 = vxpose.xlu0.b32.cont [7/16] %v5738, 128
  %5783 = vxpose.xlu0.b32.cont [8/16] %v5739, 128
  %5784 = vxpose.xlu0.b32.cont [9/16] 0.0, 128
  %5785 = vxpose.xlu0.b32.cont [10/16] 0.0, 128
  %5786 = vxpose.xlu0.b32.cont [11/16] 0.0, 128
  %5787 = vxpose.xlu0.b32.cont [12/16] 0.0, 128
  %5788 = vxpose.xlu0.b32.cont [13/16] 0.0, 128
  %5789 = vxpose.xlu0.b32.cont [14/16] 0.0, 128
  %5790 = vxpose.xlu0.b32.cont [15/16] 0.0, 128
  %5791 = vxpose.xlu0.b32.end [16/16] 0.0, 128
  %v5792 = vpop.trf.xlu0
  %v5793 = vpop.trf.xlu0
  %v5794 = vpop.trf.xlu0
  %v5795 = vpop.trf.xlu0
  %v5796 = vpop.trf.xlu0
  %v5797 = vpop.trf.xlu0
  %v5798 = vpop.trf.xlu0
  %v5799 = vpop.trf.xlu0
  %v5800 = vpop.trf.xlu0
  %v5801 = vpop.trf.xlu0
  %v5802 = vpop.trf.xlu0
  %v5803 = vpop.trf.xlu0
  %v5804 = vpop.trf.xlu0
  %v5805 = vpop.trf.xlu0
  %v5806 = vpop.trf.xlu0
  %v5807 = vpop.trf.xlu0
  %s5808 = scalar_lea.vmem %s13, 32
  %5809 = vst.msk [vmem:[%s5808] sm:$0xff] %vm767, %v5792
  %5810 = vst.msk [vmem:[%s5808 + $0x8] sm:$0xff] %vm767, %v5793
  %5811 = vst.msk [vmem:[%s5808 + $0x10] sm:$0xff] %vm767, %v5794
  %5812 = vst.msk [vmem:[%s5808 + $0x18] sm:$0xff] %vm767, %v5795
  // Predicated region
  $region54: #{self_attention_forward.1} parent=0 // pred_check
    _
  $region55: #{self_attention_forward.1} parent=0 // pred_check_branch
    %5814 = sbr.rel (0) target = $region57
  $region56: #{self_attention_forward.1} parent=0 // pred_region
    _
  $region57: #{self_attention_forward.1} parent=0 // pred_fallthru
    _
  // Predicated region
  $region58: #{self_attention_forward.1} parent=0 // pred_check
    _
  $region59: #{self_attention_forward.1} parent=0 // pred_check_branch
    %5816 = sbr.rel (0) target = $region61
  $region60: #{self_attention_forward.1} parent=0 // pred_region
    _
  $region61: #{self_attention_forward.1} parent=0 // pred_fallthru
    _

</llo_original>
